<compile_context>
chip_gen: v5e
topology: v5e:2x2
jax: 0.10.0
libtpu: 0.0.40
codegen_flags: <defaults>
</compile_context>

<pallas_src>
import jax
import jax.numpy as jnp
from jax.experimental import pallas as pl
from jax.experimental.pallas import tpu as pltpu


# ----------------------------------------------------------------------------
# Kernel 1: direct conv (stride 1) as a sum of kh*kw shifted matmuls,
#           fused folded-BN + ReLU epilogue.  One grid step per batch item;
#           the activation is read from HBM exactly once (no im2col blow-up).
# ----------------------------------------------------------------------------
def _make_direct_conv_kernel(kh, kw, Ho, Wo, cin, cout):
    taps = [(di, dj) for di in range(kh) for dj in range(kw)]

    def kernel(x_ref, w_ref, s_ref, b_ref, o_ref):
        xv = x_ref[0]                                    # (Hp, Wp, Cin), one load
        acc = jnp.zeros((Ho * Wo, cout), jnp.float32)
        for t, (di, dj) in enumerate(taps):              # static unroll (kh*kw)
            win = xv[di:di + Ho, dj:dj + Wo, :].reshape(Ho * Wo, cin)
            acc = acc + jnp.dot(win, w_ref[t],
                                preferred_element_type=jnp.float32)
        acc = acc * s_ref[...] + b_ref[...]              # folded BatchNorm (f32)
        y = jnp.maximum(acc, 0.0)                        # ReLU (f32)
        o_ref[0] = y.reshape(Ho, Wo, cout).astype(o_ref.dtype)

    return kernel


def conv_bn_relu_direct(x, w, scale, bias, *, pad=0, out_dtype=jnp.bfloat16):
    """x: (B,H,W,Cin) NHWC; w: (kh,kw,Cin,Cout); scale/bias: (1,Cout) f32."""
    kh, kw, cin, cout = w.shape
    if pad:
        x = jnp.pad(x, ((0, 0), (pad, pad), (pad, pad), (0, 0)))
    B, Hp, Wp, _ = x.shape
    Ho, Wo = Hp - kh + 1, Wp - kw + 1
    w_taps = w.reshape(kh * kw, cin, cout)

    cost = pl.CostEstimate(
        flops=2 * B * Ho * Wo * kh * kw * cin * cout,
        transcendentals=0,
        bytes_accessed=(x.size * x.dtype.itemsize
                        + w_taps.size * w_taps.dtype.itemsize
                        + B * Ho * Wo * cout * jnp.dtype(out_dtype).itemsize),
    )
    kernel = _make_direct_conv_kernel(kh, kw, Ho, Wo, cin, cout)
    return pl.pallas_call(
        kernel,
        out_shape=jax.ShapeDtypeStruct((B, Ho, Wo, cout), out_dtype),
        grid=(B,),
        in_specs=[
            pl.BlockSpec((1, Hp, Wp, cin), lambda b: (b, 0, 0, 0)),
            pl.BlockSpec((kh * kw, cin, cout), lambda b: (0, 0, 0)),
            pl.BlockSpec((1, cout), lambda b: (0, 0)),
            pl.BlockSpec((1, cout), lambda b: (0, 0)),
        ],
        out_specs=pl.BlockSpec((1, Ho, Wo, cout), lambda b: (b, 0, 0, 0)),
        compiler_params=pltpu.CompilerParams(dimension_semantics=("parallel",)),
        cost_estimate=cost,
    )(x, w_taps, scale, bias)


# ----------------------------------------------------------------------------
# Kernel 2: fused (im2col-matmul) + folded-BN + ReLU — used only for the
#           stride-2 stem conv.  Large M tiles, ragged last tile via cdiv grid.
# ----------------------------------------------------------------------------
def _matmul_bn_relu_kernel(p_ref, w_ref, s_ref, b_ref, o_ref):
    acc = jnp.dot(p_ref[...], w_ref[...], preferred_element_type=jnp.float32)
    acc = acc * s_ref[...] + b_ref[...]          # folded BatchNorm (f32)
    o_ref[...] = jnp.maximum(acc, 0.0).astype(o_ref.dtype)


def _pick_tm(M, K, N, itemsize, tm, vmem_budget=16 * 1024 * 1024):
    # Largest tile that fits a conservative VMEM budget (safe on v7x's 64 MiB /
    # 32 MiB scoped VMEM as well as v5e/v6e); double-buffered patch + out tiles
    # plus resident weights.
    tm = min(tm, pl.cdiv(M, 8) * 8)
    while tm > 8 and 2 * tm * (K + N) * itemsize + K * N * itemsize > vmem_budget:
        tm = max(8, (tm // 2) // 8 * 8)
    return tm


def fused_matmul_bn_relu(patches, w_mat, scale, bias, *, tm=256,
                         out_dtype=jnp.bfloat16):
    """patches: (M, K), w_mat: (K, N), scale/bias: (1, N) f32 -> (M, N)."""
    M, K = patches.shape
    N = w_mat.shape[1]
    tm = _pick_tm(M, K, N, patches.dtype.itemsize, tm)
    cost = pl.CostEstimate(
        flops=2 * M * K * N,
        transcendentals=0,
        bytes_accessed=(patches.size * patches.dtype.itemsize
                        + w_mat.size * w_mat.dtype.itemsize
                        + M * N * jnp.dtype(out_dtype).itemsize),
    )
    return pl.pallas_call(
        _matmul_bn_relu_kernel,
        out_shape=jax.ShapeDtypeStruct((M, N), out_dtype),
        grid=(pl.cdiv(M, tm),),          # ragged last tile handled by Pallas
        in_specs=[
            pl.BlockSpec((tm, K), lambda i: (i, 0)),
            pl.BlockSpec((K, N), lambda i: (0, 0)),
            pl.BlockSpec((1, N), lambda i: (0, 0)),
            pl.BlockSpec((1, N), lambda i: (0, 0)),
        ],
        out_specs=pl.BlockSpec((tm, N), lambda i: (i, 0)),
        compiler_params=pltpu.CompilerParams(dimension_semantics=("parallel",)),
        cost_estimate=cost,
    )(patches, w_mat, scale, bias)


def im2col(x, kh, kw, stride, pad):
    # x: (B, H, W, C) NHWC.  Pure slicing/reshaping glue (no compute).
    if pad:
        x = jnp.pad(x, ((0, 0), (pad, pad), (pad, pad), (0, 0)))
    B, H, W, C = x.shape
    Ho = (H - kh) // stride + 1
    Wo = (W - kw) // stride + 1
    cols = []
    for i in range(kh):
        for j in range(kw):
            cols.append(x[:, i:i + stride * Ho:stride, j:j + stride * Wo:stride, :])
    patches = jnp.concatenate(cols, axis=-1)           # (B, Ho, Wo, kh*kw*C)
    return patches.reshape(B * Ho * Wo, kh * kw * C), (B, Ho, Wo)


def conv_bn_relu_im2col(x, w, scale, bias, *, stride, pad=0,
                        out_dtype=jnp.bfloat16):
    # TODO(synk): the stride-2 stem conv still builds an im2col patch matrix
    # (only layer that does); all stride-1 convs use the direct in-kernel path.
    kh, kw, cin, cout = w.shape
    patches, (B, Ho, Wo) = im2col(x, kh, kw, stride, pad)
    out = fused_matmul_bn_relu(patches, w.reshape(kh * kw * cin, cout),
                               scale, bias, out_dtype=out_dtype)
    return out.reshape(B, Ho, Wo, cout)


# ----------------------------------------------------------------------------
# Deterministic parameter init (folded BN, eps = 0.001 as in BasicConv2d)
# ----------------------------------------------------------------------------
def init_basic_conv(key, kh, kw, cin, cout):
    kw_, kg, kb, km, kv = jax.random.split(key, 5)
    w = 0.1 * jax.random.normal(kw_, (kh, kw, cin, cout), jnp.float32)
    gamma = 1.0 + 0.1 * jax.random.normal(kg, (cout,), jnp.float32)
    beta = 0.1 * jax.random.normal(kb, (cout,), jnp.float32)
    mean = 0.1 * jax.random.normal(km, (cout,), jnp.float32)
    var = jnp.abs(jax.random.normal(kv, (cout,), jnp.float32)) + 0.5
    scale = gamma / jnp.sqrt(var + 1e-3)
    bias = beta - mean * scale
    return w, scale[None, :], bias[None, :]


class EncoderCNNPallas:
    """Pallas port of EncoderCNN: truncated inception backbone + permute/view."""

    def __init__(self, key, in_ch=4, compute_dtype=jnp.bfloat16):
        self.cd = compute_dtype
        ks = jax.random.split(key, 7)
        # stem (BasicConv2d stack, mirrors Conv2d_1a/2a/2b pattern)
        self.conv1 = init_basic_conv(ks[0], 3, 3, in_ch, 8)    # stride 2
        self.conv2 = init_basic_conv(ks[1], 3, 3, 8, 8)
        self.conv3 = init_basic_conv(ks[2], 3, 3, 8, 16)       # pad 1
        # simplified Mixed block: 1x1 / 1x1->3x3 / avgpool3x3->1x1
        self.b1x1 = init_basic_conv(ks[3], 1, 1, 16, 8)
        self.b3x3_reduce = init_basic_conv(ks[4], 1, 1, 16, 8)
        self.b3x3 = init_basic_conv(ks[5], 3, 3, 8, 8)          # pad 1
        self.bpool = init_basic_conv(ks[6], 1, 1, 16, 8)
        # Fuse the three branches that consume x (1x1, 3x3-reduce,
        # avgpool3x3 + 1x1) into ONE 3x3 / pad-1 conv:
        #   * 1x1 convs occupy only the centre tap (other taps zero);
        #   * avg_pool(3x3, SAME, count_include_pad) followed by a 1x1 conv is
        #     exactly a 3x3 conv with uniform weights W/9 (linearity).
        self.mixed_in = self._fuse_mixed_input_branches()
        self.n_b1 = self.b1x1[0].shape[3]
        self.n_red = self.b3x3_reduce[0].shape[3]
        # TODO(synk): channel counts here (8-24) are far below the 128-lane
        # width (toy stand-in); real inception channel counts are lane-dense.

    def _fuse_mixed_input_branches(self):
        w1, s1, b1 = self.b1x1
        wr, sr, br = self.b3x3_reduce
        wp, sp, bp = self.bpool
        cin = w1.shape[2]
        c1, cr, cp = w1.shape[3], wr.shape[3], wp.shape[3]
        w = jnp.zeros((3, 3, cin, c1 + cr + cp), jnp.float32)
        w = w.at[1, 1, :, :c1].set(w1[0, 0])
        w = w.at[1, 1, :, c1:c1 + cr].set(wr[0, 0])
        w = w.at[:, :, :, c1 + cr:].set(
            jnp.broadcast_to(wp[0, 0] / 9.0, (3, 3, cin, cp)))
        scale = jnp.concatenate([s1, sr, sp], axis=1)
        bias = jnp.concatenate([b1, br, bp], axis=1)
        return w, scale, bias

    def __call__(self, images_nchw):
        cd = self.cd
        # PyTorch hands the backbone NCHW images -> kernel layout NHWC.
        x = jnp.transpose(images_nchw, (0, 2, 3, 1)).astype(cd)

        # stem
        # TODO(synk): whole-stem fusion into a single pallas_call (activations
        # resident in VMEM across layers) is not done; each conv is one call.
        w, s, b = self.conv1
        x = conv_bn_relu_im2col(x, w.astype(cd), s, b, stride=2, out_dtype=cd)
        w, s, b = self.conv2
        x = conv_bn_relu_direct(x, w.astype(cd), s, b, pad=0, out_dtype=cd)
        w, s, b = self.conv3
        x = conv_bn_relu_direct(x, w.astype(cd), s, b, pad=1, out_dtype=cd)

        # Mixed block: one fused conv covers the 1x1 branch, the 3x3-reduce and
        # the (avg-pool + 1x1) pool branch; x is read from HBM exactly once.
        w, s, b = self.mixed_in
        fused = conv_bn_relu_direct(x, w.astype(cd), s, b, pad=1, out_dtype=cd)
        b1 = fused[..., :self.n_b1]
        red = fused[..., self.n_b1:self.n_b1 + self.n_red]
        bp = fused[..., self.n_b1 + self.n_red:]
        w, s, b = self.b3x3
        b2 = conv_bn_relu_direct(red, w.astype(cd), s, b, pad=1, out_dtype=cd)

        x = jnp.concatenate([b1, b2, bp], axis=-1)              # (B, H, W, C)
        # features.permute(0, 2, 3, 1).view(B, -1, C): permute is the identity
        # in NHWC, so only the spatial flatten remains.
        B, H, W, C = x.shape
        return x.reshape(B, H * W, C).astype(jnp.float32)


if __name__ == "__main__":
    key = jax.random.PRNGKey(0)
    pkey, xkey = jax.random.split(key)
    encoder = EncoderCNNPallas(pkey, in_ch=4)
    # small synthetic NCHW batch (PyTorch convention): B=2, C=4, H=W=16
    images = jax.random.normal(xkey, (2, 4, 16, 16), jnp.float32)
    feats = jax.jit(encoder.__call__)(images)
    jax.block_until_ready(feats)
    assert feats.shape == (2, 25, 24), feats.shape   # (B, H*W, C_features)
    assert feats.dtype == jnp.float32
    assert bool(jnp.all(jnp.isfinite(feats)))
    print("KERNEL_OK")
</pallas_src>

<mosaic_0001>
module attributes {stable_mosaic.version = 11 : i64} {
  func.func @_matmul_bn_relu_kernel(%arg0: i32, %arg1: memref<104x36xbf16, #tpu.memory_space<vmem>>, %arg2: memref<36x8xbf16, #tpu.memory_space<vmem>>, %arg3: memref<1x8xf32, #tpu.memory_space<vmem>>, %arg4: memref<1x8xf32, #tpu.memory_space<vmem>>, %arg5: memref<104x8xbf16, #tpu.memory_space<vmem>>) attributes {dimension_semantics = [#tpu.dimension_semantics<parallel>], iteration_bounds = array<i64: 1>, scalar_prefetch = 0 : i64, scratch_operands = 0 : i64, tpu.core_type = #tpu.core_type<tc>, window_params = [{transform_indices = @transform_0, window_bounds = array<i64: 104, 36>}, {pipeline_mode = #tpu.pipeline_mode<synchronous>, transform_indices = @transform_1, window_bounds = array<i64: 36, 8>}, {pipeline_mode = #tpu.pipeline_mode<synchronous>, transform_indices = @transform_2, window_bounds = array<i64: 1, 8>}, {pipeline_mode = #tpu.pipeline_mode<synchronous>, transform_indices = @transform_3, window_bounds = array<i64: 1, 8>}, {transform_indices = @transform_4, window_bounds = array<i64: 104, 8>}]} {
    %c0 = arith.constant 0 : index
    %c0_0 = arith.constant 0 : index
    %0 = vector.load %arg1[%c0, %c0_0] : memref<104x36xbf16, #tpu.memory_space<vmem>>, vector<104x36xbf16>
    %c0_1 = arith.constant 0 : index
    %c0_2 = arith.constant 0 : index
    %1 = vector.load %arg2[%c0_1, %c0_2] : memref<36x8xbf16, #tpu.memory_space<vmem>>, vector<36x8xbf16>
    %cst = arith.constant dense<0.000000e+00> : vector<104x8xf32>
    %2 = tpu.matmul %0, %1, %cst {dimension_numbers = #tpu.dot_dimension_numbers<[1], [0], [0], [1], [0, 0, 1, 1], [], []>} : vector<104x36xbf16>, vector<36x8xbf16>, vector<104x8xf32> -> vector<104x8xf32>
    %c0_3 = arith.constant 0 : index
    %c0_4 = arith.constant 0 : index
    %3 = vector.load %arg3[%c0_3, %c0_4] : memref<1x8xf32, #tpu.memory_space<vmem>>, vector<1x8xf32>
    %4 = vector.broadcast %3 : vector<1x8xf32> to vector<104x8xf32>
    %5 = arith.mulf %2, %4 : vector<104x8xf32>
    %c0_5 = arith.constant 0 : index
    %c0_6 = arith.constant 0 : index
    %6 = vector.load %arg4[%c0_5, %c0_6] : memref<1x8xf32, #tpu.memory_space<vmem>>, vector<1x8xf32>
    %7 = vector.broadcast %6 : vector<1x8xf32> to vector<104x8xf32>
    %8 = arith.addf %5, %7 : vector<104x8xf32>
    %cst_7 = arith.constant 0.000000e+00 : f32
    %9 = vector.broadcast %cst_7 : f32 to vector<104x8xf32>
    %10 = arith.maximumf %8, %9 : vector<104x8xf32>
    %11 = arith.truncf %10 : vector<104x8xf32> to vector<104x8xbf16>
    %c0_8 = arith.constant 0 : index
    %c0_9 = arith.constant 0 : index
    %12 = vector.load %arg5[%c0_8, %c0_9] : memref<104x8xbf16, #tpu.memory_space<vmem>>, vector<104x8xbf16>
    tpu.vector_store %arg5[%c0_8, %c0_9], %11 {strides = array<i32>} : memref<104x8xbf16, #tpu.memory_space<vmem>>, vector<104x8xbf16>,
    return
  }
  func.func @transform_0(%arg0: i32) -> (i32, i32) {
    %c0_i32 = arith.constant 0 : i32
    %c0_i32_0 = arith.constant 0 : i32
    return %arg0, %c0_i32 : i32, i32
  }
  func.func @transform_1(%arg0: i32) -> (i32, i32) {
    %c0_i32 = arith.constant 0 : i32
    %c0_i32_0 = arith.constant 0 : i32
    %c0_i32_1 = arith.constant 0 : i32
    return %c0_i32, %c0_i32_0 : i32, i32
  }
  func.func @transform_2(%arg0: i32) -> (i32, i32) {
    %c0_i32 = arith.constant 0 : i32
    %c0_i32_0 = arith.constant 0 : i32
    %c0_i32_1 = arith.constant 0 : i32
    return %c0_i32, %c0_i32_0 : i32, i32
  }
  func.func @transform_3(%arg0: i32) -> (i32, i32) {
    %c0_i32 = arith.constant 0 : i32
    %c0_i32_0 = arith.constant 0 : i32
    %c0_i32_1 = arith.constant 0 : i32
    return %c0_i32, %c0_i32_0 : i32, i32
  }
  func.func @transform_4(%arg0: i32) -> (i32, i32) {
    %c0_i32 = arith.constant 0 : i32
    %c0_i32_0 = arith.constant 0 : i32
    return %arg0, %c0_i32 : i32, i32
  }
}

module attributes {stable_mosaic.version = 11 : i64} {
  func.func @kernel(%arg0: i32, %arg1: memref<1x7x7x8xbf16, #tpu.memory_space<vmem>>, %arg2: memref<9x8x8xbf16, #tpu.memory_space<vmem>>, %arg3: memref<1x8xf32, #tpu.memory_space<vmem>>, %arg4: memref<1x8xf32, #tpu.memory_space<vmem>>, %arg5: memref<1x5x5x8xbf16, #tpu.memory_space<vmem>>) attributes {dimension_semantics = [#tpu.dimension_semantics<parallel>], iteration_bounds = array<i64: 2>, scalar_prefetch = 0 : i64, scratch_operands = 0 : i64, tpu.core_type = #tpu.core_type<tc>, window_params = [{transform_indices = @transform_0, window_bounds = array<i64: 1, 7, 7, 8>}, {pipeline_mode = #tpu.pipeline_mode<synchronous>, transform_indices = @transform_1, window_bounds = array<i64: 9, 8, 8>}, {pipeline_mode = #tpu.pipeline_mode<synchronous>, transform_indices = @transform_2, window_bounds = array<i64: 1, 8>}, {pipeline_mode = #tpu.pipeline_mode<synchronous>, transform_indices = @transform_3, window_bounds = array<i64: 1, 8>}, {transform_indices = @transform_4, window_bounds = array<i64: 1, 5, 5, 8>}]} {
    %c0 = arith.constant 0 : index
    %c0_0 = arith.constant 0 : index
    %c0_1 = arith.constant 0 : index
    %c0_2 = arith.constant 0 : index
    %0 = vector.load %arg1[%c0, %c0_0, %c0_1, %c0_2] : memref<1x7x7x8xbf16, #tpu.memory_space<vmem>>, vector<1x7x7x8xbf16>
    %1 = vector.shape_cast %0 : vector<1x7x7x8xbf16> to vector<7x7x8xbf16>
    %cst = arith.constant 0.000000e+00 : f32
    %2 = vector.broadcast %cst : f32 to vector<25x8xf32>
    %3 = vector.extract_strided_slice %1 {offsets = [0, 0, 0], sizes = [5, 5, 8], strides = [1, 1, 1]} : vector<7x7x8xbf16> to vector<5x5x8xbf16>
    %4 = vector.shape_cast %3 : vector<5x5x8xbf16> to vector<25x8xbf16>
    %c0_3 = arith.constant 0 : index
    %c0_4 = arith.constant 0 : index
    %c0_5 = arith.constant 0 : index
    %5 = vector.load %arg2[%c0_3, %c0_4, %c0_5] : memref<9x8x8xbf16, #tpu.memory_space<vmem>>, vector<1x8x8xbf16>
    %6 = vector.shape_cast %5 : vector<1x8x8xbf16> to vector<8x8xbf16>
    %cst_6 = arith.constant dense<0.000000e+00> : vector<25x8xf32>
    %7 = tpu.matmul %4, %6, %cst_6 {dimension_numbers = #tpu.dot_dimension_numbers<[1], [0], [0], [1], [0, 0, 1, 1], [], []>} : vector<25x8xbf16>, vector<8x8xbf16>, vector<25x8xf32> -> vector<25x8xf32>
    %8 = arith.addf %2, %7 : vector<25x8xf32>
    %9 = vector.extract_strided_slice %1 {offsets = [0, 1, 0], sizes = [5, 5, 8], strides = [1, 1, 1]} : vector<7x7x8xbf16> to vector<5x5x8xbf16>
    %10 = vector.shape_cast %9 : vector<5x5x8xbf16> to vector<25x8xbf16>
    %c1 = arith.constant 1 : index
    %c0_7 = arith.constant 0 : index
    %c0_8 = arith.constant 0 : index
    %11 = vector.load %arg2[%c1, %c0_7, %c0_8] : memref<9x8x8xbf16, #tpu.memory_space<vmem>>, vector<1x8x8xbf16>
    %12 = vector.shape_cast %11 : vector<1x8x8xbf16> to vector<8x8xbf16>
    %cst_9 = arith.constant dense<0.000000e+00> : vector<25x8xf32>
    %13 = tpu.matmul %10, %12, %cst_9 {dimension_numbers = #tpu.dot_dimension_numbers<[1], [0], [0], [1], [0, 0, 1, 1], [], []>} : vector<25x8xbf16>, vector<8x8xbf16>, vector<25x8xf32> -> vector<25x8xf32>
    %14 = arith.addf %8, %13 : vector<25x8xf32>
    %15 = vector.extract_strided_slice %1 {offsets = [0, 2, 0], sizes = [5, 5, 8], strides = [1, 1, 1]} : vector<7x7x8xbf16> to vector<5x5x8xbf16>
    %16 = vector.shape_cast %15 : vector<5x5x8xbf16> to vector<25x8xbf16>
    %c2 = arith.constant 2 : index
    %c0_10 = arith.constant 0 : index
    %c0_11 = arith.constant 0 : index
    %17 = vector.load %arg2[%c2, %c0_10, %c0_11] : memref<9x8x8xbf16, #tpu.memory_space<vmem>>, vector<1x8x8xbf16>
    %18 = vector.shape_cast %17 : vector<1x8x8xbf16> to vector<8x8xbf16>
    %cst_12 = arith.constant dense<0.000000e+00> : vector<25x8xf32>
    %19 = tpu.matmul %16, %18, %cst_12 {dimension_numbers = #tpu.dot_dimension_numbers<[1], [0], [0], [1], [0, 0, 1, 1], [], []>} : vector<25x8xbf16>, vector<8x8xbf16>, vector<25x8xf32> -> vector<25x8xf32>
    %20 = arith.addf %14, %19 : vector<25x8xf32>
    %21 = vector.extract_strided_slice %1 {offsets = [1, 0, 0], sizes = [5, 5, 8], strides = [1, 1, 1]} : vector<7x7x8xbf16> to vector<5x5x8xbf16>
    %22 = vector.shape_cast %21 : vector<5x5x8xbf16> to vector<25x8xbf16>
    %c3 = arith.constant 3 : index
    %c0_13 = arith.constant 0 : index
    %c0_14 = arith.constant 0 : index
    %23 = vector.load %arg2[%c3, %c0_13, %c0_14] : memref<9x8x8xbf16, #tpu.memory_space<vmem>>, vector<1x8x8xbf16>
    %24 = vector.shape_cast %23 : vector<1x8x8xbf16> to vector<8x8xbf16>
    %cst_15 = arith.constant dense<0.000000e+00> : vector<25x8xf32>
    %25 = tpu.matmul %22, %24, %cst_15 {dimension_numbers = #tpu.dot_dimension_numbers<[1], [0], [0], [1], [0, 0, 1, 1], [], []>} : vector<25x8xbf16>, vector<8x8xbf16>, vector<25x8xf32> -> vector<25x8xf32>
    %26 = arith.addf %20, %25 : vector<25x8xf32>
    %27 = vector.extract_strided_slice %1 {offsets = [1, 1, 0], sizes = [5, 5, 8], strides = [1, 1, 1]} : vector<7x7x8xbf16> to vector<5x5x8xbf16>
    %28 = vector.shape_cast %27 : vector<5x5x8xbf16> to vector<25x8xbf16>
    %c4 = arith.constant 4 : index
    %c0_16 = arith.constant 0 : index
    %c0_17 = arith.constant 0 : index
    %29 = vector.load %arg2[%c4, %c0_16, %c0_17] : memref<9x8x8xbf16, #tpu.memory_space<vmem>>, vector<1x8x8xbf16>
    %30 = vector.shape_cast %29 : vector<1x8x8xbf16> to vector<8x8xbf16>
    %cst_18 = arith.constant dense<0.000000e+00> : vector<25x8xf32>
    %31 = tpu.matmul %28, %30, %cst_18 {dimension_numbers = #tpu.dot_dimension_numbers<[1], [0], [0], [1], [0, 0, 1, 1], [], []>} : vector<25x8xbf16>, vector<8x8xbf16>, vector<25x8xf32> -> vector<25x8xf32>
    %32 = arith.addf %26, %31 : vector<25x8xf32>
    %33 = vector.extract_strided_slice %1 {offsets = [1, 2, 0], sizes = [5, 5, 8], strides = [1, 1, 1]} : vector<7x7x8xbf16> to vector<5x5x8xbf16>
    %34 = vector.shape_cast %33 : vector<5x5x8xbf16> to vector<25x8xbf16>
    %c5 = arith.constant 5 : index
    %c0_19 = arith.constant 0 : index
    %c0_20 = arith.constant 0 : index
    %35 = vector.load %arg2[%c5, %c0_19, %c0_20] : memref<9x8x8xbf16, #tpu.memory_space<vmem>>, vector<1x8x8xbf16>
    %36 = vector.shape_cast %35 : vector<1x8x8xbf16> to vector<8x8xbf16>
    %cst_21 = arith.constant dense<0.000000e+00> : vector<25x8xf32>
    %37 = tpu.matmul %34, %36, %cst_21 {dimension_numbers = #tpu.dot_dimension_numbers<[1], [0], [0], [1], [0, 0, 1, 1], [], []>} : vector<25x8xbf16>, vector<8x8xbf16>, vector<25x8xf32> -> vector<25x8xf32>
    %38 = arith.addf %32, %37 : vector<25x8xf32>
    %39 = vector.extract_strided_slice %1 {offsets = [2, 0, 0], sizes = [5, 5, 8], strides = [1, 1, 1]} : vector<7x7x8xbf16> to vector<5x5x8xbf16>
    %40 = vector.shape_cast %39 : vector<5x5x8xbf16> to vector<25x8xbf16>
    %c6 = arith.constant 6 : index
    %c0_22 = arith.constant 0 : index
    %c0_23 = arith.constant 0 : index
    %41 = vector.load %arg2[%c6, %c0_22, %c0_23] : memref<9x8x8xbf16, #tpu.memory_space<vmem>>, vector<1x8x8xbf16>
    %42 = vector.shape_cast %41 : vector<1x8x8xbf16> to vector<8x8xbf16>
    %cst_24 = arith.constant dense<0.000000e+00> : vector<25x8xf32>
    %43 = tpu.matmul %40, %42, %cst_24 {dimension_numbers = #tpu.dot_dimension_numbers<[1], [0], [0], [1], [0, 0, 1, 1], [], []>} : vector<25x8xbf16>, vector<8x8xbf16>, vector<25x8xf32> -> vector<25x8xf32>
    %44 = arith.addf %38, %43 : vector<25x8xf32>
    %45 = vector.extract_strided_slice %1 {offsets = [2, 1, 0], sizes = [5, 5, 8], strides = [1, 1, 1]} : vector<7x7x8xbf16> to vector<5x5x8xbf16>
    %46 = vector.shape_cast %45 : vector<5x5x8xbf16> to vector<25x8xbf16>
    %c7 = arith.constant 7 : index
    %c0_25 = arith.constant 0 : index
    %c0_26 = arith.constant 0 : index
    %47 = vector.load %arg2[%c7, %c0_25, %c0_26] : memref<9x8x8xbf16, #tpu.memory_space<vmem>>, vector<1x8x8xbf16>
    %48 = vector.shape_cast %47 : vector<1x8x8xbf16> to vector<8x8xbf16>
    %cst_27 = arith.constant dense<0.000000e+00> : vector<25x8xf32>
    %49 = tpu.matmul %46, %48, %cst_27 {dimension_numbers = #tpu.dot_dimension_numbers<[1], [0], [0], [1], [0, 0, 1, 1], [], []>} : vector<25x8xbf16>, vector<8x8xbf16>, vector<25x8xf32> -> vector<25x8xf32>
    %50 = arith.addf %44, %49 : vector<25x8xf32>
    %51 = vector.extract_strided_slice %1 {offsets = [2, 2, 0], sizes = [5, 5, 8], strides = [1, 1, 1]} : vector<7x7x8xbf16> to vector<5x5x8xbf16>
    %52 = vector.shape_cast %51 : vector<5x5x8xbf16> to vector<25x8xbf16>
    %c8 = arith.constant 8 : index
    %c0_28 = arith.constant 0 : index
    %c0_29 = arith.constant 0 : index
    %53 = vector.load %arg2[%c8, %c0_28, %c0_29] : memref<9x8x8xbf16, #tpu.memory_space<vmem>>, vector<1x8x8xbf16>
    %54 = vector.shape_cast %53 : vector<1x8x8xbf16> to vector<8x8xbf16>
    %cst_30 = arith.constant dense<0.000000e+00> : vector<25x8xf32>
    %55 = tpu.matmul %52, %54, %cst_30 {dimension_numbers = #tpu.dot_dimension_numbers<[1], [0], [0], [1], [0, 0, 1, 1], [], []>} : vector<25x8xbf16>, vector<8x8xbf16>, vector<25x8xf32> -> vector<25x8xf32>
    %56 = arith.addf %50, %55 : vector<25x8xf32>
    %c0_31 = arith.constant 0 : index
    %c0_32 = arith.constant 0 : index
    %57 = vector.load %arg3[%c0_31, %c0_32] : memref<1x8xf32, #tpu.memory_space<vmem>>, vector<1x8xf32>
    %58 = vector.broadcast %57 : vector<1x8xf32> to vector<25x8xf32>
    %59 = arith.mulf %56, %58 : vector<25x8xf32>
    %c0_33 = arith.constant 0 : index
    %c0_34 = arith.constant 0 : index
    %60 = vector.load %arg4[%c0_33, %c0_34] : memref<1x8xf32, #tpu.memory_space<vmem>>, vector<1x8xf32>
    %61 = vector.broadcast %60 : vector<1x8xf32> to vector<25x8xf32>
    %62 = arith.addf %59, %61 : vector<25x8xf32>
    %cst_35 = arith.constant 0.000000e+00 : f32
    %63 = vector.broadcast %cst_35 : f32 to vector<25x8xf32>
    %64 = arith.maximumf %62, %63 : vector<25x8xf32>
    %65 = vector.shape_cast %64 : vector<25x8xf32> to vector<5x5x8xf32>
    %66 = arith.truncf %65 : vector<5x5x8xf32> to vector<5x5x8xbf16>
    %c0_36 = arith.constant 0 : index
    %c0_37 = arith.constant 0 : index
    %c0_38 = arith.constant 0 : index
    %c0_39 = arith.constant 0 : index
    %67 = vector.load %arg5[%c0_36, %c0_37, %c0_38, %c0_39] : memref<1x5x5x8xbf16, #tpu.memory_space<vmem>>, vector<1x5x5x8xbf16>
    %68 = vector.shape_cast %67 : vector<1x5x5x8xbf16> to vector<5x5x8xbf16>
    %69 = vector.shape_cast %66 : vector<5x5x8xbf16> to vector<1x5x5x8xbf16>
    tpu.vector_store %arg5[%c0_36, %c0_37, %c0_38, %c0_39], %69 {strides = array<i32>} : memref<1x5x5x8xbf16, #tpu.memory_space<vmem>>, vector<1x5x5x8xbf16>,
    return
  }
  func.func @transform_0(%arg0: i32) -> (i32, i32, i32, i32) {
    %c0_i32 = arith.constant 0 : i32
    %c0_i32_0 = arith.constant 0 : i32
    %c0_i32_1 = arith.constant 0 : i32
    %c0_i32_2 = arith.constant 0 : i32
    return %arg0, %c0_i32, %c0_i32_0, %c0_i32_1 : i32, i32, i32, i32
  }
  func.func @transform_1(%arg0: i32) -> (i32, i32, i32) {
    %c0_i32 = arith.constant 0 : i32
    %c0_i32_0 = arith.constant 0 : i32
    %c0_i32_1 = arith.constant 0 : i32
    %c0_i32_2 = arith.constant 0 : i32
    return %c0_i32, %c0_i32_0, %c0_i32_1 : i32, i32, i32
  }
  func.func @transform_2(%arg0: i32) -> (i32, i32) {
    %c0_i32 = arith.constant 0 : i32
    %c0_i32_0 = arith.constant 0 : i32
    %c0_i32_1 = arith.constant 0 : i32
    return %c0_i32, %c0_i32_0 : i32, i32
  }
  func.func @transform_3(%arg0: i32) -> (i32, i32) {
    %c0_i32 = arith.constant 0 : i32
    %c0_i32_0 = arith.constant 0 : i32
    %c0_i32_1 = arith.constant 0 : i32
    return %c0_i32, %c0_i32_0 : i32, i32
  }
  func.func @transform_4(%arg0: i32) -> (i32, i32, i32, i32) {
    %c0_i32 = arith.constant 0 : i32
    %c0_i32_0 = arith.constant 0 : i32
    %c0_i32_1 = arith.constant 0 : i32
    %c0_i32_2 = arith.constant 0 : i32
    return %arg0, %c0_i32, %c0_i32_0, %c0_i32_1 : i32, i32, i32, i32
  }
}

module attributes {stable_mosaic.version = 11 : i64} {
  func.func @kernel(%arg0: i32, %arg1: memref<1x7x7x8xbf16, #tpu.memory_space<vmem>>, %arg2: memref<9x8x16xbf16, #tpu.memory_space<vmem>>, %arg3: memref<1x16xf32, #tpu.memory_space<vmem>>, %arg4: memref<1x16xf32, #tpu.memory_space<vmem>>, %arg5: memref<1x5x5x16xbf16, #tpu.memory_space<vmem>>) attributes {dimension_semantics = [#tpu.dimension_semantics<parallel>], iteration_bounds = array<i64: 2>, scalar_prefetch = 0 : i64, scratch_operands = 0 : i64, tpu.core_type = #tpu.core_type<tc>, window_params = [{transform_indices = @transform_0, window_bounds = array<i64: 1, 7, 7, 8>}, {pipeline_mode = #tpu.pipeline_mode<synchronous>, transform_indices = @transform_1, window_bounds = array<i64: 9, 8, 16>}, {pipeline_mode = #tpu.pipeline_mode<synchronous>, transform_indices = @transform_2, window_bounds = array<i64: 1, 16>}, {pipeline_mode = #tpu.pipeline_mode<synchronous>, transform_indices = @transform_3, window_bounds = array<i64: 1, 16>}, {transform_indices = @transform_4, window_bounds = array<i64: 1, 5, 5, 16>}]} {
    %c0 = arith.constant 0 : index
    %c0_0 = arith.constant 0 : index
    %c0_1 = arith.constant 0 : index
    %c0_2 = arith.constant 0 : index
    %0 = vector.load %arg1[%c0, %c0_0, %c0_1, %c0_2] : memref<1x7x7x8xbf16, #tpu.memory_space<vmem>>, vector<1x7x7x8xbf16>
    %1 = vector.shape_cast %0 : vector<1x7x7x8xbf16> to vector<7x7x8xbf16>
    %cst = arith.constant 0.000000e+00 : f32
    %2 = vector.broadcast %cst : f32 to vector<25x16xf32>
    %3 = vector.extract_strided_slice %1 {offsets = [0, 0, 0], sizes = [5, 5, 8], strides = [1, 1, 1]} : vector<7x7x8xbf16> to vector<5x5x8xbf16>
    %4 = vector.shape_cast %3 : vector<5x5x8xbf16> to vector<25x8xbf16>
    %c0_3 = arith.constant 0 : index
    %c0_4 = arith.constant 0 : index
    %c0_5 = arith.constant 0 : index
    %5 = vector.load %arg2[%c0_3, %c0_4, %c0_5] : memref<9x8x16xbf16, #tpu.memory_space<vmem>>, vector<1x8x16xbf16>
    %6 = vector.shape_cast %5 : vector<1x8x16xbf16> to vector<8x16xbf16>
    %cst_6 = arith.constant dense<0.000000e+00> : vector<25x16xf32>
    %7 = tpu.matmul %4, %6, %cst_6 {dimension_numbers = #tpu.dot_dimension_numbers<[1], [0], [0], [1], [0, 0, 1, 1], [], []>} : vector<25x8xbf16>, vector<8x16xbf16>, vector<25x16xf32> -> vector<25x16xf32>
    %8 = arith.addf %2, %7 : vector<25x16xf32>
    %9 = vector.extract_strided_slice %1 {offsets = [0, 1, 0], sizes = [5, 5, 8], strides = [1, 1, 1]} : vector<7x7x8xbf16> to vector<5x5x8xbf16>
    %10 = vector.shape_cast %9 : vector<5x5x8xbf16> to vector<25x8xbf16>
    %c1 = arith.constant 1 : index
    %c0_7 = arith.constant 0 : index
    %c0_8 = arith.constant 0 : index
    %11 = vector.load %arg2[%c1, %c0_7, %c0_8] : memref<9x8x16xbf16, #tpu.memory_space<vmem>>, vector<1x8x16xbf16>
    %12 = vector.shape_cast %11 : vector<1x8x16xbf16> to vector<8x16xbf16>
    %cst_9 = arith.constant dense<0.000000e+00> : vector<25x16xf32>
    %13 = tpu.matmul %10, %12, %cst_9 {dimension_numbers = #tpu.dot_dimension_numbers<[1], [0], [0], [1], [0, 0, 1, 1], [], []>} : vector<25x8xbf16>, vector<8x16xbf16>, vector<25x16xf32> -> vector<25x16xf32>
    %14 = arith.addf %8, %13 : vector<25x16xf32>
    %15 = vector.extract_strided_slice %1 {offsets = [0, 2, 0], sizes = [5, 5, 8], strides = [1, 1, 1]} : vector<7x7x8xbf16> to vector<5x5x8xbf16>
    %16 = vector.shape_cast %15 : vector<5x5x8xbf16> to vector<25x8xbf16>
    %c2 = arith.constant 2 : index
    %c0_10 = arith.constant 0 : index
    %c0_11 = arith.constant 0 : index
    %17 = vector.load %arg2[%c2, %c0_10, %c0_11] : memref<9x8x16xbf16, #tpu.memory_space<vmem>>, vector<1x8x16xbf16>
    %18 = vector.shape_cast %17 : vector<1x8x16xbf16> to vector<8x16xbf16>
    %cst_12 = arith.constant dense<0.000000e+00> : vector<25x16xf32>
    %19 = tpu.matmul %16, %18, %cst_12 {dimension_numbers = #tpu.dot_dimension_numbers<[1], [0], [0], [1], [0, 0, 1, 1], [], []>} : vector<25x8xbf16>, vector<8x16xbf16>, vector<25x16xf32> -> vector<25x16xf32>
    %20 = arith.addf %14, %19 : vector<25x16xf32>
    %21 = vector.extract_strided_slice %1 {offsets = [1, 0, 0], sizes = [5, 5, 8], strides = [1, 1, 1]} : vector<7x7x8xbf16> to vector<5x5x8xbf16>
    %22 = vector.shape_cast %21 : vector<5x5x8xbf16> to vector<25x8xbf16>
    %c3 = arith.constant 3 : index
    %c0_13 = arith.constant 0 : index
    %c0_14 = arith.constant 0 : index
    %23 = vector.load %arg2[%c3, %c0_13, %c0_14] : memref<9x8x16xbf16, #tpu.memory_space<vmem>>, vector<1x8x16xbf16>
    %24 = vector.shape_cast %23 : vector<1x8x16xbf16> to vector<8x16xbf16>
    %cst_15 = arith.constant dense<0.000000e+00> : vector<25x16xf32>
    %25 = tpu.matmul %22, %24, %cst_15 {dimension_numbers = #tpu.dot_dimension_numbers<[1], [0], [0], [1], [0, 0, 1, 1], [], []>} : vector<25x8xbf16>, vector<8x16xbf16>, vector<25x16xf32> -> vector<25x16xf32>
    %26 = arith.addf %20, %25 : vector<25x16xf32>
    %27 = vector.extract_strided_slice %1 {offsets = [1, 1, 0], sizes = [5, 5, 8], strides = [1, 1, 1]} : vector<7x7x8xbf16> to vector<5x5x8xbf16>
    %28 = vector.shape_cast %27 : vector<5x5x8xbf16> to vector<25x8xbf16>
    %c4 = arith.constant 4 : index
    %c0_16 = arith.constant 0 : index
    %c0_17 = arith.constant 0 : index
    %29 = vector.load %arg2[%c4, %c0_16, %c0_17] : memref<9x8x16xbf16, #tpu.memory_space<vmem>>, vector<1x8x16xbf16>
    %30 = vector.shape_cast %29 : vector<1x8x16xbf16> to vector<8x16xbf16>
    %cst_18 = arith.constant dense<0.000000e+00> : vector<25x16xf32>
    %31 = tpu.matmul %28, %30, %cst_18 {dimension_numbers = #tpu.dot_dimension_numbers<[1], [0], [0], [1], [0, 0, 1, 1], [], []>} : vector<25x8xbf16>, vector<8x16xbf16>, vector<25x16xf32> -> vector<25x16xf32>
    %32 = arith.addf %26, %31 : vector<25x16xf32>
    %33 = vector.extract_strided_slice %1 {offsets = [1, 2, 0], sizes = [5, 5, 8], strides = [1, 1, 1]} : vector<7x7x8xbf16> to vector<5x5x8xbf16>
    %34 = vector.shape_cast %33 : vector<5x5x8xbf16> to vector<25x8xbf16>
    %c5 = arith.constant 5 : index
    %c0_19 = arith.constant 0 : index
    %c0_20 = arith.constant 0 : index
    %35 = vector.load %arg2[%c5, %c0_19, %c0_20] : memref<9x8x16xbf16, #tpu.memory_space<vmem>>, vector<1x8x16xbf16>
    %36 = vector.shape_cast %35 : vector<1x8x16xbf16> to vector<8x16xbf16>
    %cst_21 = arith.constant dense<0.000000e+00> : vector<25x16xf32>
    %37 = tpu.matmul %34, %36, %cst_21 {dimension_numbers = #tpu.dot_dimension_numbers<[1], [0], [0], [1], [0, 0, 1, 1], [], []>} : vector<25x8xbf16>, vector<8x16xbf16>, vector<25x16xf32> -> vector<25x16xf32>
    %38 = arith.addf %32, %37 : vector<25x16xf32>
    %39 = vector.extract_strided_slice %1 {offsets = [2, 0, 0], sizes = [5, 5, 8], strides = [1, 1, 1]} : vector<7x7x8xbf16> to vector<5x5x8xbf16>
    %40 = vector.shape_cast %39 : vector<5x5x8xbf16> to vector<25x8xbf16>
    %c6 = arith.constant 6 : index
    %c0_22 = arith.constant 0 : index
    %c0_23 = arith.constant 0 : index
    %41 = vector.load %arg2[%c6, %c0_22, %c0_23] : memref<9x8x16xbf16, #tpu.memory_space<vmem>>, vector<1x8x16xbf16>
    %42 = vector.shape_cast %41 : vector<1x8x16xbf16> to vector<8x16xbf16>
    %cst_24 = arith.constant dense<0.000000e+00> : vector<25x16xf32>
    %43 = tpu.matmul %40, %42, %cst_24 {dimension_numbers = #tpu.dot_dimension_numbers<[1], [0], [0], [1], [0, 0, 1, 1], [], []>} : vector<25x8xbf16>, vector<8x16xbf16>, vector<25x16xf32> -> vector<25x16xf32>
    %44 = arith.addf %38, %43 : vector<25x16xf32>
    %45 = vector.extract_strided_slice %1 {offsets = [2, 1, 0], sizes = [5, 5, 8], strides = [1, 1, 1]} : vector<7x7x8xbf16> to vector<5x5x8xbf16>
    %46 = vector.shape_cast %45 : vector<5x5x8xbf16> to vector<25x8xbf16>
    %c7 = arith.constant 7 : index
    %c0_25 = arith.constant 0 : index
    %c0_26 = arith.constant 0 : index
    %47 = vector.load %arg2[%c7, %c0_25, %c0_26] : memref<9x8x16xbf16, #tpu.memory_space<vmem>>, vector<1x8x16xbf16>
    %48 = vector.shape_cast %47 : vector<1x8x16xbf16> to vector<8x16xbf16>
    %cst_27 = arith.constant dense<0.000000e+00> : vector<25x16xf32>
    %49 = tpu.matmul %46, %48, %cst_27 {dimension_numbers = #tpu.dot_dimension_numbers<[1], [0], [0], [1], [0, 0, 1, 1], [], []>} : vector<25x8xbf16>, vector<8x16xbf16>, vector<25x16xf32> -> vector<25x16xf32>
    %50 = arith.addf %44, %49 : vector<25x16xf32>
    %51 = vector.extract_strided_slice %1 {offsets = [2, 2, 0], sizes = [5, 5, 8], strides = [1, 1, 1]} : vector<7x7x8xbf16> to vector<5x5x8xbf16>
    %52 = vector.shape_cast %51 : vector<5x5x8xbf16> to vector<25x8xbf16>
    %c8 = arith.constant 8 : index
    %c0_28 = arith.constant 0 : index
    %c0_29 = arith.constant 0 : index
    %53 = vector.load %arg2[%c8, %c0_28, %c0_29] : memref<9x8x16xbf16, #tpu.memory_space<vmem>>, vector<1x8x16xbf16>
    %54 = vector.shape_cast %53 : vector<1x8x16xbf16> to vector<8x16xbf16>
    %cst_30 = arith.constant dense<0.000000e+00> : vector<25x16xf32>
    %55 = tpu.matmul %52, %54, %cst_30 {dimension_numbers = #tpu.dot_dimension_numbers<[1], [0], [0], [1], [0, 0, 1, 1], [], []>} : vector<25x8xbf16>, vector<8x16xbf16>, vector<25x16xf32> -> vector<25x16xf32>
    %56 = arith.addf %50, %55 : vector<25x16xf32>
    %c0_31 = arith.constant 0 : index
    %c0_32 = arith.constant 0 : index
    %57 = vector.load %arg3[%c0_31, %c0_32] : memref<1x16xf32, #tpu.memory_space<vmem>>, vector<1x16xf32>
    %58 = vector.broadcast %57 : vector<1x16xf32> to vector<25x16xf32>
    %59 = arith.mulf %56, %58 : vector<25x16xf32>
    %c0_33 = arith.constant 0 : index
    %c0_34 = arith.constant 0 : index
    %60 = vector.load %arg4[%c0_33, %c0_34] : memref<1x16xf32, #tpu.memory_space<vmem>>, vector<1x16xf32>
    %61 = vector.broadcast %60 : vector<1x16xf32> to vector<25x16xf32>
    %62 = arith.addf %59, %61 : vector<25x16xf32>
    %cst_35 = arith.constant 0.000000e+00 : f32
    %63 = vector.broadcast %cst_35 : f32 to vector<25x16xf32>
    %64 = arith.maximumf %62, %63 : vector<25x16xf32>
    %65 = vector.shape_cast %64 : vector<25x16xf32> to vector<5x5x16xf32>
    %66 = arith.truncf %65 : vector<5x5x16xf32> to vector<5x5x16xbf16>
    %c0_36 = arith.constant 0 : index
    %c0_37 = arith.constant 0 : index
    %c0_38 = arith.constant 0 : index
    %c0_39 = arith.constant 0 : index
    %67 = vector.load %arg5[%c0_36, %c0_37, %c0_38, %c0_39] : memref<1x5x5x16xbf16, #tpu.memory_space<vmem>>, vector<1x5x5x16xbf16>
    %68 = vector.shape_cast %67 : vector<1x5x5x16xbf16> to vector<5x5x16xbf16>
    %69 = vector.shape_cast %66 : vector<5x5x16xbf16> to vector<1x5x5x16xbf16>
    tpu.vector_store %arg5[%c0_36, %c0_37, %c0_38, %c0_39], %69 {strides = array<i32>} : memref<1x5x5x16xbf16, #tpu.memory_space<vmem>>, vector<1x5x5x16xbf16>,
    return
  }
  func.func @transform_0(%arg0: i32) -> (i32, i32, i32, i32) {
    %c0_i32 = arith.constant 0 : i32
    %c0_i32_0 = arith.constant 0 : i32
    %c0_i32_1 = arith.constant 0 : i32
    %c0_i32_2 = arith.constant 0 : i32
    return %arg0, %c0_i32, %c0_i32_0, %c0_i32_1 : i32, i32, i32, i32
  }
  func.func @transform_1(%arg0: i32) -> (i32, i32, i32) {
    %c0_i32 = arith.constant 0 : i32
    %c0_i32_0 = arith.constant 0 : i32
    %c0_i32_1 = arith.constant 0 : i32
    %c0_i32_2 = arith.constant 0 : i32
    return %c0_i32, %c0_i32_0, %c0_i32_1 : i32, i32, i32
  }
  func.func @transform_2(%arg0: i32) -> (i32, i32) {
    %c0_i32 = arith.constant 0 : i32
    %c0_i32_0 = arith.constant 0 : i32
    %c0_i32_1 = arith.constant 0 : i32
    return %c0_i32, %c0_i32_0 : i32, i32
  }
  func.func @transform_3(%arg0: i32) -> (i32, i32) {
    %c0_i32 = arith.constant 0 : i32
    %c0_i32_0 = arith.constant 0 : i32
    %c0_i32_1 = arith.constant 0 : i32
    return %c0_i32, %c0_i32_0 : i32, i32
  }
  func.func @transform_4(%arg0: i32) -> (i32, i32, i32, i32) {
    %c0_i32 = arith.constant 0 : i32
    %c0_i32_0 = arith.constant 0 : i32
    %c0_i32_1 = arith.constant 0 : i32
    %c0_i32_2 = arith.constant 0 : i32
    return %arg0, %c0_i32, %c0_i32_0, %c0_i32_1 : i32, i32, i32, i32
  }
}

module attributes {stable_mosaic.version = 11 : i64} {
  func.func @kernel(%arg0: i32, %arg1: memref<1x7x7x16xbf16, #tpu.memory_space<vmem>>, %arg2: memref<9x16x24xbf16, #tpu.memory_space<vmem>>, %arg3: memref<1x24xf32, #tpu.memory_space<vmem>>, %arg4: memref<1x24xf32, #tpu.memory_space<vmem>>, %arg5: memref<1x5x5x24xbf16, #tpu.memory_space<vmem>>) attributes {dimension_semantics = [#tpu.dimension_semantics<parallel>], iteration_bounds = array<i64: 2>, scalar_prefetch = 0 : i64, scratch_operands = 0 : i64, tpu.core_type = #tpu.core_type<tc>, window_params = [{transform_indices = @transform_0, window_bounds = array<i64: 1, 7, 7, 16>}, {pipeline_mode = #tpu.pipeline_mode<synchronous>, transform_indices = @transform_1, window_bounds = array<i64: 9, 16, 24>}, {pipeline_mode = #tpu.pipeline_mode<synchronous>, transform_indices = @transform_2, window_bounds = array<i64: 1, 24>}, {pipeline_mode = #tpu.pipeline_mode<synchronous>, transform_indices = @transform_3, window_bounds = array<i64: 1, 24>}, {transform_indices = @transform_4, window_bounds = array<i64: 1, 5, 5, 24>}]} {
    %c0 = arith.constant 0 : index
    %c0_0 = arith.constant 0 : index
    %c0_1 = arith.constant 0 : index
    %c0_2 = arith.constant 0 : index
    %0 = vector.load %arg1[%c0, %c0_0, %c0_1, %c0_2] : memref<1x7x7x16xbf16, #tpu.memory_space<vmem>>, vector<1x7x7x16xbf16>
    %1 = vector.shape_cast %0 : vector<1x7x7x16xbf16> to vector<7x7x16xbf16>
    %cst = arith.constant 0.000000e+00 : f32
    %2 = vector.broadcast %cst : f32 to vector<25x24xf32>
    %3 = vector.extract_strided_slice %1 {offsets = [0, 0, 0], sizes = [5, 5, 16], strides = [1, 1, 1]} : vector<7x7x16xbf16> to vector<5x5x16xbf16>
    %4 = vector.shape_cast %3 : vector<5x5x16xbf16> to vector<25x16xbf16>
    %c0_3 = arith.constant 0 : index
    %c0_4 = arith.constant 0 : index
    %c0_5 = arith.constant 0 : index
    %5 = vector.load %arg2[%c0_3, %c0_4, %c0_5] : memref<9x16x24xbf16, #tpu.memory_space<vmem>>, vector<1x16x24xbf16>
    %6 = vector.shape_cast %5 : vector<1x16x24xbf16> to vector<16x24xbf16>
    %cst_6 = arith.constant dense<0.000000e+00> : vector<25x24xf32>
    %7 = tpu.matmul %4, %6, %cst_6 {dimension_numbers = #tpu.dot_dimension_numbers<[1], [0], [0], [1], [0, 0, 1, 1], [], []>} : vector<25x16xbf16>, vector<16x24xbf16>, vector<25x24xf32> -> vector<25x24xf32>
    %8 = arith.addf %2, %7 : vector<25x24xf32>
    %9 = vector.extract_strided_slice %1 {offsets = [0, 1, 0], sizes = [5, 5, 16], strides = [1, 1, 1]} : vector<7x7x16xbf16> to vector<5x5x16xbf16>
    %10 = vector.shape_cast %9 : vector<5x5x16xbf16> to vector<25x16xbf16>
    %c1 = arith.constant 1 : index
    %c0_7 = arith.constant 0 : index
    %c0_8 = arith.constant 0 : index
    %11 = vector.load %arg2[%c1, %c0_7, %c0_8] : memref<9x16x24xbf16, #tpu.memory_space<vmem>>, vector<1x16x24xbf16>
    %12 = vector.shape_cast %11 : vector<1x16x24xbf16> to vector<16x24xbf16>
    %cst_9 = arith.constant dense<0.000000e+00> : vector<25x24xf32>
    %13 = tpu.matmul %10, %12, %cst_9 {dimension_numbers = #tpu.dot_dimension_numbers<[1], [0], [0], [1], [0, 0, 1, 1], [], []>} : vector<25x16xbf16>, vector<16x24xbf16>, vector<25x24xf32> -> vector<25x24xf32>
    %14 = arith.addf %8, %13 : vector<25x24xf32>
    %15 = vector.extract_strided_slice %1 {offsets = [0, 2, 0], sizes = [5, 5, 16], strides = [1, 1, 1]} : vector<7x7x16xbf16> to vector<5x5x16xbf16>
    %16 = vector.shape_cast %15 : vector<5x5x16xbf16> to vector<25x16xbf16>
    %c2 = arith.constant 2 : index
    %c0_10 = arith.constant 0 : index
    %c0_11 = arith.constant 0 : index
    %17 = vector.load %arg2[%c2, %c0_10, %c0_11] : memref<9x16x24xbf16, #tpu.memory_space<vmem>>, vector<1x16x24xbf16>
    %18 = vector.shape_cast %17 : vector<1x16x24xbf16> to vector<16x24xbf16>
    %cst_12 = arith.constant dense<0.000000e+00> : vector<25x24xf32>
    %19 = tpu.matmul %16, %18, %cst_12 {dimension_numbers = #tpu.dot_dimension_numbers<[1], [0], [0], [1], [0, 0, 1, 1], [], []>} : vector<25x16xbf16>, vector<16x24xbf16>, vector<25x24xf32> -> vector<25x24xf32>
    %20 = arith.addf %14, %19 : vector<25x24xf32>
    %21 = vector.extract_strided_slice %1 {offsets = [1, 0, 0], sizes = [5, 5, 16], strides = [1, 1, 1]} : vector<7x7x16xbf16> to vector<5x5x16xbf16>
    %22 = vector.shape_cast %21 : vector<5x5x16xbf16> to vector<25x16xbf16>
    %c3 = arith.constant 3 : index
    %c0_13 = arith.constant 0 : index
    %c0_14 = arith.constant 0 : index
    %23 = vector.load %arg2[%c3, %c0_13, %c0_14] : memref<9x16x24xbf16, #tpu.memory_space<vmem>>, vector<1x16x24xbf16>
    %24 = vector.shape_cast %23 : vector<1x16x24xbf16> to vector<16x24xbf16>
    %cst_15 = arith.constant dense<0.000000e+00> : vector<25x24xf32>
    %25 = tpu.matmul %22, %24, %cst_15 {dimension_numbers = #tpu.dot_dimension_numbers<[1], [0], [0], [1], [0, 0, 1, 1], [], []>} : vector<25x16xbf16>, vector<16x24xbf16>, vector<25x24xf32> -> vector<25x24xf32>
    %26 = arith.addf %20, %25 : vector<25x24xf32>
    %27 = vector.extract_strided_slice %1 {offsets = [1, 1, 0], sizes = [5, 5, 16], strides = [1, 1, 1]} : vector<7x7x16xbf16> to vector<5x5x16xbf16>
    %28 = vector.shape_cast %27 : vector<5x5x16xbf16> to vector<25x16xbf16>
    %c4 = arith.constant 4 : index
    %c0_16 = arith.constant 0 : index
    %c0_17 = arith.constant 0 : index
    %29 = vector.load %arg2[%c4, %c0_16, %c0_17] : memref<9x16x24xbf16, #tpu.memory_space<vmem>>, vector<1x16x24xbf16>
    %30 = vector.shape_cast %29 : vector<1x16x24xbf16> to vector<16x24xbf16>
    %cst_18 = arith.constant dense<0.000000e+00> : vector<25x24xf32>
    %31 = tpu.matmul %28, %30, %cst_18 {dimension_numbers = #tpu.dot_dimension_numbers<[1], [0], [0], [1], [0, 0, 1, 1], [], []>} : vector<25x16xbf16>, vector<16x24xbf16>, vector<25x24xf32> -> vector<25x24xf32>
    %32 = arith.addf %26, %31 : vector<25x24xf32>
    %33 = vector.extract_strided_slice %1 {offsets = [1, 2, 0], sizes = [5, 5, 16], strides = [1, 1, 1]} : vector<7x7x16xbf16> to vector<5x5x16xbf16>
    %34 = vector.shape_cast %33 : vector<5x5x16xbf16> to vector<25x16xbf16>
    %c5 = arith.constant 5 : index
    %c0_19 = arith.constant 0 : index
    %c0_20 = arith.constant 0 : index
    %35 = vector.load %arg2[%c5, %c0_19, %c0_20] : memref<9x16x24xbf16, #tpu.memory_space<vmem>>, vector<1x16x24xbf16>
    %36 = vector.shape_cast %35 : vector<1x16x24xbf16> to vector<16x24xbf16>
    %cst_21 = arith.constant dense<0.000000e+00> : vector<25x24xf32>
    %37 = tpu.matmul %34, %36, %cst_21 {dimension_numbers = #tpu.dot_dimension_numbers<[1], [0], [0], [1], [0, 0, 1, 1], [], []>} : vector<25x16xbf16>, vector<16x24xbf16>, vector<25x24xf32> -> vector<25x24xf32>
    %38 = arith.addf %32, %37 : vector<25x24xf32>
    %39 = vector.extract_strided_slice %1 {offsets = [2, 0, 0], sizes = [5, 5, 16], strides = [1, 1, 1]} : vector<7x7x16xbf16> to vector<5x5x16xbf16>
    %40 = vector.shape_cast %39 : vector<5x5x16xbf16> to vector<25x16xbf16>
    %c6 = arith.constant 6 : index
    %c0_22 = arith.constant 0 : index
    %c0_23 = arith.constant 0 : index
    %41 = vector.load %arg2[%c6, %c0_22, %c0_23] : memref<9x16x24xbf16, #tpu.memory_space<vmem>>, vector<1x16x24xbf16>
    %42 = vector.shape_cast %41 : vector<1x16x24xbf16> to vector<16x24xbf16>
    %cst_24 = arith.constant dense<0.000000e+00> : vector<25x24xf32>
    %43 = tpu.matmul %40, %42, %cst_24 {dimension_numbers = #tpu.dot_dimension_numbers<[1], [0], [0], [1], [0, 0, 1, 1], [], []>} : vector<25x16xbf16>, vector<16x24xbf16>, vector<25x24xf32> -> vector<25x24xf32>
    %44 = arith.addf %38, %43 : vector<25x24xf32>
    %45 = vector.extract_strided_slice %1 {offsets = [2, 1, 0], sizes = [5, 5, 16], strides = [1, 1, 1]} : vector<7x7x16xbf16> to vector<5x5x16xbf16>
    %46 = vector.shape_cast %45 : vector<5x5x16xbf16> to vector<25x16xbf16>
    %c7 = arith.constant 7 : index
    %c0_25 = arith.constant 0 : index
    %c0_26 = arith.constant 0 : index
    %47 = vector.load %arg2[%c7, %c0_25, %c0_26] : memref<9x16x24xbf16, #tpu.memory_space<vmem>>, vector<1x16x24xbf16>
    %48 = vector.shape_cast %47 : vector<1x16x24xbf16> to vector<16x24xbf16>
    %cst_27 = arith.constant dense<0.000000e+00> : vector<25x24xf32>
    %49 = tpu.matmul %46, %48, %cst_27 {dimension_numbers = #tpu.dot_dimension_numbers<[1], [0], [0], [1], [0, 0, 1, 1], [], []>} : vector<25x16xbf16>, vector<16x24xbf16>, vector<25x24xf32> -> vector<25x24xf32>
    %50 = arith.addf %44, %49 : vector<25x24xf32>
    %51 = vector.extract_strided_slice %1 {offsets = [2, 2, 0], sizes = [5, 5, 16], strides = [1, 1, 1]} : vector<7x7x16xbf16> to vector<5x5x16xbf16>
    %52 = vector.shape_cast %51 : vector<5x5x16xbf16> to vector<25x16xbf16>
    %c8 = arith.constant 8 : index
    %c0_28 = arith.constant 0 : index
    %c0_29 = arith.constant 0 : index
    %53 = vector.load %arg2[%c8, %c0_28, %c0_29] : memref<9x16x24xbf16, #tpu.memory_space<vmem>>, vector<1x16x24xbf16>
    %54 = vector.shape_cast %53 : vector<1x16x24xbf16> to vector<16x24xbf16>
    %cst_30 = arith.constant dense<0.000000e+00> : vector<25x24xf32>
    %55 = tpu.matmul %52, %54, %cst_30 {dimension_numbers = #tpu.dot_dimension_numbers<[1], [0], [0], [1], [0, 0, 1, 1], [], []>} : vector<25x16xbf16>, vector<16x24xbf16>, vector<25x24xf32> -> vector<25x24xf32>
    %56 = arith.addf %50, %55 : vector<25x24xf32>
    %c0_31 = arith.constant 0 : index
    %c0_32 = arith.constant 0 : index
    %57 = vector.load %arg3[%c0_31, %c0_32] : memref<1x24xf32, #tpu.memory_space<vmem>>, vector<1x24xf32>
    %58 = vector.broadcast %57 : vector<1x24xf32> to vector<25x24xf32>
    %59 = arith.mulf %56, %58 : vector<25x24xf32>
    %c0_33 = arith.constant 0 : index
    %c0_34 = arith.constant 0 : index
    %60 = vector.load %arg4[%c0_33, %c0_34] : memref<1x24xf32, #tpu.memory_space<vmem>>, vector<1x24xf32>
    %61 = vector.broadcast %60 : vector<1x24xf32> to vector<25x24xf32>
    %62 = arith.addf %59, %61 : vector<25x24xf32>
    %cst_35 = arith.constant 0.000000e+00 : f32
    %63 = vector.broadcast %cst_35 : f32 to vector<25x24xf32>
    %64 = arith.maximumf %62, %63 : vector<25x24xf32>
    %65 = vector.shape_cast %64 : vector<25x24xf32> to vector<5x5x24xf32>
    %66 = arith.truncf %65 : vector<5x5x24xf32> to vector<5x5x24xbf16>
    %c0_36 = arith.constant 0 : index
    %c0_37 = arith.constant 0 : index
    %c0_38 = arith.constant 0 : index
    %c0_39 = arith.constant 0 : index
    %67 = vector.load %arg5[%c0_36, %c0_37, %c0_38, %c0_39] : memref<1x5x5x24xbf16, #tpu.memory_space<vmem>>, vector<1x5x5x24xbf16>
    %68 = vector.shape_cast %67 : vector<1x5x5x24xbf16> to vector<5x5x24xbf16>
    %69 = vector.shape_cast %66 : vector<5x5x24xbf16> to vector<1x5x5x24xbf16>
    tpu.vector_store %arg5[%c0_36, %c0_37, %c0_38, %c0_39], %69 {strides = array<i32>} : memref<1x5x5x24xbf16, #tpu.memory_space<vmem>>, vector<1x5x5x24xbf16>,
    return
  }
  func.func @transform_0(%arg0: i32) -> (i32, i32, i32, i32) {
    %c0_i32 = arith.constant 0 : i32
    %c0_i32_0 = arith.constant 0 : i32
    %c0_i32_1 = arith.constant 0 : i32
    %c0_i32_2 = arith.constant 0 : i32
    return %arg0, %c0_i32, %c0_i32_0, %c0_i32_1 : i32, i32, i32, i32
  }
  func.func @transform_1(%arg0: i32) -> (i32, i32, i32) {
    %c0_i32 = arith.constant 0 : i32
    %c0_i32_0 = arith.constant 0 : i32
    %c0_i32_1 = arith.constant 0 : i32
    %c0_i32_2 = arith.constant 0 : i32
    return %c0_i32, %c0_i32_0, %c0_i32_1 : i32, i32, i32
  }
  func.func @transform_2(%arg0: i32) -> (i32, i32) {
    %c0_i32 = arith.constant 0 : i32
    %c0_i32_0 = arith.constant 0 : i32
    %c0_i32_1 = arith.constant 0 : i32
    return %c0_i32, %c0_i32_0 : i32, i32
  }
  func.func @transform_3(%arg0: i32) -> (i32, i32) {
    %c0_i32 = arith.constant 0 : i32
    %c0_i32_0 = arith.constant 0 : i32
    %c0_i32_1 = arith.constant 0 : i32
    return %c0_i32, %c0_i32_0 : i32, i32
  }
  func.func @transform_4(%arg0: i32) -> (i32, i32, i32, i32) {
    %c0_i32 = arith.constant 0 : i32
    %c0_i32_0 = arith.constant 0 : i32
    %c0_i32_1 = arith.constant 0 : i32
    %c0_i32_2 = arith.constant 0 : i32
    return %arg0, %c0_i32, %c0_i32_0, %c0_i32_1 : i32, i32, i32, i32
  }
}

</mosaic_0001>

<llo_original>
// kernel: a_call__.5
$region0: #{a_call__.5}
  #allocation0 [shape = 'u32[]', space=smem, size = 0x4, offset = 0x4, fixed_abs, tag = 'smem constant byte address 0x4 - core index']
  #allocation1 [shape = 'u32[72,128]{1,0:T(1,128)}', space=vmem, size = 0x9000, scoped, tag = 'internal scratch']
  %s0 = inlined_call_operand.vmem [shape: bf16[98,36], index: 0, kind: input, shape index: {}]
  %s1 = inlined_call_operand.vmem [shape: bf16[36,8], index: 1, kind: input, shape index: {}]
  %s2 = inlined_call_operand.vmem [shape: f32[1,8], index: 2, kind: input, shape index: {}]
  %s3 = inlined_call_operand.vmem [shape: f32[1,8], index: 3, kind: input, shape index: {}]
  %s4 = inlined_call_operand.vmem [shape: bf16[98,8], index: 4, kind: output, shape index: {}]
  %s5 = sld [smem:[#allocation0]]
  $region26: #{a_call__.5} parent=0
    _
  %s7 = ssub.s32 1, %s5
  %s8 = scalar_select 0, %s7, %s5
  // Predicated region
  $region2: #{a_call__.5} parent=0 // pred_check
    _
  $region3: #{a_call__.5} parent=0 // pred_check_branch
    %10 = sbr.rel (0) target = $region5
  $region4: #{a_call__.5} parent=0 // pred_region
    _
  $region5: #{a_call__.5} parent=0 // pred_fallthru
    _
  // Predicated region
  $region6: #{a_call__.5} parent=0 // pred_check
    _
  $region7: #{a_call__.5} parent=0 // pred_check_branch
    %12 = sbr.rel (0) target = $region9
  $region8: #{a_call__.5} parent=0 // pred_region
    _
  $region9: #{a_call__.5} parent=0 // pred_fallthru
    _
  // Predicated region
  $region10: #{a_call__.5} parent=0 // pred_check
    _
  $region11: #{a_call__.5} parent=0 // pred_check_branch
    %14 = sbr.rel (0) target = $region13
  $region12: #{a_call__.5} parent=0 // pred_region
    _
  $region13: #{a_call__.5} parent=0 // pred_fallthru
    _
  // Predicated region
  $region14: #{a_call__.5} parent=0 // pred_check
    _
  $region15: #{a_call__.5} parent=0 // pred_check_branch
    %16 = sbr.rel (0) target = $region17
  $region16: #{a_call__.5} parent=0 // pred_region
    _
  $region17: #{a_call__.5} parent=0 // pred_fallthru
    _
  %v18 = vld [vmem:[%s0] sm:$0xf]
  %v19 = vld [vmem:[%s0 + $0x4] sm:$0xf]
  %v20 = vld [vmem:[%s0 + $0x8] sm:$0xf]
  %v21 = vld [vmem:[%s0 + $0xc] sm:$0xf]
  %v22 = vld [vmem:[%s0 + $0x10] sm:$0xf]
  %v23 = vld [vmem:[%s0 + $0x14] sm:$0xf]
  %v24 = vld [vmem:[%s0 + $0x18] sm:$0xf]
  %v25 = vld [vmem:[%s0 + $0x1c] sm:$0xf]
  %v26 = vld [vmem:[%s0 + $0x20] sm:$0xf]
  %v27 = vld [vmem:[%s0 + $0x24] sm:$0xf]
  %v28 = vld [vmem:[%s0 + $0x28] sm:$0xf]
  %v29 = vld [vmem:[%s0 + $0x2c] sm:$0xf]
  %v30 = vld [vmem:[%s0 + $0x30] sm:$0xf]
  %v31 = vld [vmem:[%s1] sm:$0xf]
  %v32 = vld [vmem:[%s1 + $0x4] sm:$0xf]
  %v33 = vld [vmem:[%s1 + $0x8] sm:$0xf]
  %v34 = vld [vmem:[%s1 + $0xc] sm:$0xf]
  %v35 = vld [vmem:[%s1 + $0x10] sm:$0x3]
  %v49 = vunpack.c.l.b16 %v18
  %v50 = vunpack.c.l.b16 %v19
  %v51 = vunpack.c.l.b16 %v20
  %v52 = vunpack.c.l.b16 %v21
  %v53 = vunpack.c.l.b16 %v22
  %v54 = vunpack.c.l.b16 %v23
  %v55 = vunpack.c.l.b16 %v24
  %v56 = vunpack.c.l.b16 %v25
  %v57 = vunpack.c.l.b16 %v26
  %v58 = vunpack.c.l.b16 %v27
  %v59 = vunpack.c.l.b16 %v28
  %v60 = vunpack.c.l.b16 %v29
  %v61 = vunpack.c.l.b16 %v30
  %v62 = vpack.c.b16 %v50, %v49
  %v63 = vpack.c.b16 %v52, %v51
  %v64 = vpack.c.b16 %v54, %v53
  %v65 = vpack.c.b16 %v56, %v55
  %v66 = vpack.c.b16 %v58, %v57
  %v67 = vpack.c.b16 %v60, %v59
  %v68 = vpack.c.b16 %v61, %v61
  %v74 = vunpack.c.l.b16 %v31
  %v75 = vunpack.c.l.b16 %v32
  %v76 = vunpack.c.l.b16 %v33
  %v77 = vunpack.c.l.b16 %v34
  %v78 = vunpack.c.l.b16 %v35
  %v79 = vpack.c.b16 %v75, %v74
  %v80 = vpack.c.b16 %v77, %v76
  %v81 = vpack.c.b16 %v78, %v78
  %vm84 = vcmask 293888
  %v86 = vsel %vm84, %v62, 0
  %v89 = vsel %vm84, %v63, 0
  %v92 = vsel %vm84, %v64, 0
  %v95 = vsel %vm84, %v65, 0
  %v98 = vsel %vm84, %v66, 0
  %v101 = vsel %vm84, %v67, 0
  %v104 = vsel %vm84, %v68, 0
  %vm106 = vcmask 1041408
  %v108 = vsel %vm106, %v81, 0
  %110 = vmatpush.bf16.msra.mxu0 0
  %111 = vmatpush.bf16.msra.mxu0 0
  %112 = vmatpush.bf16.msra.mxu0 0
  %113 = vmatpush.bf16.msra.mxu0 0
  %114 = vmatpush.bf16.msra.mxu0 0
  %115 = vmatpush.bf16.msra.mxu0 %v108
  %116 = vmatpush.bf16.msra.mxu0 %v80
  %117 = vmatpush.bf16.msra.mxu0 %v79
  %118 = vmatmul.bf16.gmra.mxu0 %v86
  %v119 = vpop.f32.mrf.mxu0
  %v120 = vadd.f32 0.0, %v119
  %v121 = vpop.f32.mrf.mxu0
  %v122 = vadd.f32 0.0, %v121
  %123 = vmatmul.bf16.gmra.mxu0 %v89
  %v124 = vpop.f32.mrf.mxu0
  %v125 = vadd.f32 0.0, %v124
  %v126 = vpop.f32.mrf.mxu0
  %v127 = vadd.f32 0.0, %v126
  %128 = vmatmul.bf16.gmra.mxu0 %v92
  %v129 = vpop.f32.mrf.mxu0
  %v130 = vadd.f32 0.0, %v129
  %v131 = vpop.f32.mrf.mxu0
  %v132 = vadd.f32 0.0, %v131
  %133 = vmatmul.bf16.gmra.mxu0 %v95
  %v134 = vpop.f32.mrf.mxu0
  %v135 = vadd.f32 0.0, %v134
  %v136 = vpop.f32.mrf.mxu0
  %v137 = vadd.f32 0.0, %v136
  %138 = vmatmul.bf16.gmra.mxu0 %v98
  %v139 = vpop.f32.mrf.mxu0
  %v140 = vadd.f32 0.0, %v139
  %v141 = vpop.f32.mrf.mxu0
  %v142 = vadd.f32 0.0, %v141
  %143 = vmatmul.bf16.gmra.mxu0 %v101
  %v144 = vpop.f32.mrf.mxu0
  %v145 = vadd.f32 0.0, %v144
  %v146 = vpop.f32.mrf.mxu0
  %v147 = vadd.f32 0.0, %v146
  %148 = vmatmul.bf16.gmra.mxu0 %v104
  %v149 = vpop.f32.mrf.mxu0
  %v150 = vadd.f32 0.0, %v149
  %v151 = vpop.f32.mrf.mxu0
  %152 = vdwg.mxu0
  %v153 = vld [vmem:[%s2] sm:$0x1]
  %v155 = vperm.slane %v153, 0
  %v157 = vmul.f32 %v120, %v155
  %v158 = vmul.f32 %v122, %v155
  %v159 = vmul.f32 %v125, %v155
  %v160 = vmul.f32 %v127, %v155
  %v161 = vmul.f32 %v130, %v155
  %v162 = vmul.f32 %v132, %v155
  %v163 = vmul.f32 %v135, %v155
  %v164 = vmul.f32 %v137, %v155
  %v165 = vmul.f32 %v140, %v155
  %v166 = vmul.f32 %v142, %v155
  %v167 = vmul.f32 %v145, %v155
  %v168 = vmul.f32 %v147, %v155
  %v169 = vmul.f32 %v150, %v155
  %v170 = vld [vmem:[%s3] sm:$0x1]
  %v172 = vperm.slane %v170, 0
  %v174 = vadd.f32 %v157, %v172
  %v175 = vadd.f32 %v158, %v172
  %v176 = vadd.f32 %v159, %v172
  %v177 = vadd.f32 %v160, %v172
  %v178 = vadd.f32 %v161, %v172
  %v179 = vadd.f32 %v162, %v172
  %v180 = vadd.f32 %v163, %v172
  %v181 = vadd.f32 %v164, %v172
  %v182 = vadd.f32 %v165, %v172
  %v183 = vadd.f32 %v166, %v172
  %v184 = vadd.f32 %v167, %v172
  %v185 = vadd.f32 %v168, %v172
  %v186 = vadd.f32 %v169, %v172
  %v187 = vmax.f32 %v174, 0.0
  %v188 = vmax.f32 %v175, 0.0
  %v189 = vmax.f32 %v176, 0.0
  %v190 = vmax.f32 %v177, 0.0
  %v191 = vmax.f32 %v178, 0.0
  %v192 = vmax.f32 %v179, 0.0
  %v193 = vmax.f32 %v180, 0.0
  %v194 = vmax.f32 %v181, 0.0
  %v195 = vmax.f32 %v182, 0.0
  %v196 = vmax.f32 %v183, 0.0
  %v197 = vmax.f32 %v184, 0.0
  %v198 = vmax.f32 %v185, 0.0
  %v199 = vmax.f32 %v186, 0.0
  %v200 = vpack.c.bf16 %v187, %v187
  %v201 = vpack.c.bf16 %v188, %v188
  %v202 = vpack.c.bf16 %v189, %v189
  %v203 = vpack.c.bf16 %v190, %v190
  %v204 = vpack.c.bf16 %v191, %v191
  %v205 = vpack.c.bf16 %v192, %v192
  %v206 = vpack.c.bf16 %v193, %v193
  %v207 = vpack.c.bf16 %v194, %v194
  %v208 = vpack.c.bf16 %v195, %v195
  %v209 = vpack.c.bf16 %v196, %v196
  %v210 = vpack.c.bf16 %v197, %v197
  %v211 = vpack.c.bf16 %v198, %v198
  %v212 = vpack.c.bf16 %v199, %v199
  %vm213 = vcmask 60416
  %214 = vst.msk [vmem:[%s4] sm:$0xf] %vm213, %v200
  %215 = vst.msk [vmem:[%s4 + $0x4] sm:$0xf] %vm213, %v201
  %216 = vst.msk [vmem:[%s4 + $0x8] sm:$0xf] %vm213, %v202
  %217 = vst.msk [vmem:[%s4 + $0xc] sm:$0xf] %vm213, %v203
  %218 = vst.msk [vmem:[%s4 + $0x10] sm:$0xf] %vm213, %v204
  %219 = vst.msk [vmem:[%s4 + $0x14] sm:$0xf] %vm213, %v205
  %220 = vst.msk [vmem:[%s4 + $0x18] sm:$0xf] %vm213, %v206
  %221 = vst.msk [vmem:[%s4 + $0x1c] sm:$0xf] %vm213, %v207
  %222 = vst.msk [vmem:[%s4 + $0x20] sm:$0xf] %vm213, %v208
  %223 = vst.msk [vmem:[%s4 + $0x24] sm:$0xf] %vm213, %v209
  %224 = vst.msk [vmem:[%s4 + $0x28] sm:$0xf] %vm213, %v210
  %225 = vst.msk [vmem:[%s4 + $0x2c] sm:$0xf] %vm213, %v211
  %226 = vst.msk [vmem:[%s4 + $0x30] sm:$0xf] %vm213, %v212
  // Predicated region
  $region18: #{a_call__.5} parent=0 // pred_check
    _
  $region19: #{a_call__.5} parent=0 // pred_check_branch
    %228 = sbr.rel (0) target = $region21
  $region20: #{a_call__.5} parent=0 // pred_region
    _
  $region21: #{a_call__.5} parent=0 // pred_fallthru
    _
  // Predicated region
  $region22: #{a_call__.5} parent=0 // pred_check
    _
  $region23: #{a_call__.5} parent=0 // pred_check_branch
    %230 = sbr.rel (0) target = $region25
  $region24: #{a_call__.5} parent=0 // pred_region
    _
  $region25: #{a_call__.5} parent=0 // pred_fallthru
    _

// kernel: a_call__.6
$region0: #{a_call__.6}
  #allocation0 [shape = 'u32[]', space=smem, size = 0x4, offset = 0x4, fixed_abs, tag = 'smem constant byte address 0x4 - core index']
  #allocation1 [shape = 'u32[72,128]{1,0:T(1,128)}', space=vmem, size = 0x9000, scoped, tag = 'internal scratch']
  %s0 = inlined_call_operand.vmem [shape: bf16[2,7,7,8], index: 0, kind: input, shape index: {}]
  %s1 = inlined_call_operand.vmem [shape: bf16[9,8,8], index: 1, kind: input, shape index: {}]
  %s2 = inlined_call_operand.vmem [shape: f32[1,8], index: 2, kind: input, shape index: {}]
  %s3 = inlined_call_operand.vmem [shape: f32[1,8], index: 3, kind: input, shape index: {}]
  %s4 = inlined_call_operand.vmem [shape: bf16[2,5,5,8], index: 4, kind: output, shape index: {}]
  %s5 = sld [smem:[#allocation0]]
  $region49: #{a_call__.6} parent=0
    _
  %s7 = ssub.s32 1, %s5
  %s8 = scalar_select 0, %s7, %s5
  loop: start=0, step=1, limit=4
  $region2: #{a_call__.6} parent=0 // loop_pre_header
    _
  $region3: #{a_call__.6} parent=0 // loop_header
    %s10 = sphi 0, %s14
    %p11 = scmp.ge.s32.totalorder %s10, 4
    %s20 = sphi 0, %s22
    %s23 = sphi 0, %s20
    %s24 = sphi 0, %s23
    %s40 = sphi 0, %s24
    %s44 = sphi 0, %s44
    %s46 = sphi 0, %s44
    %s47 = sphi 0, %s46
    %s61 = sphi 0, %s47
    %s65 = sphi 0, %s65
    %s67 = sphi 0, %s65
    %s68 = sphi 0, %s67
    %s82 = sphi 0, %s68
    %s86 = sphi 0, %s86
    %s88 = sphi 0, %s86
    %s89 = sphi 0, %s88
    %s103 = sphi 0, %s89
    %s109 = sphi 0, %s111
    %s112 = sphi 0, %s109
    %s113 = sphi 0, %s112
    %s129 = sphi 0, %s113
  $region4: #{a_call__.6} parent=0 // loop_header_branch
    %13 = sbr.rel (%p11) target = $region8
  $region5: #{a_call__.6} parent=0 // loop_body
    %s15 = ssub.s32 %s10, 1
    %s16 = ssub.s32 %s10, 2
    %s17 = sadd.s32 %s10, 1
    %s18 = ssub.s32 %s10, %s17
    %p19 = scmp.eq.s32.totalorder %s18, 0
    %s21 = sadd.s32 %s20, 1
    %s22 = scalar_select %p19, %s20, %s21
    %p25 = pneg %p19
    %p26 = scmp.eq.s32.totalorder %s10, 1
    %p27 = por %p25, %p26
    %p28 = scmp.ne.s32.totalorder %s20, %s23
    %p29 = scmp.eq.s32.totalorder %s10, 0
    %p30 = por %p28, %p29
    %p31 = scmp.ne.s32.totalorder %s20, %s23
    %p32 = scmp.eq.s32.totalorder %s15, 1
    %p33 = por %p31, %p32
    %p34 = scmp.ne.s32.totalorder %s23, %s24
    %p35 = scmp.eq.s32.totalorder %s15, 0
    %p36 = por %p34, %p35
    %p37 = scmp.ne.s32.totalorder %s23, %s24
    %p38 = scmp.eq.s32.totalorder %s16, 1
    %p39 = por %p37, %p38
    %p41 = scmp.ne.s32.totalorder %s24, %s40
    %p42 = scmp.eq.s32.totalorder %s16, 0
    %p43 = por %p41, %p42
    %s45 = sadd.s32 %s44, 1
    %p48 = scmp.eq.s32.totalorder %s10, 1
    %p49 = scmp.ne.s32.totalorder %s44, %s46
    %p50 = scmp.eq.s32.totalorder %s10, 0
    %p51 = por %p49, %p50
    %p52 = scmp.ne.s32.totalorder %s44, %s46
    %p53 = scmp.eq.s32.totalorder %s15, 1
    %p54 = por %p52, %p53
    %p55 = scmp.ne.s32.totalorder %s46, %s47
    %p56 = scmp.eq.s32.totalorder %s15, 0
    %p57 = por %p55, %p56
    %p58 = scmp.ne.s32.totalorder %s46, %s47
    %p59 = scmp.eq.s32.totalorder %s16, 1
    %p60 = por %p58, %p59
    %p62 = scmp.ne.s32.totalorder %s47, %s61
    %p63 = scmp.eq.s32.totalorder %s16, 0
    %p64 = por %p62, %p63
    %s66 = sadd.s32 %s65, 1
    %p69 = scmp.eq.s32.totalorder %s10, 1
    %p70 = scmp.ne.s32.totalorder %s65, %s67
    %p71 = scmp.eq.s32.totalorder %s10, 0
    %p72 = por %p70, %p71
    %p73 = scmp.ne.s32.totalorder %s65, %s67
    %p74 = scmp.eq.s32.totalorder %s15, 1
    %p75 = por %p73, %p74
    %p76 = scmp.ne.s32.totalorder %s67, %s68
    %p77 = scmp.eq.s32.totalorder %s15, 0
    %p78 = por %p76, %p77
    %p79 = scmp.ne.s32.totalorder %s67, %s68
    %p80 = scmp.eq.s32.totalorder %s16, 1
    %p81 = por %p79, %p80
    %p83 = scmp.ne.s32.totalorder %s68, %s82
    %p84 = scmp.eq.s32.totalorder %s16, 0
    %p85 = por %p83, %p84
    %s87 = sadd.s32 %s86, 1
    %p90 = scmp.eq.s32.totalorder %s10, 1
    %p91 = scmp.ne.s32.totalorder %s86, %s88
    %p92 = scmp.eq.s32.totalorder %s10, 0
    %p93 = por %p91, %p92
    %p94 = scmp.ne.s32.totalorder %s86, %s88
    %p95 = scmp.eq.s32.totalorder %s15, 1
    %p96 = por %p94, %p95
    %p97 = scmp.ne.s32.totalorder %s88, %s89
    %p98 = scmp.eq.s32.totalorder %s15, 0
    %p99 = por %p97, %p98
    %p100 = scmp.ne.s32.totalorder %s88, %s89
    %p101 = scmp.eq.s32.totalorder %s16, 1
    %p102 = por %p100, %p101
    %p104 = scmp.ne.s32.totalorder %s89, %s103
    %p105 = scmp.eq.s32.totalorder %s16, 0
    %p106 = por %p104, %p105
    %s107 = ssub.s32 %s10, %s17
    %p108 = scmp.eq.s32.totalorder %s107, 0
    %s110 = sadd.s32 %s109, 1
    %s111 = scalar_select %p108, %s109, %s110
    %p114 = pneg %p108
    %p115 = scmp.eq.s32.totalorder %s10, 1
    %p116 = por %p114, %p115
    %p117 = scmp.ne.s32.totalorder %s109, %s112
    %p118 = scmp.eq.s32.totalorder %s10, 0
    %p119 = por %p117, %p118
    %p120 = scmp.ne.s32.totalorder %s109, %s112
    %p121 = scmp.eq.s32.totalorder %s15, 1
    %p122 = por %p120, %p121
    %p123 = scmp.ne.s32.totalorder %s112, %s113
    %p124 = scmp.eq.s32.totalorder %s15, 0
    %p125 = por %p123, %p124
    %p126 = scmp.ne.s32.totalorder %s112, %s113
    %p127 = scmp.eq.s32.totalorder %s16, 1
    %p128 = por %p126, %p127
    %p130 = scmp.ne.s32.totalorder %s113, %s129
    %p131 = scmp.eq.s32.totalorder %s16, 0
    %p132 = por %p130, %p131
    %p133 = scmp.le.s32.totalorder 1, %s10
    %p134 = scmp.lt.s32.totalorder %s10, 3
    %p135 = pnand %p133, %p134
    %p136 = pneg %p135
    // Predicated region
    $region9: #{a_call__.6} parent=5 // pred_check
      _
    $region10: #{a_call__.6} parent=5 // pred_check_branch
      %138 = sbr.rel (%p135) target = $region12
    $region11: #{a_call__.6} parent=5 // pred_region
      %s139 = ssub.s32 %s10, 1
      // Predicated region
      $region13: #{a_call__.6} parent=11 // pred_check
        %p140 = pneg %p57
      $region14: #{a_call__.6} parent=11 // pred_check_branch
        %142 = sbr.rel (%p140) target = $region16
      $region15: #{a_call__.6} parent=11 // pred_region
        _
      $region16: #{a_call__.6} parent=11 // pred_fallthru
        _
      // Predicated region
      $region17: #{a_call__.6} parent=11 // pred_check
        %p143 = pneg %p78
      $region18: #{a_call__.6} parent=11 // pred_check_branch
        %145 = sbr.rel (%p143) target = $region20
      $region19: #{a_call__.6} parent=11 // pred_region
        _
      $region20: #{a_call__.6} parent=11 // pred_fallthru
        _
      // Predicated region
      $region21: #{a_call__.6} parent=11 // pred_check
        %p146 = pneg %p99
      $region22: #{a_call__.6} parent=11 // pred_check_branch
        %148 = sbr.rel (%p146) target = $region24
      $region23: #{a_call__.6} parent=11 // pred_region
        _
      $region24: #{a_call__.6} parent=11 // pred_fallthru
        _
    $region12: #{a_call__.6} parent=5 // pred_fallthru
      _
    %p149 = scmp.lt.s32.totalorder %s10, 2
    // Predicated region
    $region25: #{a_call__.6} parent=5 // pred_check
      %p150 = pneg %p149
    $region26: #{a_call__.6} parent=5 // pred_check_branch
      %152 = sbr.rel (%p150) target = $region28
    $region27: #{a_call__.6} parent=5 // pred_region
      // Predicated region
      $region29: #{a_call__.6} parent=27 // pred_check
        %p153 = pneg %p30
      $region30: #{a_call__.6} parent=27 // pred_check_branch
        %155 = sbr.rel (%p153) target = $region32
      $region31: #{a_call__.6} parent=27 // pred_region
        %p156 = scmp.lt.s32.totalorder %s10, 1
        %s157 = scalar_select %p156, %s10, 1
        %s158 = smul.addr %s157, 7
        %s159 = smul.addr %s158, 4
        %s160 = scalar_lea.vmem %s0, %s159
      $region32: #{a_call__.6} parent=27 // pred_fallthru
        _
    $region28: #{a_call__.6} parent=5 // pred_fallthru
      _
    %p161 = scmp.le.s32.totalorder 1, %s10
    %p162 = scmp.lt.s32.totalorder %s10, 3
    %p163 = pnand %p161, %p162
    %p164 = pneg %p163
    // Predicated region
    $region33: #{a_call__.6} parent=5 // pred_check
      _
    $region34: #{a_call__.6} parent=5 // pred_check_branch
      %166 = sbr.rel (%p163) target = $region36
    $region35: #{a_call__.6} parent=5 // pred_region
      %s167 = ssub.s32 %s10, 1
      %p168 = scmp.lt.s32.totalorder %s15, 1
      %s169 = scalar_select %p168, %s15, 1
      %s170 = smul.addr %s169, 7
      %s171 = smul.addr %s170, 4
      %s172 = scalar_lea.vmem %s0, %s171
      %p173 = pneg %p36
      %p174 = pneg %p33
      %p175 = pneg %p57
      %p176 = pneg %p54
      %p177 = pneg %p78
      %p178 = pneg %p75
      %p179 = pneg %p99
      %p180 = pneg %p96
      %p181 = pneg %p125
      %p182 = pneg %p122
      %p183 = scmp.lt.s32.totalorder %s15, 1
      %s184 = scalar_select %p183, %s15, 1
      %s185 = smul.addr %s184, 5
      %s186 = smul.addr %s185, 4
      %s187 = scalar_lea.vmem %s4, %s186
      %p188 = scmp.lt.s32.totalorder %s15, 1
      %s189 = scalar_select %p188, %s15, 1
      %s190 = smul.addr %s189, 7
      %s191 = smul.addr %s190, 4
      %s192 = scalar_lea.vmem %s0, %s191
      %p193 = scmp.lt.s32.totalorder %s15, 1
      %s194 = scalar_select %p193, %s15, 1
      %s195 = smul.addr %s194, 5
      %s196 = smul.addr %s195, 4
      %s197 = scalar_lea.vmem %s4, %s196
      %v199 = vld [vmem:[%s192] sm:$0xf]
      %v200 = vld [vmem:[%s192 + $0x4] sm:$0xf]
      %v201 = vld [vmem:[%s192 + $0x8] sm:$0xf]
      %v202 = vld [vmem:[%s192 + $0xc] sm:$0xf]
      %v203 = vld [vmem:[%s192 + $0x10] sm:$0xf]
      %v204 = vld [vmem:[%s192 + $0x14] sm:$0xf]
      %v205 = vld [vmem:[%s192 + $0x18] sm:$0xf]
      %v211 = vrot.slane %v199, 3
      %v212 = vrot.slane %v200, 3
      %v213 = vrot.slane %v201, 3
      %v214 = vrot.slane %v202, 3
      %v215 = vrot.slane %v203, 3
      %vm216 = vcmask 1040384
      %v219 = vsel %vm216, %v199, %v211
      %vm221 = vcmask 1041409
      %v222 = vsel %vm221, %v199, %v211
      %v224 = vrot.slane %v222, 1
      %vm225 = vcmask 1042434
      %v226 = vsel %vm225, %v199, %v211
      %v228 = vrot.slane %v226, 2
      %v231 = vsel %vm216, %v200, %v212
      %v233 = vsel %vm221, %v200, %v212
      %v235 = vrot.slane %v233, 1
      %v236 = vsel %vm225, %v200, %v212
      %v238 = vrot.slane %v236, 2
      %v241 = vsel %vm216, %v201, %v213
      %v243 = vsel %vm221, %v201, %v213
      %v245 = vrot.slane %v243, 1
      %v246 = vsel %vm225, %v201, %v213
      %v248 = vrot.slane %v246, 2
      %v251 = vsel %vm216, %v202, %v214
      %v253 = vsel %vm221, %v202, %v214
      %v255 = vrot.slane %v253, 1
      %v256 = vsel %vm225, %v202, %v214
      %v258 = vrot.slane %v256, 2
      %v261 = vsel %vm216, %v203, %v215
      %v263 = vsel %vm221, %v203, %v215
      %v265 = vrot.slane %v263, 1
      %v266 = vsel %vm225, %v203, %v215
      %v268 = vrot.slane %v266, 2
      %v269 = vunpack.i.l.s16 %v219
      %v270 = vunpack.i.h.s16 %v219
      %v271 = vunpack.i.l.s16 %v224
      %v272 = vunpack.i.h.s16 %v224
      %v273 = vunpack.i.l.s16 %v228
      %v274 = vunpack.i.l.s16 %v231
      %v275 = vunpack.i.h.s16 %v231
      %v276 = vunpack.i.l.s16 %v235
      %v277 = vunpack.i.h.s16 %v235
      %v278 = vunpack.i.l.s16 %v238
      %v279 = vunpack.i.l.s16 %v241
      %v280 = vunpack.i.h.s16 %v241
      %v281 = vunpack.i.l.s16 %v245
      %v282 = vunpack.i.h.s16 %v245
      %v283 = vunpack.i.l.s16 %v248
      %v284 = vunpack.i.l.s16 %v251
      %v285 = vunpack.i.h.s16 %v251
      %v286 = vunpack.i.l.s16 %v255
      %v287 = vunpack.i.h.s16 %v255
      %v288 = vunpack.i.l.s16 %v258
      %v289 = vunpack.i.l.s16 %v261
      %v290 = vunpack.i.h.s16 %v261
      %v291 = vunpack.i.l.s16 %v265
      %v292 = vunpack.i.h.s16 %v265
      %v293 = vunpack.i.l.s16 %v268
      %v294 = vld [vmem:[%s1] sm:$0xf]
      %v295 = vunpack.i.h.s16 %v228
      %v296 = vunpack.i.h.s16 %v238
      %v297 = vunpack.i.h.s16 %v248
      %v298 = vunpack.i.h.s16 %v258
      %v299 = vunpack.i.h.s16 %v268
      %s300 = scalar_lea.vmem %s1, 4
      %v301 = vld [vmem:[%s300] sm:$0xf]
      %v302 = vpack.i.b16 %v271, %v270
      %v303 = vpack.i.b16 %v273, %v272
      %v304 = vpack.i.b16 %v275, %v295
      %v305 = vpack.i.b16 %v277, %v276
      %v306 = vpack.i.b16 %v296, %v278
      %v307 = vpack.i.b16 %v281, %v280
      %v308 = vpack.i.b16 %v283, %v282
      %v309 = vpack.i.b16 %v285, %v297
      %v310 = vpack.i.b16 %v287, %v286
      %v311 = vpack.i.b16 %v298, %v288
      %v312 = vpack.i.b16 %v291, %v290
      %v313 = vpack.i.b16 %v293, %v292
      %316 = vst [vmem:[#allocation1] ss:$9 sm:$0xff] %v302
      %s318 = scalar_lea.vmem [#allocation1], 1
      %319 = vst [vmem:[%s318] ss:$9 sm:$0xff] %v303
      %s321 = scalar_lea.vmem [#allocation1], 2
      %322 = vst [vmem:[%s321] ss:$9 sm:$0xff] %v304
      %s324 = scalar_lea.vmem [#allocation1], 3
      %325 = vst [vmem:[%s324] ss:$9 sm:$0xff] %v305
      %s327 = scalar_lea.vmem [#allocation1], 4
      %328 = vst [vmem:[%s327] ss:$9 sm:$0xff] %v306
      %s330 = scalar_lea.vmem [#allocation1], 5
      %331 = vst [vmem:[%s330] ss:$9 sm:$0xff] %v307
      %s333 = scalar_lea.vmem [#allocation1], 6
      %334 = vst [vmem:[%s333] ss:$9 sm:$0xff] %v308
      %s336 = scalar_lea.vmem [#allocation1], 7
      %337 = vst [vmem:[%s336] ss:$9 sm:$0xff] %v309
      %v338 = vld [vmem:[#allocation1] sm:$0xff]
      %340 = vst [vmem:[#allocation1] ss:$9 sm:$0xff] %v310
      %342 = vst [vmem:[%s318] ss:$9 sm:$0xff] %v311
      %344 = vst [vmem:[%s321] ss:$9 sm:$0xff] %v312
      %346 = vst [vmem:[%s324] ss:$9 sm:$0xff] %v313
      %348 = vst [vmem:[%s327] ss:$9 sm:$0xff] %v299
      %v349 = vld [vmem:[#allocation1] sm:$0xff]
      %vm350 = vcmask 64512
      %v351 = vsel %vm350, %v338, 0
      %v353 = vsel %vm350, %v349, 0
      %vm355 = vcmask 1043456
      %v357 = vsel %vm355, %v301, 0
      %359 = vmatpush.bf16.msra.mxu0 0
      %360 = vmatpush.bf16.msra.mxu0 0
      %361 = vmatpush.bf16.msra.mxu0 0
      %362 = vmatpush.bf16.msra.mxu0 0
      %363 = vmatpush.bf16.msra.mxu0 0
      %364 = vmatpush.bf16.msra.mxu0 0
      %365 = vmatpush.bf16.msra.mxu0 0
      %366 = vmatpush.bf16.msra.mxu0 %v357
      %367 = vmatmul.bf16.gmra.mxu0 %v351
      %v368 = vpop.f32.mrf.mxu0
      %v369 = vadd.f32 0.0, %v368
      %v370 = vpop.f32.mrf.mxu0
      %v371 = vadd.f32 0.0, %v370
      %372 = vmatmul.bf16.gmra.mxu0 %v353
      %v373 = vpop.f32.mrf.mxu0
      %v374 = vadd.f32 0.0, %v373
      %v375 = vpop.f32.mrf.mxu0
      %v376 = vadd.f32 0.0, %v375
      %377 = vdwg.mxu0
      %v378 = vpack.i.b16 %v270, %v269
      %v379 = vpack.i.b16 %v272, %v271
      %v380 = vpack.i.b16 %v274, %v273
      %v381 = vpack.i.b16 %v276, %v275
      %v382 = vpack.i.b16 %v278, %v277
      %v383 = vpack.i.b16 %v280, %v279
      %v384 = vpack.i.b16 %v282, %v281
      %v385 = vpack.i.b16 %v284, %v283
      %v386 = vpack.i.b16 %v286, %v285
      %v387 = vpack.i.b16 %v288, %v287
      %v388 = vpack.i.b16 %v290, %v289
      %v389 = vpack.i.b16 %v292, %v291
      %392 = vst [vmem:[#allocation1] ss:$9 sm:$0xff] %v378
      %s394 = scalar_lea.vmem [#allocation1], 1
      %395 = vst [vmem:[%s394] ss:$9 sm:$0xff] %v379
      %s397 = scalar_lea.vmem [#allocation1], 2
      %398 = vst [vmem:[%s397] ss:$9 sm:$0xff] %v380
      %s400 = scalar_lea.vmem [#allocation1], 3
      %401 = vst [vmem:[%s400] ss:$9 sm:$0xff] %v381
      %s403 = scalar_lea.vmem [#allocation1], 4
      %404 = vst [vmem:[%s403] ss:$9 sm:$0xff] %v382
      %s406 = scalar_lea.vmem [#allocation1], 5
      %407 = vst [vmem:[%s406] ss:$9 sm:$0xff] %v383
      %s409 = scalar_lea.vmem [#allocation1], 6
      %410 = vst [vmem:[%s409] ss:$9 sm:$0xff] %v384
      %s412 = scalar_lea.vmem [#allocation1], 7
      %413 = vst [vmem:[%s412] ss:$9 sm:$0xff] %v385
      %v414 = vld [vmem:[#allocation1] sm:$0xff]
      %416 = vst [vmem:[#allocation1] ss:$9 sm:$0xff] %v386
      %418 = vst [vmem:[%s394] ss:$9 sm:$0xff] %v387
      %420 = vst [vmem:[%s397] ss:$9 sm:$0xff] %v388
      %422 = vst [vmem:[%s400] ss:$9 sm:$0xff] %v389
      %424 = vst [vmem:[%s403] ss:$9 sm:$0xff] %v293
      %v425 = vld [vmem:[#allocation1] sm:$0xff]
      %v426 = vsel %vm350, %v414, 0
      %v428 = vsel %vm350, %v425, 0
      %v431 = vsel %vm355, %v294, 0
      %433 = vmatpush.bf16.msra.mxu0 0
      %434 = vmatpush.bf16.msra.mxu0 0
      %435 = vmatpush.bf16.msra.mxu0 0
      %436 = vmatpush.bf16.msra.mxu0 0
      %437 = vmatpush.bf16.msra.mxu0 0
      %438 = vmatpush.bf16.msra.mxu0 0
      %439 = vmatpush.bf16.msra.mxu0 0
      %440 = vmatpush.bf16.msra.mxu0 %v431
      %441 = vmatmul.bf16.gmra.mxu0 %v426
      %v442 = vpop.f32.mrf.mxu0
      %v443 = vadd.f32 %v369, %v442
      %v444 = vpop.f32.mrf.mxu0
      %v445 = vadd.f32 %v371, %v444
      %446 = vmatmul.bf16.gmra.mxu0 %v428
      %v447 = vpop.f32.mrf.mxu0
      %v448 = vadd.f32 %v374, %v447
      %v449 = vpop.f32.mrf.mxu0
      %v450 = vadd.f32 %v376, %v449
      %451 = vdwg.mxu0
      %452 = vst [vmem:[#allocation1] sm:$0xff] %v199
      %s453 = scalar_lea.vmem [#allocation1], 1
      %v454 = vld [vmem:[%s453] ss:$4 sm:$0xff]
      %s456 = scalar_lea.vmem [#allocation1], 2
      %v457 = vld [vmem:[%s456] ss:$4 sm:$0xff]
      %s459 = scalar_lea.vmem [#allocation1], 3
      %v460 = vld [vmem:[%s459] ss:$4 sm:$0xff]
      %462 = vst [vmem:[#allocation1 + $0x20] sm:$0xff] %v200
      %s463 = scalar_lea.vmem [#allocation1], 33
      %v464 = vld [vmem:[%s463] ss:$4 sm:$0xff]
      %s466 = scalar_lea.vmem [#allocation1], 34
      %v467 = vld [vmem:[%s466] ss:$4 sm:$0xff]
      %s469 = scalar_lea.vmem [#allocation1], 35
      %v470 = vld [vmem:[%s469] ss:$4 sm:$0xff]
      %472 = vst [vmem:[#allocation1] sm:$0xff] %v201
      %v473 = vld [vmem:[%s453] ss:$4 sm:$0xff]
      %v475 = vld [vmem:[%s456] ss:$4 sm:$0xff]
      %v477 = vld [vmem:[%s459] ss:$4 sm:$0xff]
      %479 = vst [vmem:[#allocation1 + $0x20] sm:$0xff] %v202
      %v480 = vld [vmem:[%s463] ss:$4 sm:$0xff]
      %v482 = vld [vmem:[%s466] ss:$4 sm:$0xff]
      %v484 = vld [vmem:[%s469] ss:$4 sm:$0xff]
      %486 = vst [vmem:[#allocation1] sm:$0xff] %v203
      %v487 = vld [vmem:[%s453] ss:$4 sm:$0xff]
      %v489 = vld [vmem:[%s456] ss:$4 sm:$0xff]
      %v491 = vld [vmem:[%s459] ss:$4 sm:$0xff]
      %v493 = vunpack.i.l.s16 %v454
      %v494 = vunpack.i.h.s16 %v454
      %v495 = vunpack.i.l.s16 %v457
      %v496 = vunpack.i.h.s16 %v457
      %v497 = vunpack.i.l.s16 %v460
      %v498 = vunpack.i.l.s16 %v464
      %v499 = vunpack.i.h.s16 %v464
      %v500 = vunpack.i.l.s16 %v467
      %v501 = vunpack.i.h.s16 %v467
      %v502 = vunpack.i.l.s16 %v470
      %v503 = vunpack.i.l.s16 %v473
      %v504 = vunpack.i.h.s16 %v473
      %v505 = vunpack.i.l.s16 %v475
      %v506 = vunpack.i.h.s16 %v475
      %v507 = vunpack.i.l.s16 %v477
      %v508 = vunpack.i.l.s16 %v480
      %v509 = vunpack.i.h.s16 %v480
      %v510 = vunpack.i.l.s16 %v482
      %v511 = vunpack.i.h.s16 %v482
      %v512 = vunpack.i.l.s16 %v484
      %v513 = vunpack.i.l.s16 %v487
      %v514 = vunpack.i.h.s16 %v487
      %v515 = vunpack.i.l.s16 %v489
      %v516 = vunpack.i.h.s16 %v489
      %v517 = vunpack.i.l.s16 %v491
      %s518 = scalar_lea.vmem %s1, 8
      %v519 = vld [vmem:[%s518] sm:$0xf]
      %v520 = vpack.i.b16 %v494, %v493
      %v521 = vpack.i.b16 %v496, %v495
      %v522 = vpack.i.b16 %v498, %v497
      %v523 = vpack.i.b16 %v500, %v499
      %v524 = vpack.i.b16 %v502, %v501
      %v525 = vpack.i.b16 %v504, %v503
      %v526 = vpack.i.b16 %v506, %v505
      %v527 = vpack.i.b16 %v508, %v507
      %v528 = vpack.i.b16 %v510, %v509
      %v529 = vpack.i.b16 %v512, %v511
      %v530 = vpack.i.b16 %v514, %v513
      %v531 = vpack.i.b16 %v516, %v515
      %534 = vst [vmem:[#allocation1] ss:$9 sm:$0xff] %v520
      %s536 = scalar_lea.vmem [#allocation1], 1
      %537 = vst [vmem:[%s536] ss:$9 sm:$0xff] %v521
      %s539 = scalar_lea.vmem [#allocation1], 2
      %540 = vst [vmem:[%s539] ss:$9 sm:$0xff] %v522
      %s542 = scalar_lea.vmem [#allocation1], 3
      %543 = vst [vmem:[%s542] ss:$9 sm:$0xff] %v523
      %s545 = scalar_lea.vmem [#allocation1], 4
      %546 = vst [vmem:[%s545] ss:$9 sm:$0xff] %v524
      %s548 = scalar_lea.vmem [#allocation1], 5
      %549 = vst [vmem:[%s548] ss:$9 sm:$0xff] %v525
      %s551 = scalar_lea.vmem [#allocation1], 6
      %552 = vst [vmem:[%s551] ss:$9 sm:$0xff] %v526
      %s554 = scalar_lea.vmem [#allocation1], 7
      %555 = vst [vmem:[%s554] ss:$9 sm:$0xff] %v527
      %v556 = vld [vmem:[#allocation1] sm:$0xff]
      %558 = vst [vmem:[#allocation1] ss:$9 sm:$0xff] %v528
      %560 = vst [vmem:[%s536] ss:$9 sm:$0xff] %v529
      %562 = vst [vmem:[%s539] ss:$9 sm:$0xff] %v530
      %564 = vst [vmem:[%s542] ss:$9 sm:$0xff] %v531
      %566 = vst [vmem:[%s545] ss:$9 sm:$0xff] %v517
      %v567 = vld [vmem:[#allocation1] sm:$0xff]
      %v568 = vsel %vm350, %v556, 0
      %v570 = vsel %vm350, %v567, 0
      %v573 = vsel %vm355, %v519, 0
      %575 = vmatpush.bf16.msra.mxu0 0
      %576 = vmatpush.bf16.msra.mxu0 0
      %577 = vmatpush.bf16.msra.mxu0 0
      %578 = vmatpush.bf16.msra.mxu0 0
      %579 = vmatpush.bf16.msra.mxu0 0
      %580 = vmatpush.bf16.msra.mxu0 0
      %581 = vmatpush.bf16.msra.mxu0 0
      %582 = vmatpush.bf16.msra.mxu0 %v573
      %583 = vmatmul.bf16.gmra.mxu0 %v568
      %v584 = vpop.f32.mrf.mxu0
      %v585 = vadd.f32 0.0, %v584
      %v586 = vpop.f32.mrf.mxu0
      %v587 = vadd.f32 0.0, %v586
      %588 = vmatmul.bf16.gmra.mxu0 %v570
      %v589 = vpop.f32.mrf.mxu0
      %v590 = vadd.f32 0.0, %v589
      %v591 = vpop.f32.mrf.mxu0
      %v592 = vadd.f32 0.0, %v591
      %593 = vdwg.mxu0
      %v594 = vadd.f32 %v443, %v585
      %v595 = vadd.f32 %v445, %v587
      %v596 = vadd.f32 %v448, %v590
      %v597 = vadd.f32 %v450, %v592
      %v599 = vrot.slane %v204, 3
      %v602 = vsel %vm216, %v204, %v599
      %v604 = vsel %vm221, %v204, %v599
      %v606 = vrot.slane %v604, 1
      %v607 = vsel %vm225, %v204, %v599
      %v609 = vrot.slane %v607, 2
      %v610 = vunpack.i.l.s16 %v602
      %v611 = vunpack.i.h.s16 %v602
      %v612 = vunpack.i.l.s16 %v606
      %v613 = vunpack.i.h.s16 %v606
      %v614 = vunpack.i.l.s16 %v609
      %s615 = scalar_lea.vmem %s1, 12
      %v616 = vld [vmem:[%s615] sm:$0xf]
      %v617 = vpack.i.b16 %v275, %v274
      %v618 = vpack.i.b16 %v279, %v278
      %v619 = vpack.i.b16 %v285, %v284
      %v620 = vpack.i.b16 %v289, %v288
      %v621 = vpack.i.b16 %v611, %v610
      %v622 = vpack.i.b16 %v613, %v612
      %625 = vst [vmem:[#allocation1] ss:$9 sm:$0xff] %v617
      %s626 = scalar_lea.vmem [#allocation1], 1
      %627 = vst [vmem:[%s626] ss:$9 sm:$0xff] %v305
      %s629 = scalar_lea.vmem [#allocation1], 2
      %630 = vst [vmem:[%s629] ss:$9 sm:$0xff] %v618
      %s631 = scalar_lea.vmem [#allocation1], 3
      %632 = vst [vmem:[%s631] ss:$9 sm:$0xff] %v307
      %s633 = scalar_lea.vmem [#allocation1], 4
      %634 = vst [vmem:[%s633] ss:$9 sm:$0xff] %v308
      %s636 = scalar_lea.vmem [#allocation1], 5
      %637 = vst [vmem:[%s636] ss:$9 sm:$0xff] %v619
      %s638 = scalar_lea.vmem [#allocation1], 6
      %639 = vst [vmem:[%s638] ss:$9 sm:$0xff] %v310
      %s641 = scalar_lea.vmem [#allocation1], 7
      %642 = vst [vmem:[%s641] ss:$9 sm:$0xff] %v620
      %v643 = vld [vmem:[#allocation1] sm:$0xff]
      %644 = vst [vmem:[#allocation1] ss:$9 sm:$0xff] %v312
      %645 = vst [vmem:[%s626] ss:$9 sm:$0xff] %v313
      %647 = vst [vmem:[%s629] ss:$9 sm:$0xff] %v621
      %649 = vst [vmem:[%s631] ss:$9 sm:$0xff] %v622
      %651 = vst [vmem:[%s633] ss:$9 sm:$0xff] %v614
      %v652 = vld [vmem:[#allocation1] sm:$0xff]
      %v653 = vsel %vm350, %v643, 0
      %v655 = vsel %vm350, %v652, 0
      %v658 = vsel %vm355, %v616, 0
      %660 = vmatpush.bf16.msra.mxu0 0
      %661 = vmatpush.bf16.msra.mxu0 0
      %662 = vmatpush.bf16.msra.mxu0 0
      %663 = vmatpush.bf16.msra.mxu0 0
      %664 = vmatpush.bf16.msra.mxu0 0
      %665 = vmatpush.bf16.msra.mxu0 0
      %666 = vmatpush.bf16.msra.mxu0 0
      %667 = vmatpush.bf16.msra.mxu0 %v658
      %668 = vmatmul.bf16.gmra.mxu0 %v653
      %v669 = vpop.f32.mrf.mxu0
      %v670 = vadd.f32 0.0, %v669
      %v671 = vpop.f32.mrf.mxu0
      %v672 = vadd.f32 0.0, %v671
      %673 = vmatmul.bf16.gmra.mxu0 %v655
      %v674 = vpop.f32.mrf.mxu0
      %v675 = vadd.f32 0.0, %v674
      %v676 = vpop.f32.mrf.mxu0
      %v677 = vadd.f32 0.0, %v676
      %678 = vdwg.mxu0
      %v679 = vadd.f32 %v594, %v670
      %v680 = vadd.f32 %v595, %v672
      %v681 = vadd.f32 %v596, %v675
      %v682 = vadd.f32 %v597, %v677
      %v683 = vunpack.i.h.s16 %v609
      %s684 = scalar_lea.vmem %s1, 16
      %v685 = vld [vmem:[%s684] sm:$0xf]
      %v686 = vpack.i.b16 %v280, %v296
      %v687 = vpack.i.b16 %v297, %v283
      %v688 = vpack.i.b16 %v290, %v298
      %v689 = vpack.i.b16 %v299, %v293
      %v690 = vpack.i.b16 %v612, %v611
      %v691 = vpack.i.b16 %v614, %v613
      %693 = vst [vmem:[#allocation1] ss:$9 sm:$0xff] %v381
      %s694 = scalar_lea.vmem [#allocation1], 1
      %695 = vst [vmem:[%s694] ss:$9 sm:$0xff] %v382
      %s697 = scalar_lea.vmem [#allocation1], 2
      %698 = vst [vmem:[%s697] ss:$9 sm:$0xff] %v686
      %s699 = scalar_lea.vmem [#allocation1], 3
      %700 = vst [vmem:[%s699] ss:$9 sm:$0xff] %v384
      %s702 = scalar_lea.vmem [#allocation1], 4
      %703 = vst [vmem:[%s702] ss:$9 sm:$0xff] %v687
      %s704 = scalar_lea.vmem [#allocation1], 5
      %705 = vst [vmem:[%s704] ss:$9 sm:$0xff] %v386
      %s706 = scalar_lea.vmem [#allocation1], 6
      %707 = vst [vmem:[%s706] ss:$9 sm:$0xff] %v387
      %s709 = scalar_lea.vmem [#allocation1], 7
      %710 = vst [vmem:[%s709] ss:$9 sm:$0xff] %v688
      %v711 = vld [vmem:[#allocation1] sm:$0xff]
      %712 = vst [vmem:[#allocation1] ss:$9 sm:$0xff] %v389
      %714 = vst [vmem:[%s694] ss:$9 sm:$0xff] %v689
      %716 = vst [vmem:[%s697] ss:$9 sm:$0xff] %v690
      %718 = vst [vmem:[%s699] ss:$9 sm:$0xff] %v691
      %720 = vst [vmem:[%s702] ss:$9 sm:$0xff] %v683
      %v721 = vld [vmem:[#allocation1] sm:$0xff]
      %v722 = vsel %vm350, %v711, 0
      %v724 = vsel %vm350, %v721, 0
      %v727 = vsel %vm355, %v685, 0
      %729 = vmatpush.bf16.msra.mxu0 0
      %730 = vmatpush.bf16.msra.mxu0 0
      %731 = vmatpush.bf16.msra.mxu0 0
      %732 = vmatpush.bf16.msra.mxu0 0
      %733 = vmatpush.bf16.msra.mxu0 0
      %734 = vmatpush.bf16.msra.mxu0 0
      %735 = vmatpush.bf16.msra.mxu0 0
      %736 = vmatpush.bf16.msra.mxu0 %v727
      %737 = vmatmul.bf16.gmra.mxu0 %v722
      %v738 = vpop.f32.mrf.mxu0
      %v739 = vadd.f32 0.0, %v738
      %v740 = vpop.f32.mrf.mxu0
      %v741 = vadd.f32 0.0, %v740
      %742 = vmatmul.bf16.gmra.mxu0 %v724
      %v743 = vpop.f32.mrf.mxu0
      %v744 = vadd.f32 0.0, %v743
      %v745 = vpop.f32.mrf.mxu0
      %v746 = vadd.f32 0.0, %v745
      %747 = vdwg.mxu0
      %v748 = vadd.f32 %v679, %v739
      %v749 = vadd.f32 %v680, %v741
      %v750 = vadd.f32 %v681, %v744
      %v751 = vadd.f32 %v682, %v746
      %752 = vst [vmem:[#allocation1] sm:$0xff] %v200
      %s753 = scalar_lea.vmem [#allocation1], 1
      %v754 = vld [vmem:[%s753] ss:$4 sm:$0xff]
      %s756 = scalar_lea.vmem [#allocation1], 2
      %v757 = vld [vmem:[%s756] ss:$4 sm:$0xff]
      %s759 = scalar_lea.vmem [#allocation1], 3
      %v760 = vld [vmem:[%s759] ss:$4 sm:$0xff]
      %762 = vst [vmem:[#allocation1 + $0x20] sm:$0xff] %v201
      %s763 = scalar_lea.vmem [#allocation1], 33
      %v764 = vld [vmem:[%s763] ss:$4 sm:$0xff]
      %s766 = scalar_lea.vmem [#allocation1], 34
      %v767 = vld [vmem:[%s766] ss:$4 sm:$0xff]
      %s769 = scalar_lea.vmem [#allocation1], 35
      %v770 = vld [vmem:[%s769] ss:$4 sm:$0xff]
      %772 = vst [vmem:[#allocation1] sm:$0xff] %v202
      %v773 = vld [vmem:[%s753] ss:$4 sm:$0xff]
      %v775 = vld [vmem:[%s756] ss:$4 sm:$0xff]
      %v777 = vld [vmem:[%s759] ss:$4 sm:$0xff]
      %779 = vst [vmem:[#allocation1 + $0x20] sm:$0xff] %v203
      %v780 = vld [vmem:[%s763] ss:$4 sm:$0xff]
      %v782 = vld [vmem:[%s766] ss:$4 sm:$0xff]
      %v784 = vld [vmem:[%s769] ss:$4 sm:$0xff]
      %786 = vst [vmem:[#allocation1] sm:$0xff] %v204
      %v787 = vld [vmem:[%s753] ss:$4 sm:$0xff]
      %v789 = vld [vmem:[%s756] ss:$4 sm:$0xff]
      %v791 = vld [vmem:[%s759] ss:$4 sm:$0xff]
      %v793 = vunpack.i.l.s16 %v754
      %v794 = vunpack.i.h.s16 %v754
      %v795 = vunpack.i.l.s16 %v757
      %v796 = vunpack.i.h.s16 %v757
      %v797 = vunpack.i.l.s16 %v760
      %v798 = vunpack.i.l.s16 %v764
      %v799 = vunpack.i.h.s16 %v764
      %v800 = vunpack.i.l.s16 %v767
      %v801 = vunpack.i.h.s16 %v767
      %v802 = vunpack.i.l.s16 %v770
      %v803 = vunpack.i.l.s16 %v773
      %v804 = vunpack.i.h.s16 %v773
      %v805 = vunpack.i.l.s16 %v775
      %v806 = vunpack.i.h.s16 %v775
      %v807 = vunpack.i.l.s16 %v777
      %v808 = vunpack.i.l.s16 %v780
      %v809 = vunpack.i.h.s16 %v780
      %v810 = vunpack.i.l.s16 %v782
      %v811 = vunpack.i.h.s16 %v782
      %v812 = vunpack.i.l.s16 %v784
      %v813 = vunpack.i.l.s16 %v787
      %v814 = vunpack.i.h.s16 %v787
      %v815 = vunpack.i.l.s16 %v789
      %v816 = vunpack.i.h.s16 %v789
      %v817 = vunpack.i.l.s16 %v791
      %s818 = scalar_lea.vmem %s1, 20
      %v819 = vld [vmem:[%s818] sm:$0xf]
      %v820 = vpack.i.b16 %v794, %v793
      %v821 = vpack.i.b16 %v796, %v795
      %v822 = vpack.i.b16 %v798, %v797
      %v823 = vpack.i.b16 %v800, %v799
      %v824 = vpack.i.b16 %v802, %v801
      %v825 = vpack.i.b16 %v804, %v803
      %v826 = vpack.i.b16 %v806, %v805
      %v827 = vpack.i.b16 %v808, %v807
      %v828 = vpack.i.b16 %v810, %v809
      %v829 = vpack.i.b16 %v812, %v811
      %v830 = vpack.i.b16 %v814, %v813
      %v831 = vpack.i.b16 %v816, %v815
      %834 = vst [vmem:[#allocation1] ss:$9 sm:$0xff] %v820
      %s836 = scalar_lea.vmem [#allocation1], 1
      %837 = vst [vmem:[%s836] ss:$9 sm:$0xff] %v821
      %s839 = scalar_lea.vmem [#allocation1], 2
      %840 = vst [vmem:[%s839] ss:$9 sm:$0xff] %v822
      %s842 = scalar_lea.vmem [#allocation1], 3
      %843 = vst [vmem:[%s842] ss:$9 sm:$0xff] %v823
      %s845 = scalar_lea.vmem [#allocation1], 4
      %846 = vst [vmem:[%s845] ss:$9 sm:$0xff] %v824
      %s848 = scalar_lea.vmem [#allocation1], 5
      %849 = vst [vmem:[%s848] ss:$9 sm:$0xff] %v825
      %s851 = scalar_lea.vmem [#allocation1], 6
      %852 = vst [vmem:[%s851] ss:$9 sm:$0xff] %v826
      %s854 = scalar_lea.vmem [#allocation1], 7
      %855 = vst [vmem:[%s854] ss:$9 sm:$0xff] %v827
      %v856 = vld [vmem:[#allocation1] sm:$0xff]
      %858 = vst [vmem:[#allocation1] ss:$9 sm:$0xff] %v828
      %860 = vst [vmem:[%s836] ss:$9 sm:$0xff] %v829
      %862 = vst [vmem:[%s839] ss:$9 sm:$0xff] %v830
      %864 = vst [vmem:[%s842] ss:$9 sm:$0xff] %v831
      %866 = vst [vmem:[%s845] ss:$9 sm:$0xff] %v817
      %v867 = vld [vmem:[#allocation1] sm:$0xff]
      %v868 = vsel %vm350, %v856, 0
      %v870 = vsel %vm350, %v867, 0
      %v873 = vsel %vm355, %v819, 0
      %875 = vmatpush.bf16.msra.mxu0 0
      %876 = vmatpush.bf16.msra.mxu0 0
      %877 = vmatpush.bf16.msra.mxu0 0
      %878 = vmatpush.bf16.msra.mxu0 0
      %879 = vmatpush.bf16.msra.mxu0 0
      %880 = vmatpush.bf16.msra.mxu0 0
      %881 = vmatpush.bf16.msra.mxu0 0
      %882 = vmatpush.bf16.msra.mxu0 %v873
      %883 = vmatmul.bf16.gmra.mxu0 %v868
      %v884 = vpop.f32.mrf.mxu0
      %v885 = vadd.f32 0.0, %v884
      %v886 = vpop.f32.mrf.mxu0
      %v887 = vadd.f32 0.0, %v886
      %888 = vmatmul.bf16.gmra.mxu0 %v870
      %v889 = vpop.f32.mrf.mxu0
      %v890 = vadd.f32 0.0, %v889
      %v891 = vpop.f32.mrf.mxu0
      %v892 = vadd.f32 0.0, %v891
      %893 = vdwg.mxu0
      %v894 = vadd.f32 %v748, %v885
      %v895 = vadd.f32 %v749, %v887
      %v896 = vadd.f32 %v750, %v890
      %v897 = vadd.f32 %v751, %v892
      %v899 = vrot.slane %v205, 3
      %v902 = vsel %vm216, %v205, %v899
      %v904 = vsel %vm221, %v205, %v899
      %v906 = vrot.slane %v904, 1
      %v907 = vsel %vm225, %v205, %v899
      %v909 = vrot.slane %v907, 2
      %v910 = vunpack.i.l.s16 %v902
      %v911 = vunpack.i.h.s16 %v902
      %v912 = vunpack.i.l.s16 %v906
      %v913 = vunpack.i.h.s16 %v906
      %v914 = vunpack.i.l.s16 %v909
      %s915 = scalar_lea.vmem %s1, 24
      %v916 = vld [vmem:[%s915] sm:$0xf]
      %v917 = vpack.i.b16 %v610, %v293
      %v918 = vpack.i.b16 %v911, %v910
      %v919 = vpack.i.b16 %v913, %v912
      %921 = vst [vmem:[#allocation1] ss:$9 sm:$0xff] %v383
      %s922 = scalar_lea.vmem [#allocation1], 1
      %923 = vst [vmem:[%s922] ss:$9 sm:$0xff] %v384
      %s924 = scalar_lea.vmem [#allocation1], 2
      %925 = vst [vmem:[%s924] ss:$9 sm:$0xff] %v385
      %s926 = scalar_lea.vmem [#allocation1], 3
      %927 = vst [vmem:[%s926] ss:$9 sm:$0xff] %v386
      %s928 = scalar_lea.vmem [#allocation1], 4
      %929 = vst [vmem:[%s928] ss:$9 sm:$0xff] %v387
      %s930 = scalar_lea.vmem [#allocation1], 5
      %931 = vst [vmem:[%s930] ss:$9 sm:$0xff] %v388
      %s932 = scalar_lea.vmem [#allocation1], 6
      %933 = vst [vmem:[%s932] ss:$9 sm:$0xff] %v389
      %s935 = scalar_lea.vmem [#allocation1], 7
      %936 = vst [vmem:[%s935] ss:$9 sm:$0xff] %v917
      %v937 = vld [vmem:[#allocation1] sm:$0xff]
      %938 = vst [vmem:[#allocation1] ss:$9 sm:$0xff] %v690
      %939 = vst [vmem:[%s922] ss:$9 sm:$0xff] %v691
      %941 = vst [vmem:[%s924] ss:$9 sm:$0xff] %v918
      %943 = vst [vmem:[%s926] ss:$9 sm:$0xff] %v919
      %945 = vst [vmem:[%s928] ss:$9 sm:$0xff] %v914
      %v946 = vld [vmem:[#allocation1] sm:$0xff]
      %v947 = vsel %vm350, %v937, 0
      %v949 = vsel %vm350, %v946, 0
      %v952 = vsel %vm355, %v916, 0
      %954 = vmatpush.bf16.msra.mxu0 0
      %955 = vmatpush.bf16.msra.mxu0 0
      %956 = vmatpush.bf16.msra.mxu0 0
      %957 = vmatpush.bf16.msra.mxu0 0
      %958 = vmatpush.bf16.msra.mxu0 0
      %959 = vmatpush.bf16.msra.mxu0 0
      %960 = vmatpush.bf16.msra.mxu0 0
      %961 = vmatpush.bf16.msra.mxu0 %v952
      %962 = vmatmul.bf16.gmra.mxu0 %v947
      %v963 = vpop.f32.mrf.mxu0
      %v964 = vadd.f32 0.0, %v963
      %v965 = vpop.f32.mrf.mxu0
      %v966 = vadd.f32 0.0, %v965
      %967 = vmatmul.bf16.gmra.mxu0 %v949
      %v968 = vpop.f32.mrf.mxu0
      %v969 = vadd.f32 0.0, %v968
      %v970 = vpop.f32.mrf.mxu0
      %v971 = vadd.f32 0.0, %v970
      %972 = vdwg.mxu0
      %v973 = vadd.f32 %v894, %v964
      %v974 = vadd.f32 %v895, %v966
      %v975 = vadd.f32 %v896, %v969
      %v976 = vadd.f32 %v897, %v971
      %v977 = vunpack.i.h.s16 %v909
      %s978 = scalar_lea.vmem %s1, 28
      %v979 = vld [vmem:[%s978] sm:$0xf]
      %v980 = vpack.i.b16 %v611, %v299
      %v981 = vpack.i.b16 %v683, %v614
      %v982 = vpack.i.b16 %v912, %v911
      %v983 = vpack.i.b16 %v914, %v913
      %985 = vst [vmem:[#allocation1] ss:$9 sm:$0xff] %v307
      %s986 = scalar_lea.vmem [#allocation1], 1
      %987 = vst [vmem:[%s986] ss:$9 sm:$0xff] %v308
      %s988 = scalar_lea.vmem [#allocation1], 2
      %989 = vst [vmem:[%s988] ss:$9 sm:$0xff] %v309
      %s990 = scalar_lea.vmem [#allocation1], 3
      %991 = vst [vmem:[%s990] ss:$9 sm:$0xff] %v310
      %s992 = scalar_lea.vmem [#allocation1], 4
      %993 = vst [vmem:[%s992] ss:$9 sm:$0xff] %v311
      %s994 = scalar_lea.vmem [#allocation1], 5
      %995 = vst [vmem:[%s994] ss:$9 sm:$0xff] %v312
      %s996 = scalar_lea.vmem [#allocation1], 6
      %997 = vst [vmem:[%s996] ss:$9 sm:$0xff] %v313
      %s999 = scalar_lea.vmem [#allocation1], 7
      %1000 = vst [vmem:[%s999] ss:$9 sm:$0xff] %v980
      %v1001 = vld [vmem:[#allocation1] sm:$0xff]
      %1002 = vst [vmem:[#allocation1] ss:$9 sm:$0xff] %v622
      %1004 = vst [vmem:[%s986] ss:$9 sm:$0xff] %v981
      %1006 = vst [vmem:[%s988] ss:$9 sm:$0xff] %v982
      %1008 = vst [vmem:[%s990] ss:$9 sm:$0xff] %v983
      %1010 = vst [vmem:[%s992] ss:$9 sm:$0xff] %v977
      %v1011 = vld [vmem:[#allocation1] sm:$0xff]
      %v1012 = vsel %vm350, %v1001, 0
      %v1014 = vsel %vm350, %v1011, 0
      %v1017 = vsel %vm355, %v979, 0
      %1019 = vmatpush.bf16.msra.mxu0 0
      %1020 = vmatpush.bf16.msra.mxu0 0
      %1021 = vmatpush.bf16.msra.mxu0 0
      %1022 = vmatpush.bf16.msra.mxu0 0
      %1023 = vmatpush.bf16.msra.mxu0 0
      %1024 = vmatpush.bf16.msra.mxu0 0
      %1025 = vmatpush.bf16.msra.mxu0 0
      %1026 = vmatpush.bf16.msra.mxu0 %v1017
      %1027 = vmatmul.bf16.gmra.mxu0 %v1012
      %v1028 = vpop.f32.mrf.mxu0
      %v1029 = vadd.f32 0.0, %v1028
      %v1030 = vpop.f32.mrf.mxu0
      %v1031 = vadd.f32 0.0, %v1030
      %1032 = vmatmul.bf16.gmra.mxu0 %v1014
      %v1033 = vpop.f32.mrf.mxu0
      %v1034 = vadd.f32 0.0, %v1033
      %v1035 = vpop.f32.mrf.mxu0
      %v1036 = vadd.f32 0.0, %v1035
      %1037 = vdwg.mxu0
      %v1038 = vadd.f32 %v973, %v1029
      %v1039 = vadd.f32 %v974, %v1031
      %v1040 = vadd.f32 %v975, %v1034
      %v1041 = vadd.f32 %v976, %v1036
      %1042 = vst [vmem:[#allocation1] sm:$0xff] %v201
      %s1043 = scalar_lea.vmem [#allocation1], 1
      %v1044 = vld [vmem:[%s1043] ss:$4 sm:$0xff]
      %s1046 = scalar_lea.vmem [#allocation1], 2
      %v1047 = vld [vmem:[%s1046] ss:$4 sm:$0xff]
      %s1049 = scalar_lea.vmem [#allocation1], 3
      %v1050 = vld [vmem:[%s1049] ss:$4 sm:$0xff]
      %1052 = vst [vmem:[#allocation1 + $0x20] sm:$0xff] %v202
      %s1053 = scalar_lea.vmem [#allocation1], 33
      %v1054 = vld [vmem:[%s1053] ss:$4 sm:$0xff]
      %s1056 = scalar_lea.vmem [#allocation1], 34
      %v1057 = vld [vmem:[%s1056] ss:$4 sm:$0xff]
      %s1059 = scalar_lea.vmem [#allocation1], 35
      %v1060 = vld [vmem:[%s1059] ss:$4 sm:$0xff]
      %1062 = vst [vmem:[#allocation1] sm:$0xff] %v203
      %v1063 = vld [vmem:[%s1043] ss:$4 sm:$0xff]
      %v1065 = vld [vmem:[%s1046] ss:$4 sm:$0xff]
      %v1067 = vld [vmem:[%s1049] ss:$4 sm:$0xff]
      %1069 = vst [vmem:[#allocation1 + $0x20] sm:$0xff] %v204
      %v1070 = vld [vmem:[%s1053] ss:$4 sm:$0xff]
      %v1072 = vld [vmem:[%s1056] ss:$4 sm:$0xff]
      %v1074 = vld [vmem:[%s1059] ss:$4 sm:$0xff]
      %1076 = vst [vmem:[#allocation1] sm:$0xff] %v205
      %v1077 = vld [vmem:[%s1043] ss:$4 sm:$0xff]
      %v1079 = vld [vmem:[%s1046] ss:$4 sm:$0xff]
      %v1081 = vld [vmem:[%s1049] ss:$4 sm:$0xff]
      %v1083 = vunpack.i.l.s16 %v1044
      %v1084 = vunpack.i.h.s16 %v1044
      %v1085 = vunpack.i.l.s16 %v1047
      %v1086 = vunpack.i.h.s16 %v1047
      %v1087 = vunpack.i.l.s16 %v1050
      %v1088 = vunpack.i.l.s16 %v1054
      %v1089 = vunpack.i.h.s16 %v1054
      %v1090 = vunpack.i.l.s16 %v1057
      %v1091 = vunpack.i.h.s16 %v1057
      %v1092 = vunpack.i.l.s16 %v1060
      %v1093 = vunpack.i.l.s16 %v1063
      %v1094 = vunpack.i.h.s16 %v1063
      %v1095 = vunpack.i.l.s16 %v1065
      %v1096 = vunpack.i.h.s16 %v1065
      %v1097 = vunpack.i.l.s16 %v1067
      %v1098 = vunpack.i.l.s16 %v1070
      %v1099 = vunpack.i.h.s16 %v1070
      %v1100 = vunpack.i.l.s16 %v1072
      %v1101 = vunpack.i.h.s16 %v1072
      %v1102 = vunpack.i.l.s16 %v1074
      %v1103 = vunpack.i.l.s16 %v1077
      %v1104 = vunpack.i.h.s16 %v1077
      %v1105 = vunpack.i.l.s16 %v1079
      %v1106 = vunpack.i.h.s16 %v1079
      %v1107 = vunpack.i.l.s16 %v1081
      %s1108 = scalar_lea.vmem %s1, 32
      %v1109 = vld [vmem:[%s1108] sm:$0xf]
      %v1110 = vpack.i.b16 %v1084, %v1083
      %v1111 = vpack.i.b16 %v1086, %v1085
      %v1112 = vpack.i.b16 %v1088, %v1087
      %v1113 = vpack.i.b16 %v1090, %v1089
      %v1114 = vpack.i.b16 %v1092, %v1091
      %v1115 = vpack.i.b16 %v1094, %v1093
      %v1116 = vpack.i.b16 %v1096, %v1095
      %v1117 = vpack.i.b16 %v1098, %v1097
      %v1118 = vpack.i.b16 %v1100, %v1099
      %v1119 = vpack.i.b16 %v1102, %v1101
      %v1120 = vpack.i.b16 %v1104, %v1103
      %v1121 = vpack.i.b16 %v1106, %v1105
      %1124 = vst [vmem:[#allocation1] ss:$9 sm:$0xff] %v1110
      %s1126 = scalar_lea.vmem [#allocation1], 1
      %1127 = vst [vmem:[%s1126] ss:$9 sm:$0xff] %v1111
      %s1129 = scalar_lea.vmem [#allocation1], 2
      %1130 = vst [vmem:[%s1129] ss:$9 sm:$0xff] %v1112
      %s1132 = scalar_lea.vmem [#allocation1], 3
      %1133 = vst [vmem:[%s1132] ss:$9 sm:$0xff] %v1113
      %s1135 = scalar_lea.vmem [#allocation1], 4
      %1136 = vst [vmem:[%s1135] ss:$9 sm:$0xff] %v1114
      %s1138 = scalar_lea.vmem [#allocation1], 5
      %1139 = vst [vmem:[%s1138] ss:$9 sm:$0xff] %v1115
      %s1141 = scalar_lea.vmem [#allocation1], 6
      %1142 = vst [vmem:[%s1141] ss:$9 sm:$0xff] %v1116
      %s1144 = scalar_lea.vmem [#allocation1], 7
      %1145 = vst [vmem:[%s1144] ss:$9 sm:$0xff] %v1117
      %v1146 = vld [vmem:[#allocation1] sm:$0xff]
      %1148 = vst [vmem:[#allocation1] ss:$9 sm:$0xff] %v1118
      %1150 = vst [vmem:[%s1126] ss:$9 sm:$0xff] %v1119
      %1152 = vst [vmem:[%s1129] ss:$9 sm:$0xff] %v1120
      %1154 = vst [vmem:[%s1132] ss:$9 sm:$0xff] %v1121
      %1156 = vst [vmem:[%s1135] ss:$9 sm:$0xff] %v1107
      %v1157 = vld [vmem:[#allocation1] sm:$0xff]
      %v1158 = vsel %vm350, %v1146, 0
      %v1160 = vsel %vm350, %v1157, 0
      %v1163 = vsel %vm355, %v1109, 0
      %1165 = vmatpush.bf16.msra.mxu0 0
      %1166 = vmatpush.bf16.msra.mxu0 0
      %1167 = vmatpush.bf16.msra.mxu0 0
      %1168 = vmatpush.bf16.msra.mxu0 0
      %1169 = vmatpush.bf16.msra.mxu0 0
      %1170 = vmatpush.bf16.msra.mxu0 0
      %1171 = vmatpush.bf16.msra.mxu0 0
      %1172 = vmatpush.bf16.msra.mxu0 %v1163
      %1173 = vmatmul.bf16.gmra.mxu0 %v1158
      %v1174 = vpop.f32.mrf.mxu0
      %v1175 = vadd.f32 0.0, %v1174
      %v1176 = vpop.f32.mrf.mxu0
      %v1177 = vadd.f32 0.0, %v1176
      %1178 = vmatmul.bf16.gmra.mxu0 %v1160
      %v1179 = vpop.f32.mrf.mxu0
      %v1180 = vadd.f32 0.0, %v1179
      %v1181 = vpop.f32.mrf.mxu0
      %v1182 = vadd.f32 0.0, %v1181
      %1183 = vdwg.mxu0
      %v1184 = vadd.f32 %v1038, %v1175
      %v1185 = vadd.f32 %v1039, %v1177
      %v1186 = vadd.f32 %v1040, %v1180
      %v1187 = vadd.f32 %v1041, %v1182
      %v1188 = vld [vmem:[%s2] sm:$0x1]
      %v1190 = vperm.slane %v1188, 0
      %v1192 = vmul.f32 %v1184, %v1190
      %v1193 = vmul.f32 %v1185, %v1190
      %v1194 = vmul.f32 %v1186, %v1190
      %v1195 = vmul.f32 %v1187, %v1190
      %v1196 = vld [vmem:[%s3] sm:$0x1]
      %v1198 = vperm.slane %v1196, 0
      %v1200 = vadd.f32 %v1192, %v1198
      %v1201 = vadd.f32 %v1193, %v1198
      %v1202 = vadd.f32 %v1194, %v1198
      %v1203 = vadd.f32 %v1195, %v1198
      %v1204 = vmax.f32 %v1200, 0.0
      %v1205 = vmax.f32 %v1201, 0.0
      %v1206 = vmax.f32 %v1202, 0.0
      %v1207 = vmax.f32 %v1203, 0.0
      %v1212 = vrot.slane %v1204, 1
      %v1213 = vrot.slane %v1204, 2
      %v1214 = vrot.slane %v1204, 3
      %v1215 = vrot.slane %v1204, 4
      %v1216 = vrot.slane %v1204, 5
      %v1217 = vrot.slane %v1204, 6
      %v1218 = vrot.slane %v1204, 7
      %v1219 = vrot.slane %v1205, 1
      %v1220 = vrot.slane %v1205, 2
      %v1221 = vrot.slane %v1205, 3
      %v1222 = vrot.slane %v1205, 4
      %v1223 = vrot.slane %v1205, 5
      %v1224 = vrot.slane %v1205, 6
      %v1225 = vrot.slane %v1205, 7
      %v1226 = vrot.slane %v1206, 1
      %v1227 = vrot.slane %v1206, 2
      %v1228 = vrot.slane %v1206, 3
      %v1229 = vrot.slane %v1206, 4
      %v1230 = vrot.slane %v1206, 5
      %v1231 = vrot.slane %v1206, 6
      %v1232 = vrot.slane %v1206, 7
      %1233 = vst [vmem:[#allocation1] ss:$9 sm:$0xff] %v1204
      %s1234 = scalar_lea.vmem [#allocation1], 1
      %1235 = vst [vmem:[%s1234] ss:$9 sm:$0xff] %v1212
      %s1236 = scalar_lea.vmem [#allocation1], 2
      %1237 = vst [vmem:[%s1236] ss:$9 sm:$0xff] %v1213
      %s1238 = scalar_lea.vmem [#allocation1], 3
      %1239 = vst [vmem:[%s1238] ss:$9 sm:$0xff] %v1214
      %s1240 = scalar_lea.vmem [#allocation1], 4
      %1241 = vst [vmem:[%s1240] ss:$9 sm:$0xff] %v1215
      %v1242 = vld [vmem:[#allocation1] sm:$0xff]
      %1243 = vst [vmem:[#allocation1] ss:$9 sm:$0xff] %v1216
      %1244 = vst [vmem:[%s1234] ss:$9 sm:$0xff] %v1217
      %1245 = vst [vmem:[%s1236] ss:$9 sm:$0xff] %v1218
      %1246 = vst [vmem:[%s1238] ss:$9 sm:$0xff] %v1205
      %1247 = vst [vmem:[%s1240] ss:$9 sm:$0xff] %v1219
      %v1248 = vld [vmem:[#allocation1] sm:$0xff]
      %1249 = vst [vmem:[#allocation1] ss:$9 sm:$0xff] %v1220
      %1250 = vst [vmem:[%s1234] ss:$9 sm:$0xff] %v1221
      %1251 = vst [vmem:[%s1236] ss:$9 sm:$0xff] %v1222
      %1252 = vst [vmem:[%s1238] ss:$9 sm:$0xff] %v1223
      %1253 = vst [vmem:[%s1240] ss:$9 sm:$0xff] %v1224
      %v1254 = vld [vmem:[#allocation1] sm:$0xff]
      %1255 = vst [vmem:[#allocation1] ss:$9 sm:$0xff] %v1225
      %1256 = vst [vmem:[%s1234] ss:$9 sm:$0xff] %v1206
      %1257 = vst [vmem:[%s1236] ss:$9 sm:$0xff] %v1226
      %1258 = vst [vmem:[%s1238] ss:$9 sm:$0xff] %v1227
      %1259 = vst [vmem:[%s1240] ss:$9 sm:$0xff] %v1228
      %v1260 = vld [vmem:[#allocation1] sm:$0xff]
      %1261 = vst [vmem:[#allocation1] ss:$9 sm:$0xff] %v1229
      %1262 = vst [vmem:[%s1234] ss:$9 sm:$0xff] %v1230
      %1263 = vst [vmem:[%s1236] ss:$9 sm:$0xff] %v1231
      %1264 = vst [vmem:[%s1238] ss:$9 sm:$0xff] %v1232
      %1265 = vst [vmem:[%s1240] ss:$9 sm:$0xff] %v1207
      %v1266 = vld [vmem:[#allocation1] sm:$0xff]
      %v1272 = vpack.c.bf16 %v1242, %v1242
      %v1273 = vpack.c.bf16 %v1248, %v1248
      %v1274 = vpack.c.bf16 %v1254, %v1254
      %v1275 = vpack.c.bf16 %v1260, %v1260
      %v1276 = vpack.c.bf16 %v1266, %v1266
      %vm1277 = vcmask 59392
      %vm1278 = vsmask.f32 2304
      %vm1279 = vmand %vm1277, %vm1278
      %v1280 = vld [vmem:[%s197] sm:$0x7]
      %v1281 = vsel %vm1279, %v1272, %v1280
      %1282 = vst [vmem:[%s197] sm:$0x7] %v1281
      %v1283 = vld [vmem:[%s197 + $0x4] sm:$0x7]
      %v1284 = vsel %vm1279, %v1273, %v1283
      %1285 = vst [vmem:[%s197 + $0x4] sm:$0x7] %v1284
      %v1286 = vld [vmem:[%s197 + $0x8] sm:$0x7]
      %v1287 = vsel %vm1279, %v1274, %v1286
      %1288 = vst [vmem:[%s197 + $0x8] sm:$0x7] %v1287
      %v1289 = vld [vmem:[%s197 + $0xc] sm:$0x7]
      %v1290 = vsel %vm1279, %v1275, %v1289
      %1291 = vst [vmem:[%s197 + $0xc] sm:$0x7] %v1290
      %v1292 = vld [vmem:[%s197 + $0x10] sm:$0x7]
      %v1293 = vsel %vm1279, %v1276, %v1292
      %1294 = vst [vmem:[%s197 + $0x10] sm:$0x7] %v1293
      %p1295 = scmp.lt.s32.totalorder %s15, 1
      %s1296 = scalar_select %p1295, %s15, 1
      %s1297 = smul.addr %s1296, 5
      %s1298 = smul.addr %s1297, 4
      %s1299 = scalar_lea.vmem %s4, %s1298
      // Predicated region
      $region37: #{a_call__.6} parent=35 // pred_check
        %p1300 = pneg %p122
      $region38: #{a_call__.6} parent=35 // pred_check_branch
        %1302 = sbr.rel (%p1300) target = $region40
      $region39: #{a_call__.6} parent=35 // pred_region
        _
      $region40: #{a_call__.6} parent=35 // pred_fallthru
        _
    $region36: #{a_call__.6} parent=5 // pred_fallthru
      _
    %p1303 = scmp.le.s32.totalorder 2, %s10
    // Predicated region
    $region41: #{a_call__.6} parent=5 // pred_check
      %p1304 = pneg %p1303
    $region42: #{a_call__.6} parent=5 // pred_check_branch
      %1306 = sbr.rel (%p1304) target = $region44
    $region43: #{a_call__.6} parent=5 // pred_region
      %s1307 = ssub.s32 %s10, 2
      // Predicated region
      $region45: #{a_call__.6} parent=43 // pred_check
        %p1308 = pneg %p128
      $region46: #{a_call__.6} parent=43 // pred_check_branch
        %1310 = sbr.rel (%p1308) target = $region48
      $region47: #{a_call__.6} parent=43 // pred_region
        %p1311 = scmp.lt.s32.totalorder %s16, 1
        %s1312 = scalar_select %p1311, %s16, 1
        %s1313 = smul.addr %s1312, 5
        %s1314 = smul.addr %s1313, 4
        %s1315 = scalar_lea.vmem %s4, %s1314
      $region48: #{a_call__.6} parent=43 // pred_fallthru
        _
    $region44: #{a_call__.6} parent=5 // pred_fallthru
      _
  $region6: #{a_call__.6} parent=0 // loop_footer
    %s14 = sadd.s32 1, %s10
  $region7: #{a_call__.6} parent=0 // loop_footer_branch
    %9 = sbr.rel target = $region3
  $region8: #{a_call__.6} parent=0 // loop_exit
    _

// kernel: a_call__.7
$region0: #{a_call__.7}
  #allocation0 [shape = 'u32[]', space=smem, size = 0x4, offset = 0x4, fixed_abs, tag = 'smem constant byte address 0x4 - core index']
  #allocation1 [shape = 'u32[72,128]{1,0:T(1,128)}', space=vmem, size = 0x9000, scoped, tag = 'internal scratch']
  %s0 = inlined_call_operand.vmem [shape: bf16[2,7,7,8], index: 0, kind: input, shape index: {}]
  %s1 = inlined_call_operand.vmem [shape: bf16[9,8,16], index: 1, kind: input, shape index: {}]
  %s2 = inlined_call_operand.vmem [shape: f32[1,16], index: 2, kind: input, shape index: {}]
  %s3 = inlined_call_operand.vmem [shape: f32[1,16], index: 3, kind: input, shape index: {}]
  %s4 = inlined_call_operand.vmem [shape: bf16[2,5,5,16], index: 4, kind: output, shape index: {}]
  %s5 = sld [smem:[#allocation0]]
  $region49: #{a_call__.7} parent=0
    _
  %s7 = ssub.s32 1, %s5
  %s8 = scalar_select 0, %s7, %s5
  loop: start=0, step=1, limit=4
  $region2: #{a_call__.7} parent=0 // loop_pre_header
    _
  $region3: #{a_call__.7} parent=0 // loop_header
    %s10 = sphi 0, %s14
    %p11 = scmp.ge.s32.totalorder %s10, 4
    %s20 = sphi 0, %s22
    %s23 = sphi 0, %s20
    %s24 = sphi 0, %s23
    %s40 = sphi 0, %s24
    %s44 = sphi 0, %s44
    %s46 = sphi 0, %s44
    %s47 = sphi 0, %s46
    %s61 = sphi 0, %s47
    %s65 = sphi 0, %s65
    %s67 = sphi 0, %s65
    %s68 = sphi 0, %s67
    %s82 = sphi 0, %s68
    %s86 = sphi 0, %s86
    %s88 = sphi 0, %s86
    %s89 = sphi 0, %s88
    %s103 = sphi 0, %s89
    %s109 = sphi 0, %s111
    %s112 = sphi 0, %s109
    %s113 = sphi 0, %s112
    %s129 = sphi 0, %s113
  $region4: #{a_call__.7} parent=0 // loop_header_branch
    %13 = sbr.rel (%p11) target = $region8
  $region5: #{a_call__.7} parent=0 // loop_body
    %s15 = ssub.s32 %s10, 1
    %s16 = ssub.s32 %s10, 2
    %s17 = sadd.s32 %s10, 1
    %s18 = ssub.s32 %s10, %s17
    %p19 = scmp.eq.s32.totalorder %s18, 0
    %s21 = sadd.s32 %s20, 1
    %s22 = scalar_select %p19, %s20, %s21
    %p25 = pneg %p19
    %p26 = scmp.eq.s32.totalorder %s10, 1
    %p27 = por %p25, %p26
    %p28 = scmp.ne.s32.totalorder %s20, %s23
    %p29 = scmp.eq.s32.totalorder %s10, 0
    %p30 = por %p28, %p29
    %p31 = scmp.ne.s32.totalorder %s20, %s23
    %p32 = scmp.eq.s32.totalorder %s15, 1
    %p33 = por %p31, %p32
    %p34 = scmp.ne.s32.totalorder %s23, %s24
    %p35 = scmp.eq.s32.totalorder %s15, 0
    %p36 = por %p34, %p35
    %p37 = scmp.ne.s32.totalorder %s23, %s24
    %p38 = scmp.eq.s32.totalorder %s16, 1
    %p39 = por %p37, %p38
    %p41 = scmp.ne.s32.totalorder %s24, %s40
    %p42 = scmp.eq.s32.totalorder %s16, 0
    %p43 = por %p41, %p42
    %s45 = sadd.s32 %s44, 1
    %p48 = scmp.eq.s32.totalorder %s10, 1
    %p49 = scmp.ne.s32.totalorder %s44, %s46
    %p50 = scmp.eq.s32.totalorder %s10, 0
    %p51 = por %p49, %p50
    %p52 = scmp.ne.s32.totalorder %s44, %s46
    %p53 = scmp.eq.s32.totalorder %s15, 1
    %p54 = por %p52, %p53
    %p55 = scmp.ne.s32.totalorder %s46, %s47
    %p56 = scmp.eq.s32.totalorder %s15, 0
    %p57 = por %p55, %p56
    %p58 = scmp.ne.s32.totalorder %s46, %s47
    %p59 = scmp.eq.s32.totalorder %s16, 1
    %p60 = por %p58, %p59
    %p62 = scmp.ne.s32.totalorder %s47, %s61
    %p63 = scmp.eq.s32.totalorder %s16, 0
    %p64 = por %p62, %p63
    %s66 = sadd.s32 %s65, 1
    %p69 = scmp.eq.s32.totalorder %s10, 1
    %p70 = scmp.ne.s32.totalorder %s65, %s67
    %p71 = scmp.eq.s32.totalorder %s10, 0
    %p72 = por %p70, %p71
    %p73 = scmp.ne.s32.totalorder %s65, %s67
    %p74 = scmp.eq.s32.totalorder %s15, 1
    %p75 = por %p73, %p74
    %p76 = scmp.ne.s32.totalorder %s67, %s68
    %p77 = scmp.eq.s32.totalorder %s15, 0
    %p78 = por %p76, %p77
    %p79 = scmp.ne.s32.totalorder %s67, %s68
    %p80 = scmp.eq.s32.totalorder %s16, 1
    %p81 = por %p79, %p80
    %p83 = scmp.ne.s32.totalorder %s68, %s82
    %p84 = scmp.eq.s32.totalorder %s16, 0
    %p85 = por %p83, %p84
    %s87 = sadd.s32 %s86, 1
    %p90 = scmp.eq.s32.totalorder %s10, 1
    %p91 = scmp.ne.s32.totalorder %s86, %s88
    %p92 = scmp.eq.s32.totalorder %s10, 0
    %p93 = por %p91, %p92
    %p94 = scmp.ne.s32.totalorder %s86, %s88
    %p95 = scmp.eq.s32.totalorder %s15, 1
    %p96 = por %p94, %p95
    %p97 = scmp.ne.s32.totalorder %s88, %s89
    %p98 = scmp.eq.s32.totalorder %s15, 0
    %p99 = por %p97, %p98
    %p100 = scmp.ne.s32.totalorder %s88, %s89
    %p101 = scmp.eq.s32.totalorder %s16, 1
    %p102 = por %p100, %p101
    %p104 = scmp.ne.s32.totalorder %s89, %s103
    %p105 = scmp.eq.s32.totalorder %s16, 0
    %p106 = por %p104, %p105
    %s107 = ssub.s32 %s10, %s17
    %p108 = scmp.eq.s32.totalorder %s107, 0
    %s110 = sadd.s32 %s109, 1
    %s111 = scalar_select %p108, %s109, %s110
    %p114 = pneg %p108
    %p115 = scmp.eq.s32.totalorder %s10, 1
    %p116 = por %p114, %p115
    %p117 = scmp.ne.s32.totalorder %s109, %s112
    %p118 = scmp.eq.s32.totalorder %s10, 0
    %p119 = por %p117, %p118
    %p120 = scmp.ne.s32.totalorder %s109, %s112
    %p121 = scmp.eq.s32.totalorder %s15, 1
    %p122 = por %p120, %p121
    %p123 = scmp.ne.s32.totalorder %s112, %s113
    %p124 = scmp.eq.s32.totalorder %s15, 0
    %p125 = por %p123, %p124
    %p126 = scmp.ne.s32.totalorder %s112, %s113
    %p127 = scmp.eq.s32.totalorder %s16, 1
    %p128 = por %p126, %p127
    %p130 = scmp.ne.s32.totalorder %s113, %s129
    %p131 = scmp.eq.s32.totalorder %s16, 0
    %p132 = por %p130, %p131
    %p133 = scmp.le.s32.totalorder 1, %s10
    %p134 = scmp.lt.s32.totalorder %s10, 3
    %p135 = pnand %p133, %p134
    %p136 = pneg %p135
    // Predicated region
    $region9: #{a_call__.7} parent=5 // pred_check
      _
    $region10: #{a_call__.7} parent=5 // pred_check_branch
      %138 = sbr.rel (%p135) target = $region12
    $region11: #{a_call__.7} parent=5 // pred_region
      %s139 = ssub.s32 %s10, 1
      // Predicated region
      $region13: #{a_call__.7} parent=11 // pred_check
        %p140 = pneg %p57
      $region14: #{a_call__.7} parent=11 // pred_check_branch
        %142 = sbr.rel (%p140) target = $region16
      $region15: #{a_call__.7} parent=11 // pred_region
        _
      $region16: #{a_call__.7} parent=11 // pred_fallthru
        _
      // Predicated region
      $region17: #{a_call__.7} parent=11 // pred_check
        %p143 = pneg %p78
      $region18: #{a_call__.7} parent=11 // pred_check_branch
        %145 = sbr.rel (%p143) target = $region20
      $region19: #{a_call__.7} parent=11 // pred_region
        _
      $region20: #{a_call__.7} parent=11 // pred_fallthru
        _
      // Predicated region
      $region21: #{a_call__.7} parent=11 // pred_check
        %p146 = pneg %p99
      $region22: #{a_call__.7} parent=11 // pred_check_branch
        %148 = sbr.rel (%p146) target = $region24
      $region23: #{a_call__.7} parent=11 // pred_region
        _
      $region24: #{a_call__.7} parent=11 // pred_fallthru
        _
    $region12: #{a_call__.7} parent=5 // pred_fallthru
      _
    %p149 = scmp.lt.s32.totalorder %s10, 2
    // Predicated region
    $region25: #{a_call__.7} parent=5 // pred_check
      %p150 = pneg %p149
    $region26: #{a_call__.7} parent=5 // pred_check_branch
      %152 = sbr.rel (%p150) target = $region28
    $region27: #{a_call__.7} parent=5 // pred_region
      // Predicated region
      $region29: #{a_call__.7} parent=27 // pred_check
        %p153 = pneg %p30
      $region30: #{a_call__.7} parent=27 // pred_check_branch
        %155 = sbr.rel (%p153) target = $region32
      $region31: #{a_call__.7} parent=27 // pred_region
        %p156 = scmp.lt.s32.totalorder %s10, 1
        %s157 = scalar_select %p156, %s10, 1
        %s158 = smul.addr %s157, 7
        %s159 = smul.addr %s158, 4
        %s160 = scalar_lea.vmem %s0, %s159
      $region32: #{a_call__.7} parent=27 // pred_fallthru
        _
    $region28: #{a_call__.7} parent=5 // pred_fallthru
      _
    %p161 = scmp.le.s32.totalorder 1, %s10
    %p162 = scmp.lt.s32.totalorder %s10, 3
    %p163 = pnand %p161, %p162
    %p164 = pneg %p163
    // Predicated region
    $region33: #{a_call__.7} parent=5 // pred_check
      _
    $region34: #{a_call__.7} parent=5 // pred_check_branch
      %166 = sbr.rel (%p163) target = $region36
    $region35: #{a_call__.7} parent=5 // pred_region
      %s167 = ssub.s32 %s10, 1
      %p168 = scmp.lt.s32.totalorder %s15, 1
      %s169 = scalar_select %p168, %s15, 1
      %s170 = smul.addr %s169, 7
      %s171 = smul.addr %s170, 4
      %s172 = scalar_lea.vmem %s0, %s171
      %p173 = pneg %p36
      %p174 = pneg %p33
      %p175 = pneg %p57
      %p176 = pneg %p54
      %p177 = pneg %p78
      %p178 = pneg %p75
      %p179 = pneg %p99
      %p180 = pneg %p96
      %p181 = pneg %p125
      %p182 = pneg %p122
      %p183 = scmp.lt.s32.totalorder %s15, 1
      %s184 = scalar_select %p183, %s15, 1
      %s185 = smul.addr %s184, 5
      %s186 = smul.addr %s185, 4
      %s187 = scalar_lea.vmem %s4, %s186
      %p188 = scmp.lt.s32.totalorder %s15, 1
      %s189 = scalar_select %p188, %s15, 1
      %s190 = smul.addr %s189, 7
      %s191 = smul.addr %s190, 4
      %s192 = scalar_lea.vmem %s0, %s191
      %p193 = scmp.lt.s32.totalorder %s15, 1
      %s194 = scalar_select %p193, %s15, 1
      %s195 = smul.addr %s194, 5
      %s196 = smul.addr %s195, 4
      %s197 = scalar_lea.vmem %s4, %s196
      %v199 = vld [vmem:[%s192] sm:$0xf]
      %v200 = vld [vmem:[%s192 + $0x4] sm:$0xf]
      %v201 = vld [vmem:[%s192 + $0x8] sm:$0xf]
      %v202 = vld [vmem:[%s192 + $0xc] sm:$0xf]
      %v203 = vld [vmem:[%s192 + $0x10] sm:$0xf]
      %v204 = vld [vmem:[%s192 + $0x14] sm:$0xf]
      %v205 = vld [vmem:[%s192 + $0x18] sm:$0xf]
      %v211 = vrot.slane %v199, 3
      %v212 = vrot.slane %v200, 3
      %v213 = vrot.slane %v201, 3
      %v214 = vrot.slane %v202, 3
      %v215 = vrot.slane %v203, 3
      %vm216 = vcmask 1040384
      %v219 = vsel %vm216, %v199, %v211
      %vm221 = vcmask 1041409
      %v222 = vsel %vm221, %v199, %v211
      %v224 = vrot.slane %v222, 1
      %vm225 = vcmask 1042434
      %v226 = vsel %vm225, %v199, %v211
      %v228 = vrot.slane %v226, 2
      %v231 = vsel %vm216, %v200, %v212
      %v233 = vsel %vm221, %v200, %v212
      %v235 = vrot.slane %v233, 1
      %v236 = vsel %vm225, %v200, %v212
      %v238 = vrot.slane %v236, 2
      %v241 = vsel %vm216, %v201, %v213
      %v243 = vsel %vm221, %v201, %v213
      %v245 = vrot.slane %v243, 1
      %v246 = vsel %vm225, %v201, %v213
      %v248 = vrot.slane %v246, 2
      %v251 = vsel %vm216, %v202, %v214
      %v253 = vsel %vm221, %v202, %v214
      %v255 = vrot.slane %v253, 1
      %v256 = vsel %vm225, %v202, %v214
      %v258 = vrot.slane %v256, 2
      %v261 = vsel %vm216, %v203, %v215
      %v263 = vsel %vm221, %v203, %v215
      %v265 = vrot.slane %v263, 1
      %v266 = vsel %vm225, %v203, %v215
      %v268 = vrot.slane %v266, 2
      %v269 = vunpack.i.l.s16 %v219
      %v270 = vunpack.i.h.s16 %v219
      %v271 = vunpack.i.l.s16 %v224
      %v272 = vunpack.i.h.s16 %v224
      %v273 = vunpack.i.l.s16 %v228
      %v274 = vunpack.i.l.s16 %v231
      %v275 = vunpack.i.h.s16 %v231
      %v276 = vunpack.i.l.s16 %v235
      %v277 = vunpack.i.h.s16 %v235
      %v278 = vunpack.i.l.s16 %v238
      %v279 = vunpack.i.l.s16 %v241
      %v280 = vunpack.i.h.s16 %v241
      %v281 = vunpack.i.l.s16 %v245
      %v282 = vunpack.i.h.s16 %v245
      %v283 = vunpack.i.l.s16 %v248
      %v284 = vunpack.i.l.s16 %v251
      %v285 = vunpack.i.h.s16 %v251
      %v286 = vunpack.i.l.s16 %v255
      %v287 = vunpack.i.h.s16 %v255
      %v288 = vunpack.i.l.s16 %v258
      %v289 = vunpack.i.l.s16 %v261
      %v290 = vunpack.i.h.s16 %v261
      %v291 = vunpack.i.l.s16 %v265
      %v292 = vunpack.i.h.s16 %v265
      %v293 = vunpack.i.l.s16 %v268
      %v294 = vld [vmem:[%s1] sm:$0xf]
      %v295 = vunpack.i.h.s16 %v228
      %v296 = vunpack.i.h.s16 %v238
      %v297 = vunpack.i.h.s16 %v248
      %v298 = vunpack.i.h.s16 %v258
      %v299 = vunpack.i.h.s16 %v268
      %s300 = scalar_lea.vmem %s1, 4
      %v301 = vld [vmem:[%s300] sm:$0xf]
      %v302 = vpack.i.b16 %v271, %v270
      %v303 = vpack.i.b16 %v273, %v272
      %v304 = vpack.i.b16 %v275, %v295
      %v305 = vpack.i.b16 %v277, %v276
      %v306 = vpack.i.b16 %v296, %v278
      %v307 = vpack.i.b16 %v281, %v280
      %v308 = vpack.i.b16 %v283, %v282
      %v309 = vpack.i.b16 %v285, %v297
      %v310 = vpack.i.b16 %v287, %v286
      %v311 = vpack.i.b16 %v298, %v288
      %v312 = vpack.i.b16 %v291, %v290
      %v313 = vpack.i.b16 %v293, %v292
      %316 = vst [vmem:[#allocation1] ss:$9 sm:$0xff] %v302
      %s318 = scalar_lea.vmem [#allocation1], 1
      %319 = vst [vmem:[%s318] ss:$9 sm:$0xff] %v303
      %s321 = scalar_lea.vmem [#allocation1], 2
      %322 = vst [vmem:[%s321] ss:$9 sm:$0xff] %v304
      %s324 = scalar_lea.vmem [#allocation1], 3
      %325 = vst [vmem:[%s324] ss:$9 sm:$0xff] %v305
      %s327 = scalar_lea.vmem [#allocation1], 4
      %328 = vst [vmem:[%s327] ss:$9 sm:$0xff] %v306
      %s330 = scalar_lea.vmem [#allocation1], 5
      %331 = vst [vmem:[%s330] ss:$9 sm:$0xff] %v307
      %s333 = scalar_lea.vmem [#allocation1], 6
      %334 = vst [vmem:[%s333] ss:$9 sm:$0xff] %v308
      %s336 = scalar_lea.vmem [#allocation1], 7
      %337 = vst [vmem:[%s336] ss:$9 sm:$0xff] %v309
      %v338 = vld [vmem:[#allocation1] sm:$0xff]
      %340 = vst [vmem:[#allocation1] ss:$9 sm:$0xff] %v310
      %342 = vst [vmem:[%s318] ss:$9 sm:$0xff] %v311
      %344 = vst [vmem:[%s321] ss:$9 sm:$0xff] %v312
      %346 = vst [vmem:[%s324] ss:$9 sm:$0xff] %v313
      %348 = vst [vmem:[%s327] ss:$9 sm:$0xff] %v299
      %v349 = vld [vmem:[#allocation1] sm:$0xff]
      %vm350 = vcmask 64512
      %v351 = vsel %vm350, %v338, 0
      %v353 = vsel %vm350, %v349, 0
      %vm355 = vcmask 1043456
      %v357 = vsel %vm355, %v301, 0
      %359 = vmatpush.bf16.msra.mxu0 0
      %360 = vmatpush.bf16.msra.mxu0 0
      %361 = vmatpush.bf16.msra.mxu0 0
      %362 = vmatpush.bf16.msra.mxu0 0
      %363 = vmatpush.bf16.msra.mxu0 0
      %364 = vmatpush.bf16.msra.mxu0 0
      %365 = vmatpush.bf16.msra.mxu0 0
      %366 = vmatpush.bf16.msra.mxu0 %v357
      %367 = vmatmul.bf16.gmra.mxu0 %v351
      %v368 = vpop.f32.mrf.mxu0
      %v369 = vadd.f32 0.0, %v368
      %v370 = vpop.f32.mrf.mxu0
      %v371 = vadd.f32 0.0, %v370
      %372 = vmatmul.bf16.gmra.mxu0 %v353
      %v373 = vpop.f32.mrf.mxu0
      %v374 = vadd.f32 0.0, %v373
      %v375 = vpop.f32.mrf.mxu0
      %v376 = vadd.f32 0.0, %v375
      %377 = vdwg.mxu0
      %v378 = vpack.i.b16 %v270, %v269
      %v379 = vpack.i.b16 %v272, %v271
      %v380 = vpack.i.b16 %v274, %v273
      %v381 = vpack.i.b16 %v276, %v275
      %v382 = vpack.i.b16 %v278, %v277
      %v383 = vpack.i.b16 %v280, %v279
      %v384 = vpack.i.b16 %v282, %v281
      %v385 = vpack.i.b16 %v284, %v283
      %v386 = vpack.i.b16 %v286, %v285
      %v387 = vpack.i.b16 %v288, %v287
      %v388 = vpack.i.b16 %v290, %v289
      %v389 = vpack.i.b16 %v292, %v291
      %392 = vst [vmem:[#allocation1] ss:$9 sm:$0xff] %v378
      %s394 = scalar_lea.vmem [#allocation1], 1
      %395 = vst [vmem:[%s394] ss:$9 sm:$0xff] %v379
      %s397 = scalar_lea.vmem [#allocation1], 2
      %398 = vst [vmem:[%s397] ss:$9 sm:$0xff] %v380
      %s400 = scalar_lea.vmem [#allocation1], 3
      %401 = vst [vmem:[%s400] ss:$9 sm:$0xff] %v381
      %s403 = scalar_lea.vmem [#allocation1], 4
      %404 = vst [vmem:[%s403] ss:$9 sm:$0xff] %v382
      %s406 = scalar_lea.vmem [#allocation1], 5
      %407 = vst [vmem:[%s406] ss:$9 sm:$0xff] %v383
      %s409 = scalar_lea.vmem [#allocation1], 6
      %410 = vst [vmem:[%s409] ss:$9 sm:$0xff] %v384
      %s412 = scalar_lea.vmem [#allocation1], 7
      %413 = vst [vmem:[%s412] ss:$9 sm:$0xff] %v385
      %v414 = vld [vmem:[#allocation1] sm:$0xff]
      %416 = vst [vmem:[#allocation1] ss:$9 sm:$0xff] %v386
      %418 = vst [vmem:[%s394] ss:$9 sm:$0xff] %v387
      %420 = vst [vmem:[%s397] ss:$9 sm:$0xff] %v388
      %422 = vst [vmem:[%s400] ss:$9 sm:$0xff] %v389
      %424 = vst [vmem:[%s403] ss:$9 sm:$0xff] %v293
      %v425 = vld [vmem:[#allocation1] sm:$0xff]
      %v426 = vsel %vm350, %v414, 0
      %v428 = vsel %vm350, %v425, 0
      %v431 = vsel %vm355, %v294, 0
      %433 = vmatpush.bf16.msra.mxu0 0
      %434 = vmatpush.bf16.msra.mxu0 0
      %435 = vmatpush.bf16.msra.mxu0 0
      %436 = vmatpush.bf16.msra.mxu0 0
      %437 = vmatpush.bf16.msra.mxu0 0
      %438 = vmatpush.bf16.msra.mxu0 0
      %439 = vmatpush.bf16.msra.mxu0 0
      %440 = vmatpush.bf16.msra.mxu0 %v431
      %441 = vmatmul.bf16.gmra.mxu0 %v426
      %v442 = vpop.f32.mrf.mxu0
      %v443 = vadd.f32 %v369, %v442
      %v444 = vpop.f32.mrf.mxu0
      %v445 = vadd.f32 %v371, %v444
      %446 = vmatmul.bf16.gmra.mxu0 %v428
      %v447 = vpop.f32.mrf.mxu0
      %v448 = vadd.f32 %v374, %v447
      %v449 = vpop.f32.mrf.mxu0
      %v450 = vadd.f32 %v376, %v449
      %451 = vdwg.mxu0
      %452 = vst [vmem:[#allocation1] sm:$0xff] %v199
      %s453 = scalar_lea.vmem [#allocation1], 1
      %v454 = vld [vmem:[%s453] ss:$4 sm:$0xff]
      %s456 = scalar_lea.vmem [#allocation1], 2
      %v457 = vld [vmem:[%s456] ss:$4 sm:$0xff]
      %s459 = scalar_lea.vmem [#allocation1], 3
      %v460 = vld [vmem:[%s459] ss:$4 sm:$0xff]
      %462 = vst [vmem:[#allocation1 + $0x20] sm:$0xff] %v200
      %s463 = scalar_lea.vmem [#allocation1], 33
      %v464 = vld [vmem:[%s463] ss:$4 sm:$0xff]
      %s466 = scalar_lea.vmem [#allocation1], 34
      %v467 = vld [vmem:[%s466] ss:$4 sm:$0xff]
      %s469 = scalar_lea.vmem [#allocation1], 35
      %v470 = vld [vmem:[%s469] ss:$4 sm:$0xff]
      %472 = vst [vmem:[#allocation1] sm:$0xff] %v201
      %v473 = vld [vmem:[%s453] ss:$4 sm:$0xff]
      %v475 = vld [vmem:[%s456] ss:$4 sm:$0xff]
      %v477 = vld [vmem:[%s459] ss:$4 sm:$0xff]
      %479 = vst [vmem:[#allocation1 + $0x20] sm:$0xff] %v202
      %v480 = vld [vmem:[%s463] ss:$4 sm:$0xff]
      %v482 = vld [vmem:[%s466] ss:$4 sm:$0xff]
      %v484 = vld [vmem:[%s469] ss:$4 sm:$0xff]
      %486 = vst [vmem:[#allocation1] sm:$0xff] %v203
      %v487 = vld [vmem:[%s453] ss:$4 sm:$0xff]
      %v489 = vld [vmem:[%s456] ss:$4 sm:$0xff]
      %v491 = vld [vmem:[%s459] ss:$4 sm:$0xff]
      %v493 = vunpack.i.l.s16 %v454
      %v494 = vunpack.i.h.s16 %v454
      %v495 = vunpack.i.l.s16 %v457
      %v496 = vunpack.i.h.s16 %v457
      %v497 = vunpack.i.l.s16 %v460
      %v498 = vunpack.i.l.s16 %v464
      %v499 = vunpack.i.h.s16 %v464
      %v500 = vunpack.i.l.s16 %v467
      %v501 = vunpack.i.h.s16 %v467
      %v502 = vunpack.i.l.s16 %v470
      %v503 = vunpack.i.l.s16 %v473
      %v504 = vunpack.i.h.s16 %v473
      %v505 = vunpack.i.l.s16 %v475
      %v506 = vunpack.i.h.s16 %v475
      %v507 = vunpack.i.l.s16 %v477
      %v508 = vunpack.i.l.s16 %v480
      %v509 = vunpack.i.h.s16 %v480
      %v510 = vunpack.i.l.s16 %v482
      %v511 = vunpack.i.h.s16 %v482
      %v512 = vunpack.i.l.s16 %v484
      %v513 = vunpack.i.l.s16 %v487
      %v514 = vunpack.i.h.s16 %v487
      %v515 = vunpack.i.l.s16 %v489
      %v516 = vunpack.i.h.s16 %v489
      %v517 = vunpack.i.l.s16 %v491
      %s518 = scalar_lea.vmem %s1, 8
      %v519 = vld [vmem:[%s518] sm:$0xf]
      %v520 = vpack.i.b16 %v494, %v493
      %v521 = vpack.i.b16 %v496, %v495
      %v522 = vpack.i.b16 %v498, %v497
      %v523 = vpack.i.b16 %v500, %v499
      %v524 = vpack.i.b16 %v502, %v501
      %v525 = vpack.i.b16 %v504, %v503
      %v526 = vpack.i.b16 %v506, %v505
      %v527 = vpack.i.b16 %v508, %v507
      %v528 = vpack.i.b16 %v510, %v509
      %v529 = vpack.i.b16 %v512, %v511
      %v530 = vpack.i.b16 %v514, %v513
      %v531 = vpack.i.b16 %v516, %v515
      %534 = vst [vmem:[#allocation1] ss:$9 sm:$0xff] %v520
      %s536 = scalar_lea.vmem [#allocation1], 1
      %537 = vst [vmem:[%s536] ss:$9 sm:$0xff] %v521
      %s539 = scalar_lea.vmem [#allocation1], 2
      %540 = vst [vmem:[%s539] ss:$9 sm:$0xff] %v522
      %s542 = scalar_lea.vmem [#allocation1], 3
      %543 = vst [vmem:[%s542] ss:$9 sm:$0xff] %v523
      %s545 = scalar_lea.vmem [#allocation1], 4
      %546 = vst [vmem:[%s545] ss:$9 sm:$0xff] %v524
      %s548 = scalar_lea.vmem [#allocation1], 5
      %549 = vst [vmem:[%s548] ss:$9 sm:$0xff] %v525
      %s551 = scalar_lea.vmem [#allocation1], 6
      %552 = vst [vmem:[%s551] ss:$9 sm:$0xff] %v526
      %s554 = scalar_lea.vmem [#allocation1], 7
      %555 = vst [vmem:[%s554] ss:$9 sm:$0xff] %v527
      %v556 = vld [vmem:[#allocation1] sm:$0xff]
      %558 = vst [vmem:[#allocation1] ss:$9 sm:$0xff] %v528
      %560 = vst [vmem:[%s536] ss:$9 sm:$0xff] %v529
      %562 = vst [vmem:[%s539] ss:$9 sm:$0xff] %v530
      %564 = vst [vmem:[%s542] ss:$9 sm:$0xff] %v531
      %566 = vst [vmem:[%s545] ss:$9 sm:$0xff] %v517
      %v567 = vld [vmem:[#allocation1] sm:$0xff]
      %v568 = vsel %vm350, %v556, 0
      %v570 = vsel %vm350, %v567, 0
      %v573 = vsel %vm355, %v519, 0
      %575 = vmatpush.bf16.msra.mxu0 0
      %576 = vmatpush.bf16.msra.mxu0 0
      %577 = vmatpush.bf16.msra.mxu0 0
      %578 = vmatpush.bf16.msra.mxu0 0
      %579 = vmatpush.bf16.msra.mxu0 0
      %580 = vmatpush.bf16.msra.mxu0 0
      %581 = vmatpush.bf16.msra.mxu0 0
      %582 = vmatpush.bf16.msra.mxu0 %v573
      %583 = vmatmul.bf16.gmra.mxu0 %v568
      %v584 = vpop.f32.mrf.mxu0
      %v585 = vadd.f32 0.0, %v584
      %v586 = vpop.f32.mrf.mxu0
      %v587 = vadd.f32 0.0, %v586
      %588 = vmatmul.bf16.gmra.mxu0 %v570
      %v589 = vpop.f32.mrf.mxu0
      %v590 = vadd.f32 0.0, %v589
      %v591 = vpop.f32.mrf.mxu0
      %v592 = vadd.f32 0.0, %v591
      %593 = vdwg.mxu0
      %v594 = vadd.f32 %v443, %v585
      %v595 = vadd.f32 %v445, %v587
      %v596 = vadd.f32 %v448, %v590
      %v597 = vadd.f32 %v450, %v592
      %v599 = vrot.slane %v204, 3
      %v602 = vsel %vm216, %v204, %v599
      %v604 = vsel %vm221, %v204, %v599
      %v606 = vrot.slane %v604, 1
      %v607 = vsel %vm225, %v204, %v599
      %v609 = vrot.slane %v607, 2
      %v610 = vunpack.i.l.s16 %v602
      %v611 = vunpack.i.h.s16 %v602
      %v612 = vunpack.i.l.s16 %v606
      %v613 = vunpack.i.h.s16 %v606
      %v614 = vunpack.i.l.s16 %v609
      %s615 = scalar_lea.vmem %s1, 12
      %v616 = vld [vmem:[%s615] sm:$0xf]
      %v617 = vpack.i.b16 %v275, %v274
      %v618 = vpack.i.b16 %v279, %v278
      %v619 = vpack.i.b16 %v285, %v284
      %v620 = vpack.i.b16 %v289, %v288
      %v621 = vpack.i.b16 %v611, %v610
      %v622 = vpack.i.b16 %v613, %v612
      %625 = vst [vmem:[#allocation1] ss:$9 sm:$0xff] %v617
      %s626 = scalar_lea.vmem [#allocation1], 1
      %627 = vst [vmem:[%s626] ss:$9 sm:$0xff] %v305
      %s629 = scalar_lea.vmem [#allocation1], 2
      %630 = vst [vmem:[%s629] ss:$9 sm:$0xff] %v618
      %s631 = scalar_lea.vmem [#allocation1], 3
      %632 = vst [vmem:[%s631] ss:$9 sm:$0xff] %v307
      %s633 = scalar_lea.vmem [#allocation1], 4
      %634 = vst [vmem:[%s633] ss:$9 sm:$0xff] %v308
      %s636 = scalar_lea.vmem [#allocation1], 5
      %637 = vst [vmem:[%s636] ss:$9 sm:$0xff] %v619
      %s638 = scalar_lea.vmem [#allocation1], 6
      %639 = vst [vmem:[%s638] ss:$9 sm:$0xff] %v310
      %s641 = scalar_lea.vmem [#allocation1], 7
      %642 = vst [vmem:[%s641] ss:$9 sm:$0xff] %v620
      %v643 = vld [vmem:[#allocation1] sm:$0xff]
      %644 = vst [vmem:[#allocation1] ss:$9 sm:$0xff] %v312
      %645 = vst [vmem:[%s626] ss:$9 sm:$0xff] %v313
      %647 = vst [vmem:[%s629] ss:$9 sm:$0xff] %v621
      %649 = vst [vmem:[%s631] ss:$9 sm:$0xff] %v622
      %651 = vst [vmem:[%s633] ss:$9 sm:$0xff] %v614
      %v652 = vld [vmem:[#allocation1] sm:$0xff]
      %v653 = vsel %vm350, %v643, 0
      %v655 = vsel %vm350, %v652, 0
      %v658 = vsel %vm355, %v616, 0
      %660 = vmatpush.bf16.msra.mxu0 0
      %661 = vmatpush.bf16.msra.mxu0 0
      %662 = vmatpush.bf16.msra.mxu0 0
      %663 = vmatpush.bf16.msra.mxu0 0
      %664 = vmatpush.bf16.msra.mxu0 0
      %665 = vmatpush.bf16.msra.mxu0 0
      %666 = vmatpush.bf16.msra.mxu0 0
      %667 = vmatpush.bf16.msra.mxu0 %v658
      %668 = vmatmul.bf16.gmra.mxu0 %v653
      %v669 = vpop.f32.mrf.mxu0
      %v670 = vadd.f32 0.0, %v669
      %v671 = vpop.f32.mrf.mxu0
      %v672 = vadd.f32 0.0, %v671
      %673 = vmatmul.bf16.gmra.mxu0 %v655
      %v674 = vpop.f32.mrf.mxu0
      %v675 = vadd.f32 0.0, %v674
      %v676 = vpop.f32.mrf.mxu0
      %v677 = vadd.f32 0.0, %v676
      %678 = vdwg.mxu0
      %v679 = vadd.f32 %v594, %v670
      %v680 = vadd.f32 %v595, %v672
      %v681 = vadd.f32 %v596, %v675
      %v682 = vadd.f32 %v597, %v677
      %v683 = vunpack.i.h.s16 %v609
      %s684 = scalar_lea.vmem %s1, 16
      %v685 = vld [vmem:[%s684] sm:$0xf]
      %v686 = vpack.i.b16 %v280, %v296
      %v687 = vpack.i.b16 %v297, %v283
      %v688 = vpack.i.b16 %v290, %v298
      %v689 = vpack.i.b16 %v299, %v293
      %v690 = vpack.i.b16 %v612, %v611
      %v691 = vpack.i.b16 %v614, %v613
      %693 = vst [vmem:[#allocation1] ss:$9 sm:$0xff] %v381
      %s694 = scalar_lea.vmem [#allocation1], 1
      %695 = vst [vmem:[%s694] ss:$9 sm:$0xff] %v382
      %s697 = scalar_lea.vmem [#allocation1], 2
      %698 = vst [vmem:[%s697] ss:$9 sm:$0xff] %v686
      %s699 = scalar_lea.vmem [#allocation1], 3
      %700 = vst [vmem:[%s699] ss:$9 sm:$0xff] %v384
      %s702 = scalar_lea.vmem [#allocation1], 4
      %703 = vst [vmem:[%s702] ss:$9 sm:$0xff] %v687
      %s704 = scalar_lea.vmem [#allocation1], 5
      %705 = vst [vmem:[%s704] ss:$9 sm:$0xff] %v386
      %s706 = scalar_lea.vmem [#allocation1], 6
      %707 = vst [vmem:[%s706] ss:$9 sm:$0xff] %v387
      %s709 = scalar_lea.vmem [#allocation1], 7
      %710 = vst [vmem:[%s709] ss:$9 sm:$0xff] %v688
      %v711 = vld [vmem:[#allocation1] sm:$0xff]
      %712 = vst [vmem:[#allocation1] ss:$9 sm:$0xff] %v389
      %714 = vst [vmem:[%s694] ss:$9 sm:$0xff] %v689
      %716 = vst [vmem:[%s697] ss:$9 sm:$0xff] %v690
      %718 = vst [vmem:[%s699] ss:$9 sm:$0xff] %v691
      %720 = vst [vmem:[%s702] ss:$9 sm:$0xff] %v683
      %v721 = vld [vmem:[#allocation1] sm:$0xff]
      %v722 = vsel %vm350, %v711, 0
      %v724 = vsel %vm350, %v721, 0
      %v727 = vsel %vm355, %v685, 0
      %729 = vmatpush.bf16.msra.mxu0 0
      %730 = vmatpush.bf16.msra.mxu0 0
      %731 = vmatpush.bf16.msra.mxu0 0
      %732 = vmatpush.bf16.msra.mxu0 0
      %733 = vmatpush.bf16.msra.mxu0 0
      %734 = vmatpush.bf16.msra.mxu0 0
      %735 = vmatpush.bf16.msra.mxu0 0
      %736 = vmatpush.bf16.msra.mxu0 %v727
      %737 = vmatmul.bf16.gmra.mxu0 %v722
      %v738 = vpop.f32.mrf.mxu0
      %v739 = vadd.f32 0.0, %v738
      %v740 = vpop.f32.mrf.mxu0
      %v741 = vadd.f32 0.0, %v740
      %742 = vmatmul.bf16.gmra.mxu0 %v724
      %v743 = vpop.f32.mrf.mxu0
      %v744 = vadd.f32 0.0, %v743
      %v745 = vpop.f32.mrf.mxu0
      %v746 = vadd.f32 0.0, %v745
      %747 = vdwg.mxu0
      %v748 = vadd.f32 %v679, %v739
      %v749 = vadd.f32 %v680, %v741
      %v750 = vadd.f32 %v681, %v744
      %v751 = vadd.f32 %v682, %v746
      %752 = vst [vmem:[#allocation1] sm:$0xff] %v200
      %s753 = scalar_lea.vmem [#allocation1], 1
      %v754 = vld [vmem:[%s753] ss:$4 sm:$0xff]
      %s756 = scalar_lea.vmem [#allocation1], 2
      %v757 = vld [vmem:[%s756] ss:$4 sm:$0xff]
      %s759 = scalar_lea.vmem [#allocation1], 3
      %v760 = vld [vmem:[%s759] ss:$4 sm:$0xff]
      %762 = vst [vmem:[#allocation1 + $0x20] sm:$0xff] %v201
      %s763 = scalar_lea.vmem [#allocation1], 33
      %v764 = vld [vmem:[%s763] ss:$4 sm:$0xff]
      %s766 = scalar_lea.vmem [#allocation1], 34
      %v767 = vld [vmem:[%s766] ss:$4 sm:$0xff]
      %s769 = scalar_lea.vmem [#allocation1], 35
      %v770 = vld [vmem:[%s769] ss:$4 sm:$0xff]
      %772 = vst [vmem:[#allocation1] sm:$0xff] %v202
      %v773 = vld [vmem:[%s753] ss:$4 sm:$0xff]
      %v775 = vld [vmem:[%s756] ss:$4 sm:$0xff]
      %v777 = vld [vmem:[%s759] ss:$4 sm:$0xff]
      %779 = vst [vmem:[#allocation1 + $0x20] sm:$0xff] %v203
      %v780 = vld [vmem:[%s763] ss:$4 sm:$0xff]
      %v782 = vld [vmem:[%s766] ss:$4 sm:$0xff]
      %v784 = vld [vmem:[%s769] ss:$4 sm:$0xff]
      %786 = vst [vmem:[#allocation1] sm:$0xff] %v204
      %v787 = vld [vmem:[%s753] ss:$4 sm:$0xff]
      %v789 = vld [vmem:[%s756] ss:$4 sm:$0xff]
      %v791 = vld [vmem:[%s759] ss:$4 sm:$0xff]
      %v793 = vunpack.i.l.s16 %v754
      %v794 = vunpack.i.h.s16 %v754
      %v795 = vunpack.i.l.s16 %v757
      %v796 = vunpack.i.h.s16 %v757
      %v797 = vunpack.i.l.s16 %v760
      %v798 = vunpack.i.l.s16 %v764
      %v799 = vunpack.i.h.s16 %v764
      %v800 = vunpack.i.l.s16 %v767
      %v801 = vunpack.i.h.s16 %v767
      %v802 = vunpack.i.l.s16 %v770
      %v803 = vunpack.i.l.s16 %v773
      %v804 = vunpack.i.h.s16 %v773
      %v805 = vunpack.i.l.s16 %v775
      %v806 = vunpack.i.h.s16 %v775
      %v807 = vunpack.i.l.s16 %v777
      %v808 = vunpack.i.l.s16 %v780
      %v809 = vunpack.i.h.s16 %v780
      %v810 = vunpack.i.l.s16 %v782
      %v811 = vunpack.i.h.s16 %v782
      %v812 = vunpack.i.l.s16 %v784
      %v813 = vunpack.i.l.s16 %v787
      %v814 = vunpack.i.h.s16 %v787
      %v815 = vunpack.i.l.s16 %v789
      %v816 = vunpack.i.h.s16 %v789
      %v817 = vunpack.i.l.s16 %v791
      %s818 = scalar_lea.vmem %s1, 20
      %v819 = vld [vmem:[%s818] sm:$0xf]
      %v820 = vpack.i.b16 %v794, %v793
      %v821 = vpack.i.b16 %v796, %v795
      %v822 = vpack.i.b16 %v798, %v797
      %v823 = vpack.i.b16 %v800, %v799
      %v824 = vpack.i.b16 %v802, %v801
      %v825 = vpack.i.b16 %v804, %v803
      %v826 = vpack.i.b16 %v806, %v805
      %v827 = vpack.i.b16 %v808, %v807
      %v828 = vpack.i.b16 %v810, %v809
      %v829 = vpack.i.b16 %v812, %v811
      %v830 = vpack.i.b16 %v814, %v813
      %v831 = vpack.i.b16 %v816, %v815
      %834 = vst [vmem:[#allocation1] ss:$9 sm:$0xff] %v820
      %s836 = scalar_lea.vmem [#allocation1], 1
      %837 = vst [vmem:[%s836] ss:$9 sm:$0xff] %v821
      %s839 = scalar_lea.vmem [#allocation1], 2
      %840 = vst [vmem:[%s839] ss:$9 sm:$0xff] %v822
      %s842 = scalar_lea.vmem [#allocation1], 3
      %843 = vst [vmem:[%s842] ss:$9 sm:$0xff] %v823
      %s845 = scalar_lea.vmem [#allocation1], 4
      %846 = vst [vmem:[%s845] ss:$9 sm:$0xff] %v824
      %s848 = scalar_lea.vmem [#allocation1], 5
      %849 = vst [vmem:[%s848] ss:$9 sm:$0xff] %v825
      %s851 = scalar_lea.vmem [#allocation1], 6
      %852 = vst [vmem:[%s851] ss:$9 sm:$0xff] %v826
      %s854 = scalar_lea.vmem [#allocation1], 7
      %855 = vst [vmem:[%s854] ss:$9 sm:$0xff] %v827
      %v856 = vld [vmem:[#allocation1] sm:$0xff]
      %858 = vst [vmem:[#allocation1] ss:$9 sm:$0xff] %v828
      %860 = vst [vmem:[%s836] ss:$9 sm:$0xff] %v829
      %862 = vst [vmem:[%s839] ss:$9 sm:$0xff] %v830
      %864 = vst [vmem:[%s842] ss:$9 sm:$0xff] %v831
      %866 = vst [vmem:[%s845] ss:$9 sm:$0xff] %v817
      %v867 = vld [vmem:[#allocation1] sm:$0xff]
      %v868 = vsel %vm350, %v856, 0
      %v870 = vsel %vm350, %v867, 0
      %v873 = vsel %vm355, %v819, 0
      %875 = vmatpush.bf16.msra.mxu0 0
      %876 = vmatpush.bf16.msra.mxu0 0
      %877 = vmatpush.bf16.msra.mxu0 0
      %878 = vmatpush.bf16.msra.mxu0 0
      %879 = vmatpush.bf16.msra.mxu0 0
      %880 = vmatpush.bf16.msra.mxu0 0
      %881 = vmatpush.bf16.msra.mxu0 0
      %882 = vmatpush.bf16.msra.mxu0 %v873
      %883 = vmatmul.bf16.gmra.mxu0 %v868
      %v884 = vpop.f32.mrf.mxu0
      %v885 = vadd.f32 0.0, %v884
      %v886 = vpop.f32.mrf.mxu0
      %v887 = vadd.f32 0.0, %v886
      %888 = vmatmul.bf16.gmra.mxu0 %v870
      %v889 = vpop.f32.mrf.mxu0
      %v890 = vadd.f32 0.0, %v889
      %v891 = vpop.f32.mrf.mxu0
      %v892 = vadd.f32 0.0, %v891
      %893 = vdwg.mxu0
      %v894 = vadd.f32 %v748, %v885
      %v895 = vadd.f32 %v749, %v887
      %v896 = vadd.f32 %v750, %v890
      %v897 = vadd.f32 %v751, %v892
      %v899 = vrot.slane %v205, 3
      %v902 = vsel %vm216, %v205, %v899
      %v904 = vsel %vm221, %v205, %v899
      %v906 = vrot.slane %v904, 1
      %v907 = vsel %vm225, %v205, %v899
      %v909 = vrot.slane %v907, 2
      %v910 = vunpack.i.l.s16 %v902
      %v911 = vunpack.i.h.s16 %v902
      %v912 = vunpack.i.l.s16 %v906
      %v913 = vunpack.i.h.s16 %v906
      %v914 = vunpack.i.l.s16 %v909
      %s915 = scalar_lea.vmem %s1, 24
      %v916 = vld [vmem:[%s915] sm:$0xf]
      %v917 = vpack.i.b16 %v610, %v293
      %v918 = vpack.i.b16 %v911, %v910
      %v919 = vpack.i.b16 %v913, %v912
      %921 = vst [vmem:[#allocation1] ss:$9 sm:$0xff] %v383
      %s922 = scalar_lea.vmem [#allocation1], 1
      %923 = vst [vmem:[%s922] ss:$9 sm:$0xff] %v384
      %s924 = scalar_lea.vmem [#allocation1], 2
      %925 = vst [vmem:[%s924] ss:$9 sm:$0xff] %v385
      %s926 = scalar_lea.vmem [#allocation1], 3
      %927 = vst [vmem:[%s926] ss:$9 sm:$0xff] %v386
      %s928 = scalar_lea.vmem [#allocation1], 4
      %929 = vst [vmem:[%s928] ss:$9 sm:$0xff] %v387
      %s930 = scalar_lea.vmem [#allocation1], 5
      %931 = vst [vmem:[%s930] ss:$9 sm:$0xff] %v388
      %s932 = scalar_lea.vmem [#allocation1], 6
      %933 = vst [vmem:[%s932] ss:$9 sm:$0xff] %v389
      %s935 = scalar_lea.vmem [#allocation1], 7
      %936 = vst [vmem:[%s935] ss:$9 sm:$0xff] %v917
      %v937 = vld [vmem:[#allocation1] sm:$0xff]
      %938 = vst [vmem:[#allocation1] ss:$9 sm:$0xff] %v690
      %939 = vst [vmem:[%s922] ss:$9 sm:$0xff] %v691
      %941 = vst [vmem:[%s924] ss:$9 sm:$0xff] %v918
      %943 = vst [vmem:[%s926] ss:$9 sm:$0xff] %v919
      %945 = vst [vmem:[%s928] ss:$9 sm:$0xff] %v914
      %v946 = vld [vmem:[#allocation1] sm:$0xff]
      %v947 = vsel %vm350, %v937, 0
      %v949 = vsel %vm350, %v946, 0
      %v952 = vsel %vm355, %v916, 0
      %954 = vmatpush.bf16.msra.mxu0 0
      %955 = vmatpush.bf16.msra.mxu0 0
      %956 = vmatpush.bf16.msra.mxu0 0
      %957 = vmatpush.bf16.msra.mxu0 0
      %958 = vmatpush.bf16.msra.mxu0 0
      %959 = vmatpush.bf16.msra.mxu0 0
      %960 = vmatpush.bf16.msra.mxu0 0
      %961 = vmatpush.bf16.msra.mxu0 %v952
      %962 = vmatmul.bf16.gmra.mxu0 %v947
      %v963 = vpop.f32.mrf.mxu0
      %v964 = vadd.f32 0.0, %v963
      %v965 = vpop.f32.mrf.mxu0
      %v966 = vadd.f32 0.0, %v965
      %967 = vmatmul.bf16.gmra.mxu0 %v949
      %v968 = vpop.f32.mrf.mxu0
      %v969 = vadd.f32 0.0, %v968
      %v970 = vpop.f32.mrf.mxu0
      %v971 = vadd.f32 0.0, %v970
      %972 = vdwg.mxu0
      %v973 = vadd.f32 %v894, %v964
      %v974 = vadd.f32 %v895, %v966
      %v975 = vadd.f32 %v896, %v969
      %v976 = vadd.f32 %v897, %v971
      %v977 = vunpack.i.h.s16 %v909
      %s978 = scalar_lea.vmem %s1, 28
      %v979 = vld [vmem:[%s978] sm:$0xf]
      %v980 = vpack.i.b16 %v611, %v299
      %v981 = vpack.i.b16 %v683, %v614
      %v982 = vpack.i.b16 %v912, %v911
      %v983 = vpack.i.b16 %v914, %v913
      %985 = vst [vmem:[#allocation1] ss:$9 sm:$0xff] %v307
      %s986 = scalar_lea.vmem [#allocation1], 1
      %987 = vst [vmem:[%s986] ss:$9 sm:$0xff] %v308
      %s988 = scalar_lea.vmem [#allocation1], 2
      %989 = vst [vmem:[%s988] ss:$9 sm:$0xff] %v309
      %s990 = scalar_lea.vmem [#allocation1], 3
      %991 = vst [vmem:[%s990] ss:$9 sm:$0xff] %v310
      %s992 = scalar_lea.vmem [#allocation1], 4
      %993 = vst [vmem:[%s992] ss:$9 sm:$0xff] %v311
      %s994 = scalar_lea.vmem [#allocation1], 5
      %995 = vst [vmem:[%s994] ss:$9 sm:$0xff] %v312
      %s996 = scalar_lea.vmem [#allocation1], 6
      %997 = vst [vmem:[%s996] ss:$9 sm:$0xff] %v313
      %s999 = scalar_lea.vmem [#allocation1], 7
      %1000 = vst [vmem:[%s999] ss:$9 sm:$0xff] %v980
      %v1001 = vld [vmem:[#allocation1] sm:$0xff]
      %1002 = vst [vmem:[#allocation1] ss:$9 sm:$0xff] %v622
      %1004 = vst [vmem:[%s986] ss:$9 sm:$0xff] %v981
      %1006 = vst [vmem:[%s988] ss:$9 sm:$0xff] %v982
      %1008 = vst [vmem:[%s990] ss:$9 sm:$0xff] %v983
      %1010 = vst [vmem:[%s992] ss:$9 sm:$0xff] %v977
      %v1011 = vld [vmem:[#allocation1] sm:$0xff]
      %v1012 = vsel %vm350, %v1001, 0
      %v1014 = vsel %vm350, %v1011, 0
      %v1017 = vsel %vm355, %v979, 0
      %1019 = vmatpush.bf16.msra.mxu0 0
      %1020 = vmatpush.bf16.msra.mxu0 0
      %1021 = vmatpush.bf16.msra.mxu0 0
      %1022 = vmatpush.bf16.msra.mxu0 0
      %1023 = vmatpush.bf16.msra.mxu0 0
      %1024 = vmatpush.bf16.msra.mxu0 0
      %1025 = vmatpush.bf16.msra.mxu0 0
      %1026 = vmatpush.bf16.msra.mxu0 %v1017
      %1027 = vmatmul.bf16.gmra.mxu0 %v1012
      %v1028 = vpop.f32.mrf.mxu0
      %v1029 = vadd.f32 0.0, %v1028
      %v1030 = vpop.f32.mrf.mxu0
      %v1031 = vadd.f32 0.0, %v1030
      %1032 = vmatmul.bf16.gmra.mxu0 %v1014
      %v1033 = vpop.f32.mrf.mxu0
      %v1034 = vadd.f32 0.0, %v1033
      %v1035 = vpop.f32.mrf.mxu0
      %v1036 = vadd.f32 0.0, %v1035
      %1037 = vdwg.mxu0
      %v1038 = vadd.f32 %v973, %v1029
      %v1039 = vadd.f32 %v974, %v1031
      %v1040 = vadd.f32 %v975, %v1034
      %v1041 = vadd.f32 %v976, %v1036
      %1042 = vst [vmem:[#allocation1] sm:$0xff] %v201
      %s1043 = scalar_lea.vmem [#allocation1], 1
      %v1044 = vld [vmem:[%s1043] ss:$4 sm:$0xff]
      %s1046 = scalar_lea.vmem [#allocation1], 2
      %v1047 = vld [vmem:[%s1046] ss:$4 sm:$0xff]
      %s1049 = scalar_lea.vmem [#allocation1], 3
      %v1050 = vld [vmem:[%s1049] ss:$4 sm:$0xff]
      %1052 = vst [vmem:[#allocation1 + $0x20] sm:$0xff] %v202
      %s1053 = scalar_lea.vmem [#allocation1], 33
      %v1054 = vld [vmem:[%s1053] ss:$4 sm:$0xff]
      %s1056 = scalar_lea.vmem [#allocation1], 34
      %v1057 = vld [vmem:[%s1056] ss:$4 sm:$0xff]
      %s1059 = scalar_lea.vmem [#allocation1], 35
      %v1060 = vld [vmem:[%s1059] ss:$4 sm:$0xff]
      %1062 = vst [vmem:[#allocation1] sm:$0xff] %v203
      %v1063 = vld [vmem:[%s1043] ss:$4 sm:$0xff]
      %v1065 = vld [vmem:[%s1046] ss:$4 sm:$0xff]
      %v1067 = vld [vmem:[%s1049] ss:$4 sm:$0xff]
      %1069 = vst [vmem:[#allocation1 + $0x20] sm:$0xff] %v204
      %v1070 = vld [vmem:[%s1053] ss:$4 sm:$0xff]
      %v1072 = vld [vmem:[%s1056] ss:$4 sm:$0xff]
      %v1074 = vld [vmem:[%s1059] ss:$4 sm:$0xff]
      %1076 = vst [vmem:[#allocation1] sm:$0xff] %v205
      %v1077 = vld [vmem:[%s1043] ss:$4 sm:$0xff]
      %v1079 = vld [vmem:[%s1046] ss:$4 sm:$0xff]
      %v1081 = vld [vmem:[%s1049] ss:$4 sm:$0xff]
      %v1083 = vunpack.i.l.s16 %v1044
      %v1084 = vunpack.i.h.s16 %v1044
      %v1085 = vunpack.i.l.s16 %v1047
      %v1086 = vunpack.i.h.s16 %v1047
      %v1087 = vunpack.i.l.s16 %v1050
      %v1088 = vunpack.i.l.s16 %v1054
      %v1089 = vunpack.i.h.s16 %v1054
      %v1090 = vunpack.i.l.s16 %v1057
      %v1091 = vunpack.i.h.s16 %v1057
      %v1092 = vunpack.i.l.s16 %v1060
      %v1093 = vunpack.i.l.s16 %v1063
      %v1094 = vunpack.i.h.s16 %v1063
      %v1095 = vunpack.i.l.s16 %v1065
      %v1096 = vunpack.i.h.s16 %v1065
      %v1097 = vunpack.i.l.s16 %v1067
      %v1098 = vunpack.i.l.s16 %v1070
      %v1099 = vunpack.i.h.s16 %v1070
      %v1100 = vunpack.i.l.s16 %v1072
      %v1101 = vunpack.i.h.s16 %v1072
      %v1102 = vunpack.i.l.s16 %v1074
      %v1103 = vunpack.i.l.s16 %v1077
      %v1104 = vunpack.i.h.s16 %v1077
      %v1105 = vunpack.i.l.s16 %v1079
      %v1106 = vunpack.i.h.s16 %v1079
      %v1107 = vunpack.i.l.s16 %v1081
      %s1108 = scalar_lea.vmem %s1, 32
      %v1109 = vld [vmem:[%s1108] sm:$0xf]
      %v1110 = vpack.i.b16 %v1084, %v1083
      %v1111 = vpack.i.b16 %v1086, %v1085
      %v1112 = vpack.i.b16 %v1088, %v1087
      %v1113 = vpack.i.b16 %v1090, %v1089
      %v1114 = vpack.i.b16 %v1092, %v1091
      %v1115 = vpack.i.b16 %v1094, %v1093
      %v1116 = vpack.i.b16 %v1096, %v1095
      %v1117 = vpack.i.b16 %v1098, %v1097
      %v1118 = vpack.i.b16 %v1100, %v1099
      %v1119 = vpack.i.b16 %v1102, %v1101
      %v1120 = vpack.i.b16 %v1104, %v1103
      %v1121 = vpack.i.b16 %v1106, %v1105
      %1124 = vst [vmem:[#allocation1] ss:$9 sm:$0xff] %v1110
      %s1126 = scalar_lea.vmem [#allocation1], 1
      %1127 = vst [vmem:[%s1126] ss:$9 sm:$0xff] %v1111
      %s1129 = scalar_lea.vmem [#allocation1], 2
      %1130 = vst [vmem:[%s1129] ss:$9 sm:$0xff] %v1112
      %s1132 = scalar_lea.vmem [#allocation1], 3
      %1133 = vst [vmem:[%s1132] ss:$9 sm:$0xff] %v1113
      %s1135 = scalar_lea.vmem [#allocation1], 4
      %1136 = vst [vmem:[%s1135] ss:$9 sm:$0xff] %v1114
      %s1138 = scalar_lea.vmem [#allocation1], 5
      %1139 = vst [vmem:[%s1138] ss:$9 sm:$0xff] %v1115
      %s1141 = scalar_lea.vmem [#allocation1], 6
      %1142 = vst [vmem:[%s1141] ss:$9 sm:$0xff] %v1116
      %s1144 = scalar_lea.vmem [#allocation1], 7
      %1145 = vst [vmem:[%s1144] ss:$9 sm:$0xff] %v1117
      %v1146 = vld [vmem:[#allocation1] sm:$0xff]
      %1148 = vst [vmem:[#allocation1] ss:$9 sm:$0xff] %v1118
      %1150 = vst [vmem:[%s1126] ss:$9 sm:$0xff] %v1119
      %1152 = vst [vmem:[%s1129] ss:$9 sm:$0xff] %v1120
      %1154 = vst [vmem:[%s1132] ss:$9 sm:$0xff] %v1121
      %1156 = vst [vmem:[%s1135] ss:$9 sm:$0xff] %v1107
      %v1157 = vld [vmem:[#allocation1] sm:$0xff]
      %v1158 = vsel %vm350, %v1146, 0
      %v1160 = vsel %vm350, %v1157, 0
      %v1163 = vsel %vm355, %v1109, 0
      %1165 = vmatpush.bf16.msra.mxu0 0
      %1166 = vmatpush.bf16.msra.mxu0 0
      %1167 = vmatpush.bf16.msra.mxu0 0
      %1168 = vmatpush.bf16.msra.mxu0 0
      %1169 = vmatpush.bf16.msra.mxu0 0
      %1170 = vmatpush.bf16.msra.mxu0 0
      %1171 = vmatpush.bf16.msra.mxu0 0
      %1172 = vmatpush.bf16.msra.mxu0 %v1163
      %1173 = vmatmul.bf16.gmra.mxu0 %v1158
      %v1174 = vpop.f32.mrf.mxu0
      %v1175 = vadd.f32 0.0, %v1174
      %v1176 = vpop.f32.mrf.mxu0
      %v1177 = vadd.f32 0.0, %v1176
      %1178 = vmatmul.bf16.gmra.mxu0 %v1160
      %v1179 = vpop.f32.mrf.mxu0
      %v1180 = vadd.f32 0.0, %v1179
      %v1181 = vpop.f32.mrf.mxu0
      %v1182 = vadd.f32 0.0, %v1181
      %1183 = vdwg.mxu0
      %v1184 = vadd.f32 %v1038, %v1175
      %v1185 = vadd.f32 %v1039, %v1177
      %v1186 = vadd.f32 %v1040, %v1180
      %v1187 = vadd.f32 %v1041, %v1182
      %v1188 = vld [vmem:[%s2] sm:$0x1]
      %v1190 = vperm.slane %v1188, 0
      %v1192 = vmul.f32 %v1184, %v1190
      %v1193 = vmul.f32 %v1185, %v1190
      %v1194 = vmul.f32 %v1186, %v1190
      %v1195 = vmul.f32 %v1187, %v1190
      %v1196 = vld [vmem:[%s3] sm:$0x1]
      %v1198 = vperm.slane %v1196, 0
      %v1200 = vadd.f32 %v1192, %v1198
      %v1201 = vadd.f32 %v1193, %v1198
      %v1202 = vadd.f32 %v1194, %v1198
      %v1203 = vadd.f32 %v1195, %v1198
      %v1204 = vmax.f32 %v1200, 0.0
      %v1205 = vmax.f32 %v1201, 0.0
      %v1206 = vmax.f32 %v1202, 0.0
      %v1207 = vmax.f32 %v1203, 0.0
      %v1212 = vrot.slane %v1204, 1
      %v1213 = vrot.slane %v1204, 2
      %v1214 = vrot.slane %v1204, 3
      %v1215 = vrot.slane %v1204, 4
      %v1216 = vrot.slane %v1204, 5
      %v1217 = vrot.slane %v1204, 6
      %v1218 = vrot.slane %v1204, 7
      %v1219 = vrot.slane %v1205, 1
      %v1220 = vrot.slane %v1205, 2
      %v1221 = vrot.slane %v1205, 3
      %v1222 = vrot.slane %v1205, 4
      %v1223 = vrot.slane %v1205, 5
      %v1224 = vrot.slane %v1205, 6
      %v1225 = vrot.slane %v1205, 7
      %v1226 = vrot.slane %v1206, 1
      %v1227 = vrot.slane %v1206, 2
      %v1228 = vrot.slane %v1206, 3
      %v1229 = vrot.slane %v1206, 4
      %v1230 = vrot.slane %v1206, 5
      %v1231 = vrot.slane %v1206, 6
      %v1232 = vrot.slane %v1206, 7
      %1233 = vst [vmem:[#allocation1] ss:$9 sm:$0xff] %v1204
      %s1234 = scalar_lea.vmem [#allocation1], 1
      %1235 = vst [vmem:[%s1234] ss:$9 sm:$0xff] %v1212
      %s1236 = scalar_lea.vmem [#allocation1], 2
      %1237 = vst [vmem:[%s1236] ss:$9 sm:$0xff] %v1213
      %s1238 = scalar_lea.vmem [#allocation1], 3
      %1239 = vst [vmem:[%s1238] ss:$9 sm:$0xff] %v1214
      %s1240 = scalar_lea.vmem [#allocation1], 4
      %1241 = vst [vmem:[%s1240] ss:$9 sm:$0xff] %v1215
      %v1242 = vld [vmem:[#allocation1] sm:$0xff]
      %1243 = vst [vmem:[#allocation1] ss:$9 sm:$0xff] %v1216
      %1244 = vst [vmem:[%s1234] ss:$9 sm:$0xff] %v1217
      %1245 = vst [vmem:[%s1236] ss:$9 sm:$0xff] %v1218
      %1246 = vst [vmem:[%s1238] ss:$9 sm:$0xff] %v1205
      %1247 = vst [vmem:[%s1240] ss:$9 sm:$0xff] %v1219
      %v1248 = vld [vmem:[#allocation1] sm:$0xff]
      %1249 = vst [vmem:[#allocation1] ss:$9 sm:$0xff] %v1220
      %1250 = vst [vmem:[%s1234] ss:$9 sm:$0xff] %v1221
      %1251 = vst [vmem:[%s1236] ss:$9 sm:$0xff] %v1222
      %1252 = vst [vmem:[%s1238] ss:$9 sm:$0xff] %v1223
      %1253 = vst [vmem:[%s1240] ss:$9 sm:$0xff] %v1224
      %v1254 = vld [vmem:[#allocation1] sm:$0xff]
      %1255 = vst [vmem:[#allocation1] ss:$9 sm:$0xff] %v1225
      %1256 = vst [vmem:[%s1234] ss:$9 sm:$0xff] %v1206
      %1257 = vst [vmem:[%s1236] ss:$9 sm:$0xff] %v1226
      %1258 = vst [vmem:[%s1238] ss:$9 sm:$0xff] %v1227
      %1259 = vst [vmem:[%s1240] ss:$9 sm:$0xff] %v1228
      %v1260 = vld [vmem:[#allocation1] sm:$0xff]
      %1261 = vst [vmem:[#allocation1] ss:$9 sm:$0xff] %v1229
      %1262 = vst [vmem:[%s1234] ss:$9 sm:$0xff] %v1230
      %1263 = vst [vmem:[%s1236] ss:$9 sm:$0xff] %v1231
      %1264 = vst [vmem:[%s1238] ss:$9 sm:$0xff] %v1232
      %1265 = vst [vmem:[%s1240] ss:$9 sm:$0xff] %v1207
      %v1266 = vld [vmem:[#allocation1] sm:$0xff]
      %v1272 = vpack.c.bf16 %v1242, %v1242
      %v1273 = vpack.c.bf16 %v1248, %v1248
      %v1274 = vpack.c.bf16 %v1254, %v1254
      %v1275 = vpack.c.bf16 %v1260, %v1260
      %v1276 = vpack.c.bf16 %v1266, %v1266
      %vm1277 = vcmask 124928
      %vm1278 = vsmask.f32 2304
      %vm1279 = vmand %vm1277, %vm1278
      %v1280 = vld [vmem:[%s197] sm:$0x7]
      %v1281 = vsel %vm1279, %v1272, %v1280
      %1282 = vst [vmem:[%s197] sm:$0x7] %v1281
      %v1283 = vld [vmem:[%s197 + $0x4] sm:$0x7]
      %v1284 = vsel %vm1279, %v1273, %v1283
      %1285 = vst [vmem:[%s197 + $0x4] sm:$0x7] %v1284
      %v1286 = vld [vmem:[%s197 + $0x8] sm:$0x7]
      %v1287 = vsel %vm1279, %v1274, %v1286
      %1288 = vst [vmem:[%s197 + $0x8] sm:$0x7] %v1287
      %v1289 = vld [vmem:[%s197 + $0xc] sm:$0x7]
      %v1290 = vsel %vm1279, %v1275, %v1289
      %1291 = vst [vmem:[%s197 + $0xc] sm:$0x7] %v1290
      %v1292 = vld [vmem:[%s197 + $0x10] sm:$0x7]
      %v1293 = vsel %vm1279, %v1276, %v1292
      %1294 = vst [vmem:[%s197 + $0x10] sm:$0x7] %v1293
      %p1295 = scmp.lt.s32.totalorder %s15, 1
      %s1296 = scalar_select %p1295, %s15, 1
      %s1297 = smul.addr %s1296, 5
      %s1298 = smul.addr %s1297, 4
      %s1299 = scalar_lea.vmem %s4, %s1298
      // Predicated region
      $region37: #{a_call__.7} parent=35 // pred_check
        %p1300 = pneg %p122
      $region38: #{a_call__.7} parent=35 // pred_check_branch
        %1302 = sbr.rel (%p1300) target = $region40
      $region39: #{a_call__.7} parent=35 // pred_region
        _
      $region40: #{a_call__.7} parent=35 // pred_fallthru
        _
    $region36: #{a_call__.7} parent=5 // pred_fallthru
      _
    %p1303 = scmp.le.s32.totalorder 2, %s10
    // Predicated region
    $region41: #{a_call__.7} parent=5 // pred_check
      %p1304 = pneg %p1303
    $region42: #{a_call__.7} parent=5 // pred_check_branch
      %1306 = sbr.rel (%p1304) target = $region44
    $region43: #{a_call__.7} parent=5 // pred_region
      %s1307 = ssub.s32 %s10, 2
      // Predicated region
      $region45: #{a_call__.7} parent=43 // pred_check
        %p1308 = pneg %p128
      $region46: #{a_call__.7} parent=43 // pred_check_branch
        %1310 = sbr.rel (%p1308) target = $region48
      $region47: #{a_call__.7} parent=43 // pred_region
        %p1311 = scmp.lt.s32.totalorder %s16, 1
        %s1312 = scalar_select %p1311, %s16, 1
        %s1313 = smul.addr %s1312, 5
        %s1314 = smul.addr %s1313, 4
        %s1315 = scalar_lea.vmem %s4, %s1314
      $region48: #{a_call__.7} parent=43 // pred_fallthru
        _
    $region44: #{a_call__.7} parent=5 // pred_fallthru
      _
  $region6: #{a_call__.7} parent=0 // loop_footer
    %s14 = sadd.s32 1, %s10
  $region7: #{a_call__.7} parent=0 // loop_footer_branch
    %9 = sbr.rel target = $region3
  $region8: #{a_call__.7} parent=0 // loop_exit
    _

// kernel: a_call__.8
$region0: #{a_call__.8}
  #allocation0 [shape = 'u32[]', space=smem, size = 0x4, offset = 0x4, fixed_abs, tag = 'smem constant byte address 0x4 - core index']
  #allocation1 [shape = 'u32[72,128]{1,0:T(1,128)}', space=vmem, size = 0x9000, scoped, tag = 'internal scratch']
  %s0 = inlined_call_operand.vmem [shape: bf16[2,7,7,16], index: 0, kind: input, shape index: {}]
  %s1 = inlined_call_operand.vmem [shape: bf16[9,16,24], index: 1, kind: input, shape index: {}]
  %s2 = inlined_call_operand.vmem [shape: f32[1,24], index: 2, kind: input, shape index: {}]
  %s3 = inlined_call_operand.vmem [shape: f32[1,24], index: 3, kind: input, shape index: {}]
  %s4 = inlined_call_operand.vmem [shape: bf16[2,5,5,24], index: 4, kind: output, shape index: {}]
  %s5 = sld [smem:[#allocation0]]
  $region49: #{a_call__.8} parent=0
    _
  %s7 = ssub.s32 1, %s5
  %s8 = scalar_select 0, %s7, %s5
  loop: start=0, step=1, limit=4
  $region2: #{a_call__.8} parent=0 // loop_pre_header
    _
  $region3: #{a_call__.8} parent=0 // loop_header
    %s10 = sphi 0, %s14
    %p11 = scmp.ge.s32.totalorder %s10, 4
    %s20 = sphi 0, %s22
    %s23 = sphi 0, %s20
    %s24 = sphi 0, %s23
    %s40 = sphi 0, %s24
    %s44 = sphi 0, %s44
    %s46 = sphi 0, %s44
    %s47 = sphi 0, %s46
    %s61 = sphi 0, %s47
    %s65 = sphi 0, %s65
    %s67 = sphi 0, %s65
    %s68 = sphi 0, %s67
    %s82 = sphi 0, %s68
    %s86 = sphi 0, %s86
    %s88 = sphi 0, %s86
    %s89 = sphi 0, %s88
    %s103 = sphi 0, %s89
    %s109 = sphi 0, %s111
    %s112 = sphi 0, %s109
    %s113 = sphi 0, %s112
    %s129 = sphi 0, %s113
  $region4: #{a_call__.8} parent=0 // loop_header_branch
    %13 = sbr.rel (%p11) target = $region8
  $region5: #{a_call__.8} parent=0 // loop_body
    %s15 = ssub.s32 %s10, 1
    %s16 = ssub.s32 %s10, 2
    %s17 = sadd.s32 %s10, 1
    %s18 = ssub.s32 %s10, %s17
    %p19 = scmp.eq.s32.totalorder %s18, 0
    %s21 = sadd.s32 %s20, 1
    %s22 = scalar_select %p19, %s20, %s21
    %p25 = pneg %p19
    %p26 = scmp.eq.s32.totalorder %s10, 1
    %p27 = por %p25, %p26
    %p28 = scmp.ne.s32.totalorder %s20, %s23
    %p29 = scmp.eq.s32.totalorder %s10, 0
    %p30 = por %p28, %p29
    %p31 = scmp.ne.s32.totalorder %s20, %s23
    %p32 = scmp.eq.s32.totalorder %s15, 1
    %p33 = por %p31, %p32
    %p34 = scmp.ne.s32.totalorder %s23, %s24
    %p35 = scmp.eq.s32.totalorder %s15, 0
    %p36 = por %p34, %p35
    %p37 = scmp.ne.s32.totalorder %s23, %s24
    %p38 = scmp.eq.s32.totalorder %s16, 1
    %p39 = por %p37, %p38
    %p41 = scmp.ne.s32.totalorder %s24, %s40
    %p42 = scmp.eq.s32.totalorder %s16, 0
    %p43 = por %p41, %p42
    %s45 = sadd.s32 %s44, 1
    %p48 = scmp.eq.s32.totalorder %s10, 1
    %p49 = scmp.ne.s32.totalorder %s44, %s46
    %p50 = scmp.eq.s32.totalorder %s10, 0
    %p51 = por %p49, %p50
    %p52 = scmp.ne.s32.totalorder %s44, %s46
    %p53 = scmp.eq.s32.totalorder %s15, 1
    %p54 = por %p52, %p53
    %p55 = scmp.ne.s32.totalorder %s46, %s47
    %p56 = scmp.eq.s32.totalorder %s15, 0
    %p57 = por %p55, %p56
    %p58 = scmp.ne.s32.totalorder %s46, %s47
    %p59 = scmp.eq.s32.totalorder %s16, 1
    %p60 = por %p58, %p59
    %p62 = scmp.ne.s32.totalorder %s47, %s61
    %p63 = scmp.eq.s32.totalorder %s16, 0
    %p64 = por %p62, %p63
    %s66 = sadd.s32 %s65, 1
    %p69 = scmp.eq.s32.totalorder %s10, 1
    %p70 = scmp.ne.s32.totalorder %s65, %s67
    %p71 = scmp.eq.s32.totalorder %s10, 0
    %p72 = por %p70, %p71
    %p73 = scmp.ne.s32.totalorder %s65, %s67
    %p74 = scmp.eq.s32.totalorder %s15, 1
    %p75 = por %p73, %p74
    %p76 = scmp.ne.s32.totalorder %s67, %s68
    %p77 = scmp.eq.s32.totalorder %s15, 0
    %p78 = por %p76, %p77
    %p79 = scmp.ne.s32.totalorder %s67, %s68
    %p80 = scmp.eq.s32.totalorder %s16, 1
    %p81 = por %p79, %p80
    %p83 = scmp.ne.s32.totalorder %s68, %s82
    %p84 = scmp.eq.s32.totalorder %s16, 0
    %p85 = por %p83, %p84
    %s87 = sadd.s32 %s86, 1
    %p90 = scmp.eq.s32.totalorder %s10, 1
    %p91 = scmp.ne.s32.totalorder %s86, %s88
    %p92 = scmp.eq.s32.totalorder %s10, 0
    %p93 = por %p91, %p92
    %p94 = scmp.ne.s32.totalorder %s86, %s88
    %p95 = scmp.eq.s32.totalorder %s15, 1
    %p96 = por %p94, %p95
    %p97 = scmp.ne.s32.totalorder %s88, %s89
    %p98 = scmp.eq.s32.totalorder %s15, 0
    %p99 = por %p97, %p98
    %p100 = scmp.ne.s32.totalorder %s88, %s89
    %p101 = scmp.eq.s32.totalorder %s16, 1
    %p102 = por %p100, %p101
    %p104 = scmp.ne.s32.totalorder %s89, %s103
    %p105 = scmp.eq.s32.totalorder %s16, 0
    %p106 = por %p104, %p105
    %s107 = ssub.s32 %s10, %s17
    %p108 = scmp.eq.s32.totalorder %s107, 0
    %s110 = sadd.s32 %s109, 1
    %s111 = scalar_select %p108, %s109, %s110
    %p114 = pneg %p108
    %p115 = scmp.eq.s32.totalorder %s10, 1
    %p116 = por %p114, %p115
    %p117 = scmp.ne.s32.totalorder %s109, %s112
    %p118 = scmp.eq.s32.totalorder %s10, 0
    %p119 = por %p117, %p118
    %p120 = scmp.ne.s32.totalorder %s109, %s112
    %p121 = scmp.eq.s32.totalorder %s15, 1
    %p122 = por %p120, %p121
    %p123 = scmp.ne.s32.totalorder %s112, %s113
    %p124 = scmp.eq.s32.totalorder %s15, 0
    %p125 = por %p123, %p124
    %p126 = scmp.ne.s32.totalorder %s112, %s113
    %p127 = scmp.eq.s32.totalorder %s16, 1
    %p128 = por %p126, %p127
    %p130 = scmp.ne.s32.totalorder %s113, %s129
    %p131 = scmp.eq.s32.totalorder %s16, 0
    %p132 = por %p130, %p131
    %p133 = scmp.le.s32.totalorder 1, %s10
    %p134 = scmp.lt.s32.totalorder %s10, 3
    %p135 = pnand %p133, %p134
    %p136 = pneg %p135
    // Predicated region
    $region9: #{a_call__.8} parent=5 // pred_check
      _
    $region10: #{a_call__.8} parent=5 // pred_check_branch
      %138 = sbr.rel (%p135) target = $region12
    $region11: #{a_call__.8} parent=5 // pred_region
      %s139 = ssub.s32 %s10, 1
      // Predicated region
      $region13: #{a_call__.8} parent=11 // pred_check
        %p140 = pneg %p57
      $region14: #{a_call__.8} parent=11 // pred_check_branch
        %142 = sbr.rel (%p140) target = $region16
      $region15: #{a_call__.8} parent=11 // pred_region
        _
      $region16: #{a_call__.8} parent=11 // pred_fallthru
        _
      // Predicated region
      $region17: #{a_call__.8} parent=11 // pred_check
        %p143 = pneg %p78
      $region18: #{a_call__.8} parent=11 // pred_check_branch
        %145 = sbr.rel (%p143) target = $region20
      $region19: #{a_call__.8} parent=11 // pred_region
        _
      $region20: #{a_call__.8} parent=11 // pred_fallthru
        _
      // Predicated region
      $region21: #{a_call__.8} parent=11 // pred_check
        %p146 = pneg %p99
      $region22: #{a_call__.8} parent=11 // pred_check_branch
        %148 = sbr.rel (%p146) target = $region24
      $region23: #{a_call__.8} parent=11 // pred_region
        _
      $region24: #{a_call__.8} parent=11 // pred_fallthru
        _
    $region12: #{a_call__.8} parent=5 // pred_fallthru
      _
    %p149 = scmp.lt.s32.totalorder %s10, 2
    // Predicated region
    $region25: #{a_call__.8} parent=5 // pred_check
      %p150 = pneg %p149
    $region26: #{a_call__.8} parent=5 // pred_check_branch
      %152 = sbr.rel (%p150) target = $region28
    $region27: #{a_call__.8} parent=5 // pred_region
      // Predicated region
      $region29: #{a_call__.8} parent=27 // pred_check
        %p153 = pneg %p30
      $region30: #{a_call__.8} parent=27 // pred_check_branch
        %155 = sbr.rel (%p153) target = $region32
      $region31: #{a_call__.8} parent=27 // pred_region
        %p156 = scmp.lt.s32.totalorder %s10, 1
        %s157 = scalar_select %p156, %s10, 1
        %s158 = smul.addr %s157, 7
        %s159 = smul.addr %s158, 4
        %s160 = scalar_lea.vmem %s0, %s159
      $region32: #{a_call__.8} parent=27 // pred_fallthru
        _
    $region28: #{a_call__.8} parent=5 // pred_fallthru
      _
    %p161 = scmp.le.s32.totalorder 1, %s10
    %p162 = scmp.lt.s32.totalorder %s10, 3
    %p163 = pnand %p161, %p162
    %p164 = pneg %p163
    // Predicated region
    $region33: #{a_call__.8} parent=5 // pred_check
      _
    $region34: #{a_call__.8} parent=5 // pred_check_branch
      %166 = sbr.rel (%p163) target = $region36
    $region35: #{a_call__.8} parent=5 // pred_region
      %s167 = ssub.s32 %s10, 1
      %p168 = scmp.lt.s32.totalorder %s15, 1
      %s169 = scalar_select %p168, %s15, 1
      %s170 = smul.addr %s169, 7
      %s171 = smul.addr %s170, 4
      %s172 = scalar_lea.vmem %s0, %s171
      %p173 = pneg %p36
      %p174 = pneg %p33
      %p175 = pneg %p57
      %p176 = pneg %p54
      %p177 = pneg %p78
      %p178 = pneg %p75
      %p179 = pneg %p99
      %p180 = pneg %p96
      %p181 = pneg %p125
      %p182 = pneg %p122
      %p183 = scmp.lt.s32.totalorder %s15, 1
      %s184 = scalar_select %p183, %s15, 1
      %s185 = smul.addr %s184, 5
      %s186 = smul.addr %s185, 4
      %s187 = scalar_lea.vmem %s4, %s186
      %p188 = scmp.lt.s32.totalorder %s15, 1
      %s189 = scalar_select %p188, %s15, 1
      %s190 = smul.addr %s189, 7
      %s191 = smul.addr %s190, 4
      %s192 = scalar_lea.vmem %s0, %s191
      %p193 = scmp.lt.s32.totalorder %s15, 1
      %s194 = scalar_select %p193, %s15, 1
      %s195 = smul.addr %s194, 5
      %s196 = smul.addr %s195, 4
      %s197 = scalar_lea.vmem %s4, %s196
      %v199 = vld [vmem:[%s192] sm:$0xf]
      %v200 = vld [vmem:[%s192 + $0x4] sm:$0xf]
      %v201 = vld [vmem:[%s192 + $0x8] sm:$0xf]
      %v202 = vld [vmem:[%s192 + $0xc] sm:$0xf]
      %v203 = vld [vmem:[%s192 + $0x10] sm:$0xf]
      %v204 = vld [vmem:[%s192 + $0x14] sm:$0xf]
      %v205 = vld [vmem:[%s192 + $0x18] sm:$0xf]
      %v211 = vrot.slane %v199, 3
      %v212 = vrot.slane %v200, 3
      %v213 = vrot.slane %v201, 3
      %v214 = vrot.slane %v202, 3
      %v215 = vrot.slane %v203, 3
      %vm216 = vcmask 1040384
      %v219 = vsel %vm216, %v199, %v211
      %vm221 = vcmask 1041409
      %v222 = vsel %vm221, %v199, %v211
      %v224 = vrot.slane %v222, 1
      %vm225 = vcmask 1042434
      %v226 = vsel %vm225, %v199, %v211
      %v228 = vrot.slane %v226, 2
      %v231 = vsel %vm216, %v200, %v212
      %v233 = vsel %vm221, %v200, %v212
      %v235 = vrot.slane %v233, 1
      %v236 = vsel %vm225, %v200, %v212
      %v238 = vrot.slane %v236, 2
      %v241 = vsel %vm216, %v201, %v213
      %v243 = vsel %vm221, %v201, %v213
      %v245 = vrot.slane %v243, 1
      %v246 = vsel %vm225, %v201, %v213
      %v248 = vrot.slane %v246, 2
      %v251 = vsel %vm216, %v202, %v214
      %v253 = vsel %vm221, %v202, %v214
      %v255 = vrot.slane %v253, 1
      %v256 = vsel %vm225, %v202, %v214
      %v258 = vrot.slane %v256, 2
      %v261 = vsel %vm216, %v203, %v215
      %v263 = vsel %vm221, %v203, %v215
      %v265 = vrot.slane %v263, 1
      %v266 = vsel %vm225, %v203, %v215
      %v268 = vrot.slane %v266, 2
      %v269 = vunpack.i.l.s16 %v219
      %v270 = vunpack.i.h.s16 %v219
      %v271 = vunpack.i.l.s16 %v224
      %v272 = vunpack.i.h.s16 %v224
      %v273 = vunpack.i.l.s16 %v228
      %v274 = vunpack.i.l.s16 %v231
      %v275 = vunpack.i.h.s16 %v231
      %v276 = vunpack.i.l.s16 %v235
      %v277 = vunpack.i.h.s16 %v235
      %v278 = vunpack.i.l.s16 %v238
      %v279 = vunpack.i.l.s16 %v241
      %v280 = vunpack.i.h.s16 %v241
      %v281 = vunpack.i.l.s16 %v245
      %v282 = vunpack.i.h.s16 %v245
      %v283 = vunpack.i.l.s16 %v248
      %v284 = vunpack.i.l.s16 %v251
      %v285 = vunpack.i.h.s16 %v251
      %v286 = vunpack.i.l.s16 %v255
      %v287 = vunpack.i.h.s16 %v255
      %v288 = vunpack.i.l.s16 %v258
      %v289 = vunpack.i.l.s16 %v261
      %v290 = vunpack.i.h.s16 %v261
      %v291 = vunpack.i.l.s16 %v265
      %v292 = vunpack.i.h.s16 %v265
      %v293 = vunpack.i.l.s16 %v268
      %v294 = vld [vmem:[%s1] sm:$0xf]
      %v295 = vld [vmem:[%s1 + $0x4] sm:$0xf]
      %v296 = vunpack.i.h.s16 %v228
      %v297 = vunpack.i.h.s16 %v238
      %v298 = vunpack.i.h.s16 %v248
      %v299 = vunpack.i.h.s16 %v258
      %v300 = vunpack.i.h.s16 %v268
      %s301 = scalar_lea.vmem %s1, 8
      %v302 = vld [vmem:[%s301] sm:$0xf]
      %v303 = vld [vmem:[%s301 + $0x4] sm:$0xf]
      %v304 = vpack.i.b16 %v271, %v270
      %v305 = vpack.i.b16 %v273, %v272
      %v306 = vpack.i.b16 %v275, %v296
      %v307 = vpack.i.b16 %v277, %v276
      %v308 = vpack.i.b16 %v297, %v278
      %v309 = vpack.i.b16 %v281, %v280
      %v310 = vpack.i.b16 %v283, %v282
      %v311 = vpack.i.b16 %v285, %v298
      %v312 = vpack.i.b16 %v287, %v286
      %v313 = vpack.i.b16 %v299, %v288
      %v314 = vpack.i.b16 %v291, %v290
      %v315 = vpack.i.b16 %v293, %v292
      %318 = vst [vmem:[#allocation1] ss:$9 sm:$0xff] %v304
      %s320 = scalar_lea.vmem [#allocation1], 1
      %321 = vst [vmem:[%s320] ss:$9 sm:$0xff] %v305
      %s323 = scalar_lea.vmem [#allocation1], 2
      %324 = vst [vmem:[%s323] ss:$9 sm:$0xff] %v306
      %s326 = scalar_lea.vmem [#allocation1], 3
      %327 = vst [vmem:[%s326] ss:$9 sm:$0xff] %v307
      %s329 = scalar_lea.vmem [#allocation1], 4
      %330 = vst [vmem:[%s329] ss:$9 sm:$0xff] %v308
      %s332 = scalar_lea.vmem [#allocation1], 5
      %333 = vst [vmem:[%s332] ss:$9 sm:$0xff] %v309
      %s335 = scalar_lea.vmem [#allocation1], 6
      %336 = vst [vmem:[%s335] ss:$9 sm:$0xff] %v310
      %s338 = scalar_lea.vmem [#allocation1], 7
      %339 = vst [vmem:[%s338] ss:$9 sm:$0xff] %v311
      %v340 = vld [vmem:[#allocation1] sm:$0xff]
      %342 = vst [vmem:[#allocation1] ss:$9 sm:$0xff] %v312
      %344 = vst [vmem:[%s320] ss:$9 sm:$0xff] %v313
      %346 = vst [vmem:[%s323] ss:$9 sm:$0xff] %v314
      %348 = vst [vmem:[%s326] ss:$9 sm:$0xff] %v315
      %350 = vst [vmem:[%s329] ss:$9 sm:$0xff] %v300
      %v351 = vld [vmem:[#allocation1] sm:$0xff]
      %v354 = vunpack.c.l.b16 %v302
      %v355 = vunpack.c.l.b16 %v303
      %v356 = vpack.c.b16 %v355, %v354
      %vm358 = vcmask 130048
      %v359 = vsel %vm358, %v340, 0
      %v361 = vsel %vm358, %v351, 0
      %363 = vmatpush.bf16.msra.mxu0 0
      %364 = vmatpush.bf16.msra.mxu0 0
      %365 = vmatpush.bf16.msra.mxu0 0
      %366 = vmatpush.bf16.msra.mxu0 0
      %367 = vmatpush.bf16.msra.mxu0 0
      %368 = vmatpush.bf16.msra.mxu0 0
      %369 = vmatpush.bf16.msra.mxu0 0
      %370 = vmatpush.bf16.msra.mxu0 %v356
      %371 = vmatmul.bf16.gmra.mxu0 %v359
      %v372 = vpop.f32.mrf.mxu0
      %v373 = vadd.f32 0.0, %v372
      %v374 = vpop.f32.mrf.mxu0
      %v375 = vadd.f32 0.0, %v374
      %376 = vmatmul.bf16.gmra.mxu0 %v361
      %v377 = vpop.f32.mrf.mxu0
      %v378 = vadd.f32 0.0, %v377
      %v379 = vpop.f32.mrf.mxu0
      %v380 = vadd.f32 0.0, %v379
      %381 = vdwg.mxu0
      %v382 = vpack.i.b16 %v270, %v269
      %v383 = vpack.i.b16 %v272, %v271
      %v384 = vpack.i.b16 %v274, %v273
      %v385 = vpack.i.b16 %v276, %v275
      %v386 = vpack.i.b16 %v278, %v277
      %v387 = vpack.i.b16 %v280, %v279
      %v388 = vpack.i.b16 %v282, %v281
      %v389 = vpack.i.b16 %v284, %v283
      %v390 = vpack.i.b16 %v286, %v285
      %v391 = vpack.i.b16 %v288, %v287
      %v392 = vpack.i.b16 %v290, %v289
      %v393 = vpack.i.b16 %v292, %v291
      %396 = vst [vmem:[#allocation1] ss:$9 sm:$0xff] %v382
      %s398 = scalar_lea.vmem [#allocation1], 1
      %399 = vst [vmem:[%s398] ss:$9 sm:$0xff] %v383
      %s401 = scalar_lea.vmem [#allocation1], 2
      %402 = vst [vmem:[%s401] ss:$9 sm:$0xff] %v384
      %s404 = scalar_lea.vmem [#allocation1], 3
      %405 = vst [vmem:[%s404] ss:$9 sm:$0xff] %v385
      %s407 = scalar_lea.vmem [#allocation1], 4
      %408 = vst [vmem:[%s407] ss:$9 sm:$0xff] %v386
      %s410 = scalar_lea.vmem [#allocation1], 5
      %411 = vst [vmem:[%s410] ss:$9 sm:$0xff] %v387
      %s413 = scalar_lea.vmem [#allocation1], 6
      %414 = vst [vmem:[%s413] ss:$9 sm:$0xff] %v388
      %s416 = scalar_lea.vmem [#allocation1], 7
      %417 = vst [vmem:[%s416] ss:$9 sm:$0xff] %v389
      %v418 = vld [vmem:[#allocation1] sm:$0xff]
      %420 = vst [vmem:[#allocation1] ss:$9 sm:$0xff] %v390
      %422 = vst [vmem:[%s398] ss:$9 sm:$0xff] %v391
      %424 = vst [vmem:[%s401] ss:$9 sm:$0xff] %v392
      %426 = vst [vmem:[%s404] ss:$9 sm:$0xff] %v393
      %428 = vst [vmem:[%s407] ss:$9 sm:$0xff] %v293
      %v429 = vld [vmem:[#allocation1] sm:$0xff]
      %v432 = vunpack.c.l.b16 %v294
      %v433 = vunpack.c.l.b16 %v295
      %v434 = vpack.c.b16 %v433, %v432
      %v436 = vsel %vm358, %v418, 0
      %v438 = vsel %vm358, %v429, 0
      %440 = vmatpush.bf16.msra.mxu0 0
      %441 = vmatpush.bf16.msra.mxu0 0
      %442 = vmatpush.bf16.msra.mxu0 0
      %443 = vmatpush.bf16.msra.mxu0 0
      %444 = vmatpush.bf16.msra.mxu0 0
      %445 = vmatpush.bf16.msra.mxu0 0
      %446 = vmatpush.bf16.msra.mxu0 0
      %447 = vmatpush.bf16.msra.mxu0 %v434
      %448 = vmatmul.bf16.gmra.mxu0 %v436
      %v449 = vpop.f32.mrf.mxu0
      %v450 = vadd.f32 %v373, %v449
      %v451 = vpop.f32.mrf.mxu0
      %v452 = vadd.f32 %v375, %v451
      %453 = vmatmul.bf16.gmra.mxu0 %v438
      %v454 = vpop.f32.mrf.mxu0
      %v455 = vadd.f32 %v378, %v454
      %v456 = vpop.f32.mrf.mxu0
      %v457 = vadd.f32 %v380, %v456
      %458 = vdwg.mxu0
      %459 = vst [vmem:[#allocation1] sm:$0xff] %v199
      %s460 = scalar_lea.vmem [#allocation1], 1
      %v461 = vld [vmem:[%s460] ss:$4 sm:$0xff]
      %s463 = scalar_lea.vmem [#allocation1], 2
      %v464 = vld [vmem:[%s463] ss:$4 sm:$0xff]
      %s466 = scalar_lea.vmem [#allocation1], 3
      %v467 = vld [vmem:[%s466] ss:$4 sm:$0xff]
      %469 = vst [vmem:[#allocation1 + $0x20] sm:$0xff] %v200
      %s470 = scalar_lea.vmem [#allocation1], 33
      %v471 = vld [vmem:[%s470] ss:$4 sm:$0xff]
      %s473 = scalar_lea.vmem [#allocation1], 34
      %v474 = vld [vmem:[%s473] ss:$4 sm:$0xff]
      %s476 = scalar_lea.vmem [#allocation1], 35
      %v477 = vld [vmem:[%s476] ss:$4 sm:$0xff]
      %479 = vst [vmem:[#allocation1] sm:$0xff] %v201
      %v480 = vld [vmem:[%s460] ss:$4 sm:$0xff]
      %v482 = vld [vmem:[%s463] ss:$4 sm:$0xff]
      %v484 = vld [vmem:[%s466] ss:$4 sm:$0xff]
      %486 = vst [vmem:[#allocation1 + $0x20] sm:$0xff] %v202
      %v487 = vld [vmem:[%s470] ss:$4 sm:$0xff]
      %v489 = vld [vmem:[%s473] ss:$4 sm:$0xff]
      %v491 = vld [vmem:[%s476] ss:$4 sm:$0xff]
      %493 = vst [vmem:[#allocation1] sm:$0xff] %v203
      %v494 = vld [vmem:[%s460] ss:$4 sm:$0xff]
      %v496 = vld [vmem:[%s463] ss:$4 sm:$0xff]
      %v498 = vld [vmem:[%s466] ss:$4 sm:$0xff]
      %v500 = vunpack.i.l.s16 %v461
      %v501 = vunpack.i.h.s16 %v461
      %v502 = vunpack.i.l.s16 %v464
      %v503 = vunpack.i.h.s16 %v464
      %v504 = vunpack.i.l.s16 %v467
      %v505 = vunpack.i.l.s16 %v471
      %v506 = vunpack.i.h.s16 %v471
      %v507 = vunpack.i.l.s16 %v474
      %v508 = vunpack.i.h.s16 %v474
      %v509 = vunpack.i.l.s16 %v477
      %v510 = vunpack.i.l.s16 %v480
      %v511 = vunpack.i.h.s16 %v480
      %v512 = vunpack.i.l.s16 %v482
      %v513 = vunpack.i.h.s16 %v482
      %v514 = vunpack.i.l.s16 %v484
      %v515 = vunpack.i.l.s16 %v487
      %v516 = vunpack.i.h.s16 %v487
      %v517 = vunpack.i.l.s16 %v489
      %v518 = vunpack.i.h.s16 %v489
      %v519 = vunpack.i.l.s16 %v491
      %v520 = vunpack.i.l.s16 %v494
      %v521 = vunpack.i.h.s16 %v494
      %v522 = vunpack.i.l.s16 %v496
      %v523 = vunpack.i.h.s16 %v496
      %v524 = vunpack.i.l.s16 %v498
      %s525 = scalar_lea.vmem %s1, 16
      %v526 = vld [vmem:[%s525] sm:$0xf]
      %v527 = vld [vmem:[%s525 + $0x4] sm:$0xf]
      %v528 = vpack.i.b16 %v501, %v500
      %v529 = vpack.i.b16 %v503, %v502
      %v530 = vpack.i.b16 %v505, %v504
      %v531 = vpack.i.b16 %v507, %v506
      %v532 = vpack.i.b16 %v509, %v508
      %v533 = vpack.i.b16 %v511, %v510
      %v534 = vpack.i.b16 %v513, %v512
      %v535 = vpack.i.b16 %v515, %v514
      %v536 = vpack.i.b16 %v517, %v516
      %v537 = vpack.i.b16 %v519, %v518
      %v538 = vpack.i.b16 %v521, %v520
      %v539 = vpack.i.b16 %v523, %v522
      %542 = vst [vmem:[#allocation1] ss:$9 sm:$0xff] %v528
      %s544 = scalar_lea.vmem [#allocation1], 1
      %545 = vst [vmem:[%s544] ss:$9 sm:$0xff] %v529
      %s547 = scalar_lea.vmem [#allocation1], 2
      %548 = vst [vmem:[%s547] ss:$9 sm:$0xff] %v530
      %s550 = scalar_lea.vmem [#allocation1], 3
      %551 = vst [vmem:[%s550] ss:$9 sm:$0xff] %v531
      %s553 = scalar_lea.vmem [#allocation1], 4
      %554 = vst [vmem:[%s553] ss:$9 sm:$0xff] %v532
      %s556 = scalar_lea.vmem [#allocation1], 5
      %557 = vst [vmem:[%s556] ss:$9 sm:$0xff] %v533
      %s559 = scalar_lea.vmem [#allocation1], 6
      %560 = vst [vmem:[%s559] ss:$9 sm:$0xff] %v534
      %s562 = scalar_lea.vmem [#allocation1], 7
      %563 = vst [vmem:[%s562] ss:$9 sm:$0xff] %v535
      %v564 = vld [vmem:[#allocation1] sm:$0xff]
      %566 = vst [vmem:[#allocation1] ss:$9 sm:$0xff] %v536
      %568 = vst [vmem:[%s544] ss:$9 sm:$0xff] %v537
      %570 = vst [vmem:[%s547] ss:$9 sm:$0xff] %v538
      %572 = vst [vmem:[%s550] ss:$9 sm:$0xff] %v539
      %574 = vst [vmem:[%s553] ss:$9 sm:$0xff] %v524
      %v575 = vld [vmem:[#allocation1] sm:$0xff]
      %v578 = vunpack.c.l.b16 %v526
      %v579 = vunpack.c.l.b16 %v527
      %v580 = vpack.c.b16 %v579, %v578
      %v582 = vsel %vm358, %v564, 0
      %v584 = vsel %vm358, %v575, 0
      %586 = vmatpush.bf16.msra.mxu0 0
      %587 = vmatpush.bf16.msra.mxu0 0
      %588 = vmatpush.bf16.msra.mxu0 0
      %589 = vmatpush.bf16.msra.mxu0 0
      %590 = vmatpush.bf16.msra.mxu0 0
      %591 = vmatpush.bf16.msra.mxu0 0
      %592 = vmatpush.bf16.msra.mxu0 0
      %593 = vmatpush.bf16.msra.mxu0 %v580
      %594 = vmatmul.bf16.gmra.mxu0 %v582
      %v595 = vpop.f32.mrf.mxu0
      %v596 = vadd.f32 0.0, %v595
      %v597 = vpop.f32.mrf.mxu0
      %v598 = vadd.f32 0.0, %v597
      %599 = vmatmul.bf16.gmra.mxu0 %v584
      %v600 = vpop.f32.mrf.mxu0
      %v601 = vadd.f32 0.0, %v600
      %v602 = vpop.f32.mrf.mxu0
      %v603 = vadd.f32 0.0, %v602
      %604 = vdwg.mxu0
      %v605 = vadd.f32 %v450, %v596
      %v606 = vadd.f32 %v452, %v598
      %v607 = vadd.f32 %v455, %v601
      %v608 = vadd.f32 %v457, %v603
      %v610 = vrot.slane %v204, 3
      %v613 = vsel %vm216, %v204, %v610
      %v615 = vsel %vm221, %v204, %v610
      %v617 = vrot.slane %v615, 1
      %v618 = vsel %vm225, %v204, %v610
      %v620 = vrot.slane %v618, 2
      %v621 = vunpack.i.l.s16 %v613
      %v622 = vunpack.i.h.s16 %v613
      %v623 = vunpack.i.l.s16 %v617
      %v624 = vunpack.i.h.s16 %v617
      %v625 = vunpack.i.l.s16 %v620
      %s626 = scalar_lea.vmem %s1, 24
      %v627 = vld [vmem:[%s626] sm:$0xf]
      %v628 = vld [vmem:[%s626 + $0x4] sm:$0xf]
      %v629 = vpack.i.b16 %v275, %v274
      %v630 = vpack.i.b16 %v279, %v278
      %v631 = vpack.i.b16 %v285, %v284
      %v632 = vpack.i.b16 %v289, %v288
      %v633 = vpack.i.b16 %v622, %v621
      %v634 = vpack.i.b16 %v624, %v623
      %637 = vst [vmem:[#allocation1] ss:$9 sm:$0xff] %v629
      %s638 = scalar_lea.vmem [#allocation1], 1
      %639 = vst [vmem:[%s638] ss:$9 sm:$0xff] %v307
      %s641 = scalar_lea.vmem [#allocation1], 2
      %642 = vst [vmem:[%s641] ss:$9 sm:$0xff] %v630
      %s643 = scalar_lea.vmem [#allocation1], 3
      %644 = vst [vmem:[%s643] ss:$9 sm:$0xff] %v309
      %s645 = scalar_lea.vmem [#allocation1], 4
      %646 = vst [vmem:[%s645] ss:$9 sm:$0xff] %v310
      %s648 = scalar_lea.vmem [#allocation1], 5
      %649 = vst [vmem:[%s648] ss:$9 sm:$0xff] %v631
      %s650 = scalar_lea.vmem [#allocation1], 6
      %651 = vst [vmem:[%s650] ss:$9 sm:$0xff] %v312
      %s653 = scalar_lea.vmem [#allocation1], 7
      %654 = vst [vmem:[%s653] ss:$9 sm:$0xff] %v632
      %v655 = vld [vmem:[#allocation1] sm:$0xff]
      %656 = vst [vmem:[#allocation1] ss:$9 sm:$0xff] %v314
      %657 = vst [vmem:[%s638] ss:$9 sm:$0xff] %v315
      %659 = vst [vmem:[%s641] ss:$9 sm:$0xff] %v633
      %661 = vst [vmem:[%s643] ss:$9 sm:$0xff] %v634
      %663 = vst [vmem:[%s645] ss:$9 sm:$0xff] %v625
      %v664 = vld [vmem:[#allocation1] sm:$0xff]
      %v667 = vunpack.c.l.b16 %v627
      %v668 = vunpack.c.l.b16 %v628
      %v669 = vpack.c.b16 %v668, %v667
      %v671 = vsel %vm358, %v655, 0
      %v673 = vsel %vm358, %v664, 0
      %675 = vmatpush.bf16.msra.mxu0 0
      %676 = vmatpush.bf16.msra.mxu0 0
      %677 = vmatpush.bf16.msra.mxu0 0
      %678 = vmatpush.bf16.msra.mxu0 0
      %679 = vmatpush.bf16.msra.mxu0 0
      %680 = vmatpush.bf16.msra.mxu0 0
      %681 = vmatpush.bf16.msra.mxu0 0
      %682 = vmatpush.bf16.msra.mxu0 %v669
      %683 = vmatmul.bf16.gmra.mxu0 %v671
      %v684 = vpop.f32.mrf.mxu0
      %v685 = vadd.f32 0.0, %v684
      %v686 = vpop.f32.mrf.mxu0
      %v687 = vadd.f32 0.0, %v686
      %688 = vmatmul.bf16.gmra.mxu0 %v673
      %v689 = vpop.f32.mrf.mxu0
      %v690 = vadd.f32 0.0, %v689
      %v691 = vpop.f32.mrf.mxu0
      %v692 = vadd.f32 0.0, %v691
      %693 = vdwg.mxu0
      %v694 = vadd.f32 %v605, %v685
      %v695 = vadd.f32 %v606, %v687
      %v696 = vadd.f32 %v607, %v690
      %v697 = vadd.f32 %v608, %v692
      %v698 = vunpack.i.h.s16 %v620
      %s699 = scalar_lea.vmem %s1, 32
      %v700 = vld [vmem:[%s699] sm:$0xf]
      %v701 = vld [vmem:[%s699 + $0x4] sm:$0xf]
      %v702 = vpack.i.b16 %v280, %v297
      %v703 = vpack.i.b16 %v298, %v283
      %v704 = vpack.i.b16 %v290, %v299
      %v705 = vpack.i.b16 %v300, %v293
      %v706 = vpack.i.b16 %v623, %v622
      %v707 = vpack.i.b16 %v625, %v624
      %709 = vst [vmem:[#allocation1] ss:$9 sm:$0xff] %v385
      %s710 = scalar_lea.vmem [#allocation1], 1
      %711 = vst [vmem:[%s710] ss:$9 sm:$0xff] %v386
      %s713 = scalar_lea.vmem [#allocation1], 2
      %714 = vst [vmem:[%s713] ss:$9 sm:$0xff] %v702
      %s715 = scalar_lea.vmem [#allocation1], 3
      %716 = vst [vmem:[%s715] ss:$9 sm:$0xff] %v388
      %s718 = scalar_lea.vmem [#allocation1], 4
      %719 = vst [vmem:[%s718] ss:$9 sm:$0xff] %v703
      %s720 = scalar_lea.vmem [#allocation1], 5
      %721 = vst [vmem:[%s720] ss:$9 sm:$0xff] %v390
      %s722 = scalar_lea.vmem [#allocation1], 6
      %723 = vst [vmem:[%s722] ss:$9 sm:$0xff] %v391
      %s725 = scalar_lea.vmem [#allocation1], 7
      %726 = vst [vmem:[%s725] ss:$9 sm:$0xff] %v704
      %v727 = vld [vmem:[#allocation1] sm:$0xff]
      %728 = vst [vmem:[#allocation1] ss:$9 sm:$0xff] %v393
      %730 = vst [vmem:[%s710] ss:$9 sm:$0xff] %v705
      %732 = vst [vmem:[%s713] ss:$9 sm:$0xff] %v706
      %734 = vst [vmem:[%s715] ss:$9 sm:$0xff] %v707
      %736 = vst [vmem:[%s718] ss:$9 sm:$0xff] %v698
      %v737 = vld [vmem:[#allocation1] sm:$0xff]
      %v740 = vunpack.c.l.b16 %v700
      %v741 = vunpack.c.l.b16 %v701
      %v742 = vpack.c.b16 %v741, %v740
      %v744 = vsel %vm358, %v727, 0
      %v746 = vsel %vm358, %v737, 0
      %748 = vmatpush.bf16.msra.mxu0 0
      %749 = vmatpush.bf16.msra.mxu0 0
      %750 = vmatpush.bf16.msra.mxu0 0
      %751 = vmatpush.bf16.msra.mxu0 0
      %752 = vmatpush.bf16.msra.mxu0 0
      %753 = vmatpush.bf16.msra.mxu0 0
      %754 = vmatpush.bf16.msra.mxu0 0
      %755 = vmatpush.bf16.msra.mxu0 %v742
      %756 = vmatmul.bf16.gmra.mxu0 %v744
      %v757 = vpop.f32.mrf.mxu0
      %v758 = vadd.f32 0.0, %v757
      %v759 = vpop.f32.mrf.mxu0
      %v760 = vadd.f32 0.0, %v759
      %761 = vmatmul.bf16.gmra.mxu0 %v746
      %v762 = vpop.f32.mrf.mxu0
      %v763 = vadd.f32 0.0, %v762
      %v764 = vpop.f32.mrf.mxu0
      %v765 = vadd.f32 0.0, %v764
      %766 = vdwg.mxu0
      %v767 = vadd.f32 %v694, %v758
      %v768 = vadd.f32 %v695, %v760
      %v769 = vadd.f32 %v696, %v763
      %v770 = vadd.f32 %v697, %v765
      %771 = vst [vmem:[#allocation1] sm:$0xff] %v200
      %s772 = scalar_lea.vmem [#allocation1], 1
      %v773 = vld [vmem:[%s772] ss:$4 sm:$0xff]
      %s775 = scalar_lea.vmem [#allocation1], 2
      %v776 = vld [vmem:[%s775] ss:$4 sm:$0xff]
      %s778 = scalar_lea.vmem [#allocation1], 3
      %v779 = vld [vmem:[%s778] ss:$4 sm:$0xff]
      %781 = vst [vmem:[#allocation1 + $0x20] sm:$0xff] %v201
      %s782 = scalar_lea.vmem [#allocation1], 33
      %v783 = vld [vmem:[%s782] ss:$4 sm:$0xff]
      %s785 = scalar_lea.vmem [#allocation1], 34
      %v786 = vld [vmem:[%s785] ss:$4 sm:$0xff]
      %s788 = scalar_lea.vmem [#allocation1], 35
      %v789 = vld [vmem:[%s788] ss:$4 sm:$0xff]
      %791 = vst [vmem:[#allocation1] sm:$0xff] %v202
      %v792 = vld [vmem:[%s772] ss:$4 sm:$0xff]
      %v794 = vld [vmem:[%s775] ss:$4 sm:$0xff]
      %v796 = vld [vmem:[%s778] ss:$4 sm:$0xff]
      %798 = vst [vmem:[#allocation1 + $0x20] sm:$0xff] %v203
      %v799 = vld [vmem:[%s782] ss:$4 sm:$0xff]
      %v801 = vld [vmem:[%s785] ss:$4 sm:$0xff]
      %v803 = vld [vmem:[%s788] ss:$4 sm:$0xff]
      %805 = vst [vmem:[#allocation1] sm:$0xff] %v204
      %v806 = vld [vmem:[%s772] ss:$4 sm:$0xff]
      %v808 = vld [vmem:[%s775] ss:$4 sm:$0xff]
      %v810 = vld [vmem:[%s778] ss:$4 sm:$0xff]
      %v812 = vunpack.i.l.s16 %v773
      %v813 = vunpack.i.h.s16 %v773
      %v814 = vunpack.i.l.s16 %v776
      %v815 = vunpack.i.h.s16 %v776
      %v816 = vunpack.i.l.s16 %v779
      %v817 = vunpack.i.l.s16 %v783
      %v818 = vunpack.i.h.s16 %v783
      %v819 = vunpack.i.l.s16 %v786
      %v820 = vunpack.i.h.s16 %v786
      %v821 = vunpack.i.l.s16 %v789
      %v822 = vunpack.i.l.s16 %v792
      %v823 = vunpack.i.h.s16 %v792
      %v824 = vunpack.i.l.s16 %v794
      %v825 = vunpack.i.h.s16 %v794
      %v826 = vunpack.i.l.s16 %v796
      %v827 = vunpack.i.l.s16 %v799
      %v828 = vunpack.i.h.s16 %v799
      %v829 = vunpack.i.l.s16 %v801
      %v830 = vunpack.i.h.s16 %v801
      %v831 = vunpack.i.l.s16 %v803
      %v832 = vunpack.i.l.s16 %v806
      %v833 = vunpack.i.h.s16 %v806
      %v834 = vunpack.i.l.s16 %v808
      %v835 = vunpack.i.h.s16 %v808
      %v836 = vunpack.i.l.s16 %v810
      %s837 = scalar_lea.vmem %s1, 40
      %v838 = vld [vmem:[%s837] sm:$0xf]
      %v839 = vld [vmem:[%s837 + $0x4] sm:$0xf]
      %v840 = vpack.i.b16 %v813, %v812
      %v841 = vpack.i.b16 %v815, %v814
      %v842 = vpack.i.b16 %v817, %v816
      %v843 = vpack.i.b16 %v819, %v818
      %v844 = vpack.i.b16 %v821, %v820
      %v845 = vpack.i.b16 %v823, %v822
      %v846 = vpack.i.b16 %v825, %v824
      %v847 = vpack.i.b16 %v827, %v826
      %v848 = vpack.i.b16 %v829, %v828
      %v849 = vpack.i.b16 %v831, %v830
      %v850 = vpack.i.b16 %v833, %v832
      %v851 = vpack.i.b16 %v835, %v834
      %854 = vst [vmem:[#allocation1] ss:$9 sm:$0xff] %v840
      %s856 = scalar_lea.vmem [#allocation1], 1
      %857 = vst [vmem:[%s856] ss:$9 sm:$0xff] %v841
      %s859 = scalar_lea.vmem [#allocation1], 2
      %860 = vst [vmem:[%s859] ss:$9 sm:$0xff] %v842
      %s862 = scalar_lea.vmem [#allocation1], 3
      %863 = vst [vmem:[%s862] ss:$9 sm:$0xff] %v843
      %s865 = scalar_lea.vmem [#allocation1], 4
      %866 = vst [vmem:[%s865] ss:$9 sm:$0xff] %v844
      %s868 = scalar_lea.vmem [#allocation1], 5
      %869 = vst [vmem:[%s868] ss:$9 sm:$0xff] %v845
      %s871 = scalar_lea.vmem [#allocation1], 6
      %872 = vst [vmem:[%s871] ss:$9 sm:$0xff] %v846
      %s874 = scalar_lea.vmem [#allocation1], 7
      %875 = vst [vmem:[%s874] ss:$9 sm:$0xff] %v847
      %v876 = vld [vmem:[#allocation1] sm:$0xff]
      %878 = vst [vmem:[#allocation1] ss:$9 sm:$0xff] %v848
      %880 = vst [vmem:[%s856] ss:$9 sm:$0xff] %v849
      %882 = vst [vmem:[%s859] ss:$9 sm:$0xff] %v850
      %884 = vst [vmem:[%s862] ss:$9 sm:$0xff] %v851
      %886 = vst [vmem:[%s865] ss:$9 sm:$0xff] %v836
      %v887 = vld [vmem:[#allocation1] sm:$0xff]
      %v890 = vunpack.c.l.b16 %v838
      %v891 = vunpack.c.l.b16 %v839
      %v892 = vpack.c.b16 %v891, %v890
      %v894 = vsel %vm358, %v876, 0
      %v896 = vsel %vm358, %v887, 0
      %898 = vmatpush.bf16.msra.mxu0 0
      %899 = vmatpush.bf16.msra.mxu0 0
      %900 = vmatpush.bf16.msra.mxu0 0
      %901 = vmatpush.bf16.msra.mxu0 0
      %902 = vmatpush.bf16.msra.mxu0 0
      %903 = vmatpush.bf16.msra.mxu0 0
      %904 = vmatpush.bf16.msra.mxu0 0
      %905 = vmatpush.bf16.msra.mxu0 %v892
      %906 = vmatmul.bf16.gmra.mxu0 %v894
      %v907 = vpop.f32.mrf.mxu0
      %v908 = vadd.f32 0.0, %v907
      %v909 = vpop.f32.mrf.mxu0
      %v910 = vadd.f32 0.0, %v909
      %911 = vmatmul.bf16.gmra.mxu0 %v896
      %v912 = vpop.f32.mrf.mxu0
      %v913 = vadd.f32 0.0, %v912
      %v914 = vpop.f32.mrf.mxu0
      %v915 = vadd.f32 0.0, %v914
      %916 = vdwg.mxu0
      %v917 = vadd.f32 %v767, %v908
      %v918 = vadd.f32 %v768, %v910
      %v919 = vadd.f32 %v769, %v913
      %v920 = vadd.f32 %v770, %v915
      %v922 = vrot.slane %v205, 3
      %v925 = vsel %vm216, %v205, %v922
      %v927 = vsel %vm221, %v205, %v922
      %v929 = vrot.slane %v927, 1
      %v930 = vsel %vm225, %v205, %v922
      %v932 = vrot.slane %v930, 2
      %v933 = vunpack.i.l.s16 %v925
      %v934 = vunpack.i.h.s16 %v925
      %v935 = vunpack.i.l.s16 %v929
      %v936 = vunpack.i.h.s16 %v929
      %v937 = vunpack.i.l.s16 %v932
      %s938 = scalar_lea.vmem %s1, 48
      %v939 = vld [vmem:[%s938] sm:$0xf]
      %v940 = vld [vmem:[%s938 + $0x4] sm:$0xf]
      %v941 = vpack.i.b16 %v621, %v293
      %v942 = vpack.i.b16 %v934, %v933
      %v943 = vpack.i.b16 %v936, %v935
      %945 = vst [vmem:[#allocation1] ss:$9 sm:$0xff] %v387
      %s946 = scalar_lea.vmem [#allocation1], 1
      %947 = vst [vmem:[%s946] ss:$9 sm:$0xff] %v388
      %s948 = scalar_lea.vmem [#allocation1], 2
      %949 = vst [vmem:[%s948] ss:$9 sm:$0xff] %v389
      %s950 = scalar_lea.vmem [#allocation1], 3
      %951 = vst [vmem:[%s950] ss:$9 sm:$0xff] %v390
      %s952 = scalar_lea.vmem [#allocation1], 4
      %953 = vst [vmem:[%s952] ss:$9 sm:$0xff] %v391
      %s954 = scalar_lea.vmem [#allocation1], 5
      %955 = vst [vmem:[%s954] ss:$9 sm:$0xff] %v392
      %s956 = scalar_lea.vmem [#allocation1], 6
      %957 = vst [vmem:[%s956] ss:$9 sm:$0xff] %v393
      %s959 = scalar_lea.vmem [#allocation1], 7
      %960 = vst [vmem:[%s959] ss:$9 sm:$0xff] %v941
      %v961 = vld [vmem:[#allocation1] sm:$0xff]
      %962 = vst [vmem:[#allocation1] ss:$9 sm:$0xff] %v706
      %963 = vst [vmem:[%s946] ss:$9 sm:$0xff] %v707
      %965 = vst [vmem:[%s948] ss:$9 sm:$0xff] %v942
      %967 = vst [vmem:[%s950] ss:$9 sm:$0xff] %v943
      %969 = vst [vmem:[%s952] ss:$9 sm:$0xff] %v937
      %v970 = vld [vmem:[#allocation1] sm:$0xff]
      %v973 = vunpack.c.l.b16 %v939
      %v974 = vunpack.c.l.b16 %v940
      %v975 = vpack.c.b16 %v974, %v973
      %v977 = vsel %vm358, %v961, 0
      %v979 = vsel %vm358, %v970, 0
      %981 = vmatpush.bf16.msra.mxu0 0
      %982 = vmatpush.bf16.msra.mxu0 0
      %983 = vmatpush.bf16.msra.mxu0 0
      %984 = vmatpush.bf16.msra.mxu0 0
      %985 = vmatpush.bf16.msra.mxu0 0
      %986 = vmatpush.bf16.msra.mxu0 0
      %987 = vmatpush.bf16.msra.mxu0 0
      %988 = vmatpush.bf16.msra.mxu0 %v975
      %989 = vmatmul.bf16.gmra.mxu0 %v977
      %v990 = vpop.f32.mrf.mxu0
      %v991 = vadd.f32 0.0, %v990
      %v992 = vpop.f32.mrf.mxu0
      %v993 = vadd.f32 0.0, %v992
      %994 = vmatmul.bf16.gmra.mxu0 %v979
      %v995 = vpop.f32.mrf.mxu0
      %v996 = vadd.f32 0.0, %v995
      %v997 = vpop.f32.mrf.mxu0
      %v998 = vadd.f32 0.0, %v997
      %999 = vdwg.mxu0
      %v1000 = vadd.f32 %v917, %v991
      %v1001 = vadd.f32 %v918, %v993
      %v1002 = vadd.f32 %v919, %v996
      %v1003 = vadd.f32 %v920, %v998
      %v1004 = vunpack.i.h.s16 %v932
      %s1005 = scalar_lea.vmem %s1, 56
      %v1006 = vld [vmem:[%s1005] sm:$0xf]
      %v1007 = vld [vmem:[%s1005 + $0x4] sm:$0xf]
      %v1008 = vpack.i.b16 %v622, %v300
      %v1009 = vpack.i.b16 %v698, %v625
      %v1010 = vpack.i.b16 %v935, %v934
      %v1011 = vpack.i.b16 %v937, %v936
      %1013 = vst [vmem:[#allocation1] ss:$9 sm:$0xff] %v309
      %s1014 = scalar_lea.vmem [#allocation1], 1
      %1015 = vst [vmem:[%s1014] ss:$9 sm:$0xff] %v310
      %s1016 = scalar_lea.vmem [#allocation1], 2
      %1017 = vst [vmem:[%s1016] ss:$9 sm:$0xff] %v311
      %s1018 = scalar_lea.vmem [#allocation1], 3
      %1019 = vst [vmem:[%s1018] ss:$9 sm:$0xff] %v312
      %s1020 = scalar_lea.vmem [#allocation1], 4
      %1021 = vst [vmem:[%s1020] ss:$9 sm:$0xff] %v313
      %s1022 = scalar_lea.vmem [#allocation1], 5
      %1023 = vst [vmem:[%s1022] ss:$9 sm:$0xff] %v314
      %s1024 = scalar_lea.vmem [#allocation1], 6
      %1025 = vst [vmem:[%s1024] ss:$9 sm:$0xff] %v315
      %s1027 = scalar_lea.vmem [#allocation1], 7
      %1028 = vst [vmem:[%s1027] ss:$9 sm:$0xff] %v1008
      %v1029 = vld [vmem:[#allocation1] sm:$0xff]
      %1030 = vst [vmem:[#allocation1] ss:$9 sm:$0xff] %v634
      %1032 = vst [vmem:[%s1014] ss:$9 sm:$0xff] %v1009
      %1034 = vst [vmem:[%s1016] ss:$9 sm:$0xff] %v1010
      %1036 = vst [vmem:[%s1018] ss:$9 sm:$0xff] %v1011
      %1038 = vst [vmem:[%s1020] ss:$9 sm:$0xff] %v1004
      %v1039 = vld [vmem:[#allocation1] sm:$0xff]
      %v1042 = vunpack.c.l.b16 %v1006
      %v1043 = vunpack.c.l.b16 %v1007
      %v1044 = vpack.c.b16 %v1043, %v1042
      %v1046 = vsel %vm358, %v1029, 0
      %v1048 = vsel %vm358, %v1039, 0
      %1050 = vmatpush.bf16.msra.mxu0 0
      %1051 = vmatpush.bf16.msra.mxu0 0
      %1052 = vmatpush.bf16.msra.mxu0 0
      %1053 = vmatpush.bf16.msra.mxu0 0
      %1054 = vmatpush.bf16.msra.mxu0 0
      %1055 = vmatpush.bf16.msra.mxu0 0
      %1056 = vmatpush.bf16.msra.mxu0 0
      %1057 = vmatpush.bf16.msra.mxu0 %v1044
      %1058 = vmatmul.bf16.gmra.mxu0 %v1046
      %v1059 = vpop.f32.mrf.mxu0
      %v1060 = vadd.f32 0.0, %v1059
      %v1061 = vpop.f32.mrf.mxu0
      %v1062 = vadd.f32 0.0, %v1061
      %1063 = vmatmul.bf16.gmra.mxu0 %v1048
      %v1064 = vpop.f32.mrf.mxu0
      %v1065 = vadd.f32 0.0, %v1064
      %v1066 = vpop.f32.mrf.mxu0
      %v1067 = vadd.f32 0.0, %v1066
      %1068 = vdwg.mxu0
      %v1069 = vadd.f32 %v1000, %v1060
      %v1070 = vadd.f32 %v1001, %v1062
      %v1071 = vadd.f32 %v1002, %v1065
      %v1072 = vadd.f32 %v1003, %v1067
      %1073 = vst [vmem:[#allocation1] sm:$0xff] %v201
      %s1074 = scalar_lea.vmem [#allocation1], 1
      %v1075 = vld [vmem:[%s1074] ss:$4 sm:$0xff]
      %s1077 = scalar_lea.vmem [#allocation1], 2
      %v1078 = vld [vmem:[%s1077] ss:$4 sm:$0xff]
      %s1080 = scalar_lea.vmem [#allocation1], 3
      %v1081 = vld [vmem:[%s1080] ss:$4 sm:$0xff]
      %1083 = vst [vmem:[#allocation1 + $0x20] sm:$0xff] %v202
      %s1084 = scalar_lea.vmem [#allocation1], 33
      %v1085 = vld [vmem:[%s1084] ss:$4 sm:$0xff]
      %s1087 = scalar_lea.vmem [#allocation1], 34
      %v1088 = vld [vmem:[%s1087] ss:$4 sm:$0xff]
      %s1090 = scalar_lea.vmem [#allocation1], 35
      %v1091 = vld [vmem:[%s1090] ss:$4 sm:$0xff]
      %1093 = vst [vmem:[#allocation1] sm:$0xff] %v203
      %v1094 = vld [vmem:[%s1074] ss:$4 sm:$0xff]
      %v1096 = vld [vmem:[%s1077] ss:$4 sm:$0xff]
      %v1098 = vld [vmem:[%s1080] ss:$4 sm:$0xff]
      %1100 = vst [vmem:[#allocation1 + $0x20] sm:$0xff] %v204
      %v1101 = vld [vmem:[%s1084] ss:$4 sm:$0xff]
      %v1103 = vld [vmem:[%s1087] ss:$4 sm:$0xff]
      %v1105 = vld [vmem:[%s1090] ss:$4 sm:$0xff]
      %1107 = vst [vmem:[#allocation1] sm:$0xff] %v205
      %v1108 = vld [vmem:[%s1074] ss:$4 sm:$0xff]
      %v1110 = vld [vmem:[%s1077] ss:$4 sm:$0xff]
      %v1112 = vld [vmem:[%s1080] ss:$4 sm:$0xff]
      %v1114 = vunpack.i.l.s16 %v1075
      %v1115 = vunpack.i.h.s16 %v1075
      %v1116 = vunpack.i.l.s16 %v1078
      %v1117 = vunpack.i.h.s16 %v1078
      %v1118 = vunpack.i.l.s16 %v1081
      %v1119 = vunpack.i.l.s16 %v1085
      %v1120 = vunpack.i.h.s16 %v1085
      %v1121 = vunpack.i.l.s16 %v1088
      %v1122 = vunpack.i.h.s16 %v1088
      %v1123 = vunpack.i.l.s16 %v1091
      %v1124 = vunpack.i.l.s16 %v1094
      %v1125 = vunpack.i.h.s16 %v1094
      %v1126 = vunpack.i.l.s16 %v1096
      %v1127 = vunpack.i.h.s16 %v1096
      %v1128 = vunpack.i.l.s16 %v1098
      %v1129 = vunpack.i.l.s16 %v1101
      %v1130 = vunpack.i.h.s16 %v1101
      %v1131 = vunpack.i.l.s16 %v1103
      %v1132 = vunpack.i.h.s16 %v1103
      %v1133 = vunpack.i.l.s16 %v1105
      %v1134 = vunpack.i.l.s16 %v1108
      %v1135 = vunpack.i.h.s16 %v1108
      %v1136 = vunpack.i.l.s16 %v1110
      %v1137 = vunpack.i.h.s16 %v1110
      %v1138 = vunpack.i.l.s16 %v1112
      %s1139 = scalar_lea.vmem %s1, 64
      %v1140 = vld [vmem:[%s1139] sm:$0xf]
      %v1141 = vld [vmem:[%s1139 + $0x4] sm:$0xf]
      %v1142 = vpack.i.b16 %v1115, %v1114
      %v1143 = vpack.i.b16 %v1117, %v1116
      %v1144 = vpack.i.b16 %v1119, %v1118
      %v1145 = vpack.i.b16 %v1121, %v1120
      %v1146 = vpack.i.b16 %v1123, %v1122
      %v1147 = vpack.i.b16 %v1125, %v1124
      %v1148 = vpack.i.b16 %v1127, %v1126
      %v1149 = vpack.i.b16 %v1129, %v1128
      %v1150 = vpack.i.b16 %v1131, %v1130
      %v1151 = vpack.i.b16 %v1133, %v1132
      %v1152 = vpack.i.b16 %v1135, %v1134
      %v1153 = vpack.i.b16 %v1137, %v1136
      %1156 = vst [vmem:[#allocation1] ss:$9 sm:$0xff] %v1142
      %s1158 = scalar_lea.vmem [#allocation1], 1
      %1159 = vst [vmem:[%s1158] ss:$9 sm:$0xff] %v1143
      %s1161 = scalar_lea.vmem [#allocation1], 2
      %1162 = vst [vmem:[%s1161] ss:$9 sm:$0xff] %v1144
      %s1164 = scalar_lea.vmem [#allocation1], 3
      %1165 = vst [vmem:[%s1164] ss:$9 sm:$0xff] %v1145
      %s1167 = scalar_lea.vmem [#allocation1], 4
      %1168 = vst [vmem:[%s1167] ss:$9 sm:$0xff] %v1146
      %s1170 = scalar_lea.vmem [#allocation1], 5
      %1171 = vst [vmem:[%s1170] ss:$9 sm:$0xff] %v1147
      %s1173 = scalar_lea.vmem [#allocation1], 6
      %1174 = vst [vmem:[%s1173] ss:$9 sm:$0xff] %v1148
      %s1176 = scalar_lea.vmem [#allocation1], 7
      %1177 = vst [vmem:[%s1176] ss:$9 sm:$0xff] %v1149
      %v1178 = vld [vmem:[#allocation1] sm:$0xff]
      %1180 = vst [vmem:[#allocation1] ss:$9 sm:$0xff] %v1150
      %1182 = vst [vmem:[%s1158] ss:$9 sm:$0xff] %v1151
      %1184 = vst [vmem:[%s1161] ss:$9 sm:$0xff] %v1152
      %1186 = vst [vmem:[%s1164] ss:$9 sm:$0xff] %v1153
      %1188 = vst [vmem:[%s1167] ss:$9 sm:$0xff] %v1138
      %v1189 = vld [vmem:[#allocation1] sm:$0xff]
      %v1192 = vunpack.c.l.b16 %v1140
      %v1193 = vunpack.c.l.b16 %v1141
      %v1194 = vpack.c.b16 %v1193, %v1192
      %v1196 = vsel %vm358, %v1178, 0
      %v1198 = vsel %vm358, %v1189, 0
      %1200 = vmatpush.bf16.msra.mxu0 0
      %1201 = vmatpush.bf16.msra.mxu0 0
      %1202 = vmatpush.bf16.msra.mxu0 0
      %1203 = vmatpush.bf16.msra.mxu0 0
      %1204 = vmatpush.bf16.msra.mxu0 0
      %1205 = vmatpush.bf16.msra.mxu0 0
      %1206 = vmatpush.bf16.msra.mxu0 0
      %1207 = vmatpush.bf16.msra.mxu0 %v1194
      %1208 = vmatmul.bf16.gmra.mxu0 %v1196
      %v1209 = vpop.f32.mrf.mxu0
      %v1210 = vadd.f32 0.0, %v1209
      %v1211 = vpop.f32.mrf.mxu0
      %v1212 = vadd.f32 0.0, %v1211
      %1213 = vmatmul.bf16.gmra.mxu0 %v1198
      %v1214 = vpop.f32.mrf.mxu0
      %v1215 = vadd.f32 0.0, %v1214
      %v1216 = vpop.f32.mrf.mxu0
      %v1217 = vadd.f32 0.0, %v1216
      %1218 = vdwg.mxu0
      %v1219 = vadd.f32 %v1069, %v1210
      %v1220 = vadd.f32 %v1070, %v1212
      %v1221 = vadd.f32 %v1071, %v1215
      %v1222 = vadd.f32 %v1072, %v1217
      %v1223 = vld [vmem:[%s2] sm:$0x1]
      %v1225 = vperm.slane %v1223, 0
      %v1227 = vmul.f32 %v1219, %v1225
      %v1228 = vmul.f32 %v1220, %v1225
      %v1229 = vmul.f32 %v1221, %v1225
      %v1230 = vmul.f32 %v1222, %v1225
      %v1231 = vld [vmem:[%s3] sm:$0x1]
      %v1233 = vperm.slane %v1231, 0
      %v1235 = vadd.f32 %v1227, %v1233
      %v1236 = vadd.f32 %v1228, %v1233
      %v1237 = vadd.f32 %v1229, %v1233
      %v1238 = vadd.f32 %v1230, %v1233
      %v1239 = vmax.f32 %v1235, 0.0
      %v1240 = vmax.f32 %v1236, 0.0
      %v1241 = vmax.f32 %v1237, 0.0
      %v1242 = vmax.f32 %v1238, 0.0
      %v1247 = vrot.slane %v1239, 1
      %v1248 = vrot.slane %v1239, 2
      %v1249 = vrot.slane %v1239, 3
      %v1250 = vrot.slane %v1239, 4
      %v1251 = vrot.slane %v1239, 5
      %v1252 = vrot.slane %v1239, 6
      %v1253 = vrot.slane %v1239, 7
      %v1254 = vrot.slane %v1240, 1
      %v1255 = vrot.slane %v1240, 2
      %v1256 = vrot.slane %v1240, 3
      %v1257 = vrot.slane %v1240, 4
      %v1258 = vrot.slane %v1240, 5
      %v1259 = vrot.slane %v1240, 6
      %v1260 = vrot.slane %v1240, 7
      %v1261 = vrot.slane %v1241, 1
      %v1262 = vrot.slane %v1241, 2
      %v1263 = vrot.slane %v1241, 3
      %v1264 = vrot.slane %v1241, 4
      %v1265 = vrot.slane %v1241, 5
      %v1266 = vrot.slane %v1241, 6
      %v1267 = vrot.slane %v1241, 7
      %1268 = vst [vmem:[#allocation1] ss:$9 sm:$0xff] %v1239
      %s1269 = scalar_lea.vmem [#allocation1], 1
      %1270 = vst [vmem:[%s1269] ss:$9 sm:$0xff] %v1247
      %s1271 = scalar_lea.vmem [#allocation1], 2
      %1272 = vst [vmem:[%s1271] ss:$9 sm:$0xff] %v1248
      %s1273 = scalar_lea.vmem [#allocation1], 3
      %1274 = vst [vmem:[%s1273] ss:$9 sm:$0xff] %v1249
      %s1275 = scalar_lea.vmem [#allocation1], 4
      %1276 = vst [vmem:[%s1275] ss:$9 sm:$0xff] %v1250
      %v1277 = vld [vmem:[#allocation1] sm:$0xff]
      %1278 = vst [vmem:[#allocation1] ss:$9 sm:$0xff] %v1251
      %1279 = vst [vmem:[%s1269] ss:$9 sm:$0xff] %v1252
      %1280 = vst [vmem:[%s1271] ss:$9 sm:$0xff] %v1253
      %1281 = vst [vmem:[%s1273] ss:$9 sm:$0xff] %v1240
      %1282 = vst [vmem:[%s1275] ss:$9 sm:$0xff] %v1254
      %v1283 = vld [vmem:[#allocation1] sm:$0xff]
      %1284 = vst [vmem:[#allocation1] ss:$9 sm:$0xff] %v1255
      %1285 = vst [vmem:[%s1269] ss:$9 sm:$0xff] %v1256
      %1286 = vst [vmem:[%s1271] ss:$9 sm:$0xff] %v1257
      %1287 = vst [vmem:[%s1273] ss:$9 sm:$0xff] %v1258
      %1288 = vst [vmem:[%s1275] ss:$9 sm:$0xff] %v1259
      %v1289 = vld [vmem:[#allocation1] sm:$0xff]
      %1290 = vst [vmem:[#allocation1] ss:$9 sm:$0xff] %v1260
      %1291 = vst [vmem:[%s1269] ss:$9 sm:$0xff] %v1241
      %1292 = vst [vmem:[%s1271] ss:$9 sm:$0xff] %v1261
      %1293 = vst [vmem:[%s1273] ss:$9 sm:$0xff] %v1262
      %1294 = vst [vmem:[%s1275] ss:$9 sm:$0xff] %v1263
      %v1295 = vld [vmem:[#allocation1] sm:$0xff]
      %1296 = vst [vmem:[#allocation1] ss:$9 sm:$0xff] %v1264
      %1297 = vst [vmem:[%s1269] ss:$9 sm:$0xff] %v1265
      %1298 = vst [vmem:[%s1271] ss:$9 sm:$0xff] %v1266
      %1299 = vst [vmem:[%s1273] ss:$9 sm:$0xff] %v1267
      %1300 = vst [vmem:[%s1275] ss:$9 sm:$0xff] %v1242
      %v1301 = vld [vmem:[#allocation1] sm:$0xff]
      %v1307 = vpack.c.bf16 %v1277, %v1277
      %v1308 = vpack.c.bf16 %v1283, %v1283
      %v1309 = vpack.c.bf16 %v1289, %v1289
      %v1310 = vpack.c.bf16 %v1295, %v1295
      %v1311 = vpack.c.bf16 %v1301, %v1301
      %vm1312 = vcmask 190464
      %vm1313 = vsmask.f32 2304
      %vm1314 = vmand %vm1312, %vm1313
      %v1315 = vld [vmem:[%s197] sm:$0x7]
      %v1316 = vsel %vm1314, %v1307, %v1315
      %1317 = vst [vmem:[%s197] sm:$0x7] %v1316
      %v1318 = vld [vmem:[%s197 + $0x4] sm:$0x7]
      %v1319 = vsel %vm1314, %v1308, %v1318
      %1320 = vst [vmem:[%s197 + $0x4] sm:$0x7] %v1319
      %v1321 = vld [vmem:[%s197 + $0x8] sm:$0x7]
      %v1322 = vsel %vm1314, %v1309, %v1321
      %1323 = vst [vmem:[%s197 + $0x8] sm:$0x7] %v1322
      %v1324 = vld [vmem:[%s197 + $0xc] sm:$0x7]
      %v1325 = vsel %vm1314, %v1310, %v1324
      %1326 = vst [vmem:[%s197 + $0xc] sm:$0x7] %v1325
      %v1327 = vld [vmem:[%s197 + $0x10] sm:$0x7]
      %v1328 = vsel %vm1314, %v1311, %v1327
      %1329 = vst [vmem:[%s197 + $0x10] sm:$0x7] %v1328
      %p1330 = scmp.lt.s32.totalorder %s15, 1
      %s1331 = scalar_select %p1330, %s15, 1
      %s1332 = smul.addr %s1331, 5
      %s1333 = smul.addr %s1332, 4
      %s1334 = scalar_lea.vmem %s4, %s1333
      // Predicated region
      $region37: #{a_call__.8} parent=35 // pred_check
        %p1335 = pneg %p122
      $region38: #{a_call__.8} parent=35 // pred_check_branch
        %1337 = sbr.rel (%p1335) target = $region40
      $region39: #{a_call__.8} parent=35 // pred_region
        _
      $region40: #{a_call__.8} parent=35 // pred_fallthru
        _
    $region36: #{a_call__.8} parent=5 // pred_fallthru
      _
    %p1338 = scmp.le.s32.totalorder 2, %s10
    // Predicated region
    $region41: #{a_call__.8} parent=5 // pred_check
      %p1339 = pneg %p1338
    $region42: #{a_call__.8} parent=5 // pred_check_branch
      %1341 = sbr.rel (%p1339) target = $region44
    $region43: #{a_call__.8} parent=5 // pred_region
      %s1342 = ssub.s32 %s10, 2
      // Predicated region
      $region45: #{a_call__.8} parent=43 // pred_check
        %p1343 = pneg %p128
      $region46: #{a_call__.8} parent=43 // pred_check_branch
        %1345 = sbr.rel (%p1343) target = $region48
      $region47: #{a_call__.8} parent=43 // pred_region
        %p1346 = scmp.lt.s32.totalorder %s16, 1
        %s1347 = scalar_select %p1346, %s16, 1
        %s1348 = smul.addr %s1347, 5
        %s1349 = smul.addr %s1348, 4
        %s1350 = scalar_lea.vmem %s4, %s1349
      $region48: #{a_call__.8} parent=43 // pred_fallthru
        _
    $region44: #{a_call__.8} parent=5 // pred_fallthru
      _
  $region6: #{a_call__.8} parent=0 // loop_footer
    %s14 = sadd.s32 1, %s10
  $region7: #{a_call__.8} parent=0 // loop_footer_branch
    %9 = sbr.rel target = $region3
  $region8: #{a_call__.8} parent=0 // loop_exit
    _

</llo_original>
